<compile_context>
chip_gen: v6e
topology: v6e:2x2x1
jax: 0.10.0
libtpu: 0.0.40
codegen_flags: <defaults>
</compile_context>

<pallas_src>
import functools

import jax
import jax.numpy as jnp
import numpy as np
from jax.experimental import pallas as pl
from jax.experimental.pallas import tpu as pltpu


HP_LANE = 128   # lane-aligned (padded) hidden width per gate
FC_PAD = 128    # padded fc1 width (64 -> 128)
SUBLANE = 8     # fp32 sublane tile

_VMEM = lambda: pl.BlockSpec(memory_space=pltpu.MemorySpace.VMEM)


def _round_up(n, m):
    return ((n + m - 1) // m) * m


# ----------------------------- Pallas kernel ------------------------------

def arnet_fused_kernel(x_ref, wih0_ref, whh0_ref, b0c_ref, b0n_ref,
                       wih1_ref, whh1_ref, b1c_ref, b1n_ref,
                       w1_ref, bf1_ref, w2_ref, bf2_ref, s0_ref, s1_ref,
                       xhat_ref, rec_ref):
    """Fused 2-layer GRU + h_n selection + MLP epilogue."""
    BP, HP = xhat_ref.shape
    T = x_ref.shape[0] // BP
    H3 = 3 * HP

    whh0 = whh0_ref[...]
    wih1 = wih1_ref[...]
    whh1 = whh1_ref[...]

    # Hoisted bias broadcasts (done once; JAX does not CSE broadcast_in_dim).
    b0n = jnp.broadcast_to(b0n_ref[...], (BP, HP))
    b1c = jnp.broadcast_to(b1c_ref[...], (BP, H3))
    b1n = jnp.broadcast_to(b1n_ref[...], (BP, HP))

    # Hoisted layer-0 input projection: one (T*BP, I) @ (I, 3HP) matmul.
    # b0c already contains bih0 with the r/z hidden biases folded in.
    gi0_all = jnp.dot(x_ref[...], wih0_ref[...],
                      preferred_element_type=jnp.float32) + b0c_ref[...]

    h0 = jnp.zeros((BP, HP), jnp.float32)
    h1 = jnp.zeros((BP, HP), jnp.float32)

    # Fully unrolled recurrence (T is small and static).
    for t in range(T):
        gi0 = gi0_all[t * BP:(t + 1) * BP, :]

        # ---- layer 0: only the h @ Whh matmul is on the serial chain ----
        gh0 = jnp.dot(h0, whh0, preferred_element_type=jnp.float32)
        r0 = jax.nn.sigmoid(gi0[:, 0:HP] + gh0[:, 0:HP])
        z0 = jax.nn.sigmoid(gi0[:, HP:2 * HP] + gh0[:, HP:2 * HP])
        n0 = jnp.tanh(gi0[:, 2 * HP:] + r0 * (gh0[:, 2 * HP:] + b0n))
        h0 = (1.0 - z0) * n0 + z0 * h0

        # ---- layer 1 ----
        gi1 = jnp.dot(h0, wih1, preferred_element_type=jnp.float32) + b1c
        gh1 = jnp.dot(h1, whh1, preferred_element_type=jnp.float32)
        r1 = jax.nn.sigmoid(gi1[:, 0:HP] + gh1[:, 0:HP])
        z1 = jax.nn.sigmoid(gi1[:, HP:2 * HP] + gh1[:, HP:2 * HP])
        n1 = jnp.tanh(gi1[:, 2 * HP:] + r1 * (gh1[:, 2 * HP:] + b1n))
        h1 = (1.0 - z1) * n1 + z1 * h1

    # x_hat = h_n.view(-1, 2, H)[:, -1, :] realized as two selection matmuls.
    x_hat = (jnp.dot(s0_ref[...], h0, preferred_element_type=jnp.float32) +
             jnp.dot(s1_ref[...], h1, preferred_element_type=jnp.float32))
    xhat_ref[...] = x_hat

    # Fused MLP epilogue: rec = tanh(fc2(relu(fc1(x_hat)))).
    hfc = jnp.maximum(
        jnp.dot(x_hat, w1_ref[...], preferred_element_type=jnp.float32)
        + bf1_ref[...], 0.0)
    rec_ref[...] = jnp.tanh(
        jnp.dot(hfc, w2_ref[...], preferred_element_type=jnp.float32)
        + bf2_ref[...])


# --------------------------- parameter prep --------------------------------

def _pad2d(a, rows, cols):
    return jnp.pad(a, ((0, rows - a.shape[0]), (0, cols - a.shape[1])))


def _gate_align(w, H, HP):
    """(rows, 3H) -> (rows, 3HP): gate g placed at lane offset g*HP, zero-padded."""
    blocks = [jnp.pad(w[:, g * H:(g + 1) * H], ((0, 0), (0, HP - H)))
              for g in range(3)]
    return jnp.concatenate(blocks, axis=1)


def prepare_params(p):
    """Pad / lane-align / bias-fold raw (transposed) params once, outside jit."""
    H = p["whh0"].shape[0]
    HP = max(HP_LANE, _round_up(H, HP_LANE))
    FP = max(FC_PAD, _round_up(64, FC_PAD))

    def fold_bias(bih, bhh):
        # Fold r/z hidden biases into the input-side bias; the n-gate hidden
        # bias must stay inside  r * (h @ Whh_n + bhh_n).
        bc = jnp.concatenate(
            [bih[:, :2 * H] + bhh[:, :2 * H], bih[:, 2 * H:]], axis=1)
        return _gate_align(bc, H, HP), _pad2d(bhh[:, 2 * H:], 1, HP)

    b0c, b0n = fold_bias(p["bih0"], p["bhh0"])
    b1c, b1n = fold_bias(p["bih1"], p["bhh1"])

    return {
        "wih0": _gate_align(p["wih0"], H, HP),                        # (I, 3HP)
        "whh0": _pad2d(_gate_align(p["whh0"], H, HP), HP, 3 * HP),    # (HP, 3HP)
        "b0c": b0c, "b0n": b0n,
        "wih1": _pad2d(_gate_align(p["wih1"], H, HP), HP, 3 * HP),
        "whh1": _pad2d(_gate_align(p["whh1"], H, HP), HP, 3 * HP),
        "b1c": b1c, "b1n": b1n,
        "w1": _pad2d(p["w1"], HP, FP), "b1": _pad2d(p["b1"], 1, FP),
        "w2": _pad2d(p["w2"], FP, HP), "b2": _pad2d(p["b2"], 1, HP),
    }


# ------------------------------- forward -----------------------------------

@functools.partial(jax.jit, static_argnames=("hidden_size",))
def arnet_forward(x_bti, pp, *, hidden_size):
    """Reproduces ARNetReconstructionLoss.forward (eval mode). x is (B, T, I)."""
    B, T, I = x_bti.shape
    H = hidden_size
    HP = pp["whh0"].shape[0]
    BP = _round_up(B, SUBLANE)

    # Time-major, batch padded to the sublane tile, flattened to (T*BP, I).
    x_tb = jnp.transpose(x_bti, (1, 0, 2))
    x_tb = jnp.pad(x_tb, ((0, 0), (0, BP - B), (0, 0)))
    x2d = x_tb.reshape(T * BP, I)

    # Selection matrices reproducing h_n.view(-1, 2, H)[:, -1, :]:
    # output row i <- flattened h_n row (2i+1) = (layer=(2i+1)//B, batch=(2i+1)%B).
    s0 = np.zeros((BP, BP), np.float32)
    s1 = np.zeros((BP, BP), np.float32)
    for i in range(B):
        layer, b = divmod(2 * i + 1, B)
        (s0 if layer == 0 else s1)[i, b] = 1.0

    inputs = (x2d, pp["wih0"], pp["whh0"], pp["b0c"], pp["b0n"],
              pp["wih1"], pp["whh1"], pp["b1c"], pp["b1n"],
              pp["w1"], pp["b1"], pp["w2"], pp["b2"],
              jnp.asarray(s0), jnp.asarray(s1))

    x_hat_pad, rec_pad = pl.pallas_call(
        arnet_fused_kernel,
        out_shape=(jax.ShapeDtypeStruct((BP, HP), jnp.float32),
                   jax.ShapeDtypeStruct((BP, HP), jnp.float32)),
        in_specs=[_VMEM() for _ in inputs],
        out_specs=(_VMEM(), _VMEM()),
    )(*inputs)

    # self.dropout is identity in eval mode.
    # TODO(synk): training-mode dropout (p=0.5) not implemented; eval semantics.
    return x_hat_pad[:B, :H], rec_pad[:B, :H]


# ---------------------------- parameter init -------------------------------

def init_params(key, input_size, hidden_size):
    H = hidden_size
    ks = jax.random.split(key, 12)
    bound_g = 1.0 / np.sqrt(H)

    def u(k, shape, bound):
        return jax.random.uniform(k, shape, jnp.float32, -bound, bound)

    return {
        # GRU layer 0 (stored transposed: (in, 3H)); gate order (r, z, n)
        "wih0": u(ks[0], (input_size, 3 * H), bound_g),
        "whh0": u(ks[1], (H, 3 * H), bound_g),
        "bih0": u(ks[2], (1, 3 * H), bound_g),
        "bhh0": u(ks[3], (1, 3 * H), bound_g),
        # GRU layer 1
        "wih1": u(ks[4], (H, 3 * H), bound_g),
        "whh1": u(ks[5], (H, 3 * H), bound_g),
        "bih1": u(ks[6], (1, 3 * H), bound_g),
        "bhh1": u(ks[7], (1, 3 * H), bound_g),
        # fc1: Linear(H, 64); fc2: Linear(64, H)   (stored transposed)
        "w1": u(ks[8], (H, 64), 1.0 / np.sqrt(H)),
        "b1": u(ks[9], (1, 64), 1.0 / np.sqrt(H)),
        "w2": u(ks[10], (64, H), 1.0 / np.sqrt(64)),
        "b2": u(ks[11], (1, H), 1.0 / np.sqrt(64)),
    }


# --------------------------- pure-JAX reference -----------------------------

def reference_forward(x_bti, p):
    B, T, _ = x_bti.shape
    H = p["whh0"].shape[0]

    def cell(x_t, h, w_ih, w_hh, b_ih, b_hh):
        gi = x_t @ w_ih + b_ih
        gh = h @ w_hh + b_hh
        r = jax.nn.sigmoid(gi[:, :H] + gh[:, :H])
        z = jax.nn.sigmoid(gi[:, H:2 * H] + gh[:, H:2 * H])
        n = jnp.tanh(gi[:, 2 * H:] + r * gh[:, 2 * H:])
        return (1.0 - z) * n + z * h

    def step(carry, x_t):
        h0, h1 = carry
        h0 = cell(x_t, h0, p["wih0"], p["whh0"], p["bih0"], p["bhh0"])
        h1 = cell(h0, h1, p["wih1"], p["whh1"], p["bih1"], p["bhh1"])
        return (h0, h1), None

    h0 = jnp.zeros((B, H), jnp.float32)
    h1 = jnp.zeros((B, H), jnp.float32)
    (h0, h1), _ = jax.lax.scan(step, (h0, h1), jnp.transpose(x_bti, (1, 0, 2)))
    hn = jnp.stack([h0, h1], axis=0)
    x_hat = hn.reshape(2 * B, H)[1::2]
    rec = jnp.tanh(jnp.maximum(x_hat @ p["w1"] + p["b1"], 0.0) @ p["w2"] + p["b2"])
    return x_hat, rec


# --------------------------------- main -------------------------------------

if __name__ == "__main__":
    B, T = 2, 8
    INPUT_SIZE, HIDDEN_SIZE, NUM_CLASSES = 16, 32, 4  # num_classes unused in forward

    key = jax.random.PRNGKey(0)
    kx, kp = jax.random.split(key)
    x = jax.random.normal(kx, (B, T, INPUT_SIZE), jnp.float32)  # batch_first input
    params = init_params(kp, INPUT_SIZE, HIDDEN_SIZE)
    padded_params = prepare_params(params)

    x_hat, rec = arnet_forward(x, padded_params, hidden_size=HIDDEN_SIZE)
    jax.block_until_ready((x_hat, rec))

    x_hat_ref, rec_ref = reference_forward(x, params)
    np.testing.assert_allclose(np.asarray(x_hat), np.asarray(x_hat_ref),
                               rtol=1e-5, atol=1e-5)
    np.testing.assert_allclose(np.asarray(rec), np.asarray(rec_ref),
                               rtol=1e-5, atol=1e-5)

    print("KERNEL_OK")
</pallas_src>

<mosaic_0001>
module attributes {stable_mosaic.version = 11 : i64} {
  func.func @arnet_fused_kernel(%arg0: memref<64x16xf32, #tpu.memory_space<vmem>>, %arg1: memref<16x384xf32, #tpu.memory_space<vmem>>, %arg2: memref<128x384xf32, #tpu.memory_space<vmem>>, %arg3: memref<1x384xf32, #tpu.memory_space<vmem>>, %arg4: memref<1x128xf32, #tpu.memory_space<vmem>>, %arg5: memref<128x384xf32, #tpu.memory_space<vmem>>, %arg6: memref<128x384xf32, #tpu.memory_space<vmem>>, %arg7: memref<1x384xf32, #tpu.memory_space<vmem>>, %arg8: memref<1x128xf32, #tpu.memory_space<vmem>>, %arg9: memref<128x128xf32, #tpu.memory_space<vmem>>, %arg10: memref<1x128xf32, #tpu.memory_space<vmem>>, %arg11: memref<128x128xf32, #tpu.memory_space<vmem>>, %arg12: memref<1x128xf32, #tpu.memory_space<vmem>>, %arg13: memref<8x8xf32, #tpu.memory_space<vmem>>, %arg14: memref<8x8xf32, #tpu.memory_space<vmem>>, %arg15: memref<8x128xf32, #tpu.memory_space<vmem>>, %arg16: memref<8x128xf32, #tpu.memory_space<vmem>>) attributes {dimension_semantics = [], scalar_prefetch = 0 : i64, scratch_operands = 0 : i64, tpu.core_type = #tpu.core_type<tc>} {
    %c0 = arith.constant 0 : index
    %c0_0 = arith.constant 0 : index
    %0 = vector.load %arg2[%c0, %c0_0] : memref<128x384xf32, #tpu.memory_space<vmem>>, vector<128x384xf32>
    %c0_1 = arith.constant 0 : index
    %c0_2 = arith.constant 0 : index
    %1 = vector.load %arg5[%c0_1, %c0_2] : memref<128x384xf32, #tpu.memory_space<vmem>>, vector<128x384xf32>
    %c0_3 = arith.constant 0 : index
    %c0_4 = arith.constant 0 : index
    %2 = vector.load %arg6[%c0_3, %c0_4] : memref<128x384xf32, #tpu.memory_space<vmem>>, vector<128x384xf32>
    %c0_5 = arith.constant 0 : index
    %c0_6 = arith.constant 0 : index
    %3 = vector.load %arg4[%c0_5, %c0_6] : memref<1x128xf32, #tpu.memory_space<vmem>>, vector<1x128xf32>
    %4 = vector.shape_cast %3 : vector<1x128xf32> to vector<1x128xf32>
    %5 = vector.broadcast %4 : vector<1x128xf32> to vector<8x128xf32>
    %c0_7 = arith.constant 0 : index
    %c0_8 = arith.constant 0 : index
    %6 = vector.load %arg7[%c0_7, %c0_8] : memref<1x384xf32, #tpu.memory_space<vmem>>, vector<1x384xf32>
    %7 = vector.shape_cast %6 : vector<1x384xf32> to vector<1x384xf32>
    %8 = vector.broadcast %7 : vector<1x384xf32> to vector<8x384xf32>
    %c0_9 = arith.constant 0 : index
    %c0_10 = arith.constant 0 : index
    %9 = vector.load %arg8[%c0_9, %c0_10] : memref<1x128xf32, #tpu.memory_space<vmem>>, vector<1x128xf32>
    %10 = vector.shape_cast %9 : vector<1x128xf32> to vector<1x128xf32>
    %11 = vector.broadcast %10 : vector<1x128xf32> to vector<8x128xf32>
    %c0_11 = arith.constant 0 : index
    %c0_12 = arith.constant 0 : index
    %12 = vector.load %arg0[%c0_11, %c0_12] : memref<64x16xf32, #tpu.memory_space<vmem>>, vector<64x16xf32>
    %c0_13 = arith.constant 0 : index
    %c0_14 = arith.constant 0 : index
    %13 = vector.load %arg1[%c0_13, %c0_14] : memref<16x384xf32, #tpu.memory_space<vmem>>, vector<16x384xf32>
    %cst = arith.constant dense<0.000000e+00> : vector<64x384xf32>
    %14 = tpu.matmul %12, %13, %cst {dimension_numbers = #tpu.dot_dimension_numbers<[1], [0], [0], [1], [0, 0, 1, 1], [], []>} : vector<64x16xf32>, vector<16x384xf32>, vector<64x384xf32> -> vector<64x384xf32>
    %c0_15 = arith.constant 0 : index
    %c0_16 = arith.constant 0 : index
    %15 = vector.load %arg3[%c0_15, %c0_16] : memref<1x384xf32, #tpu.memory_space<vmem>>, vector<1x384xf32>
    %16 = vector.broadcast %15 : vector<1x384xf32> to vector<64x384xf32>
    %17 = arith.addf %14, %16 : vector<64x384xf32>
    %cst_17 = arith.constant 0.000000e+00 : f32
    %18 = vector.broadcast %cst_17 : f32 to vector<8x128xf32>
    %cst_18 = arith.constant 0.000000e+00 : f32
    %19 = vector.broadcast %cst_18 : f32 to vector<8x128xf32>
    %20 = vector.extract_strided_slice %17 {offsets = [0, 0], sizes = [8, 384], strides = [1, 1]} : vector<64x384xf32> to vector<8x384xf32>
    %cst_19 = arith.constant dense<0.000000e+00> : vector<8x384xf32>
    %21 = tpu.matmul %18, %0, %cst_19 {dimension_numbers = #tpu.dot_dimension_numbers<[1], [0], [0], [1], [0, 0, 1, 1], [], []>} : vector<8x128xf32>, vector<128x384xf32>, vector<8x384xf32> -> vector<8x384xf32>
    %22 = vector.extract_strided_slice %20 {offsets = [0, 0], sizes = [8, 128], strides = [1, 1]} : vector<8x384xf32> to vector<8x128xf32>
    %23 = vector.extract_strided_slice %21 {offsets = [0, 0], sizes = [8, 128], strides = [1, 1]} : vector<8x384xf32> to vector<8x128xf32>
    %24 = arith.addf %22, %23 : vector<8x128xf32>
    %25 = arith.negf %24 : vector<8x128xf32>
    %26 = math.exp %25 : vector<8x128xf32>
    %cst_20 = arith.constant 1.000000e+00 : f32
    %27 = vector.broadcast %cst_20 : f32 to vector<8x128xf32>
    %28 = arith.addf %27, %26 : vector<8x128xf32>
    %29 = arith.divf %27, %28 : vector<8x128xf32>
    %30 = vector.extract_strided_slice %20 {offsets = [0, 128], sizes = [8, 128], strides = [1, 1]} : vector<8x384xf32> to vector<8x128xf32>
    %31 = vector.extract_strided_slice %21 {offsets = [0, 128], sizes = [8, 128], strides = [1, 1]} : vector<8x384xf32> to vector<8x128xf32>
    %32 = arith.addf %30, %31 : vector<8x128xf32>
    %33 = arith.negf %32 : vector<8x128xf32>
    %34 = math.exp %33 : vector<8x128xf32>
    %cst_21 = arith.constant 1.000000e+00 : f32
    %35 = vector.broadcast %cst_21 : f32 to vector<8x128xf32>
    %36 = arith.addf %35, %34 : vector<8x128xf32>
    %37 = arith.divf %35, %36 : vector<8x128xf32>
    %38 = vector.extract_strided_slice %20 {offsets = [0, 256], sizes = [8, 128], strides = [1, 1]} : vector<8x384xf32> to vector<8x128xf32>
    %39 = vector.extract_strided_slice %21 {offsets = [0, 256], sizes = [8, 128], strides = [1, 1]} : vector<8x384xf32> to vector<8x128xf32>
    %40 = arith.addf %39, %5 : vector<8x128xf32>
    %41 = arith.mulf %29, %40 : vector<8x128xf32>
    %42 = arith.addf %38, %41 : vector<8x128xf32>
    %43 = math.tanh %42 : vector<8x128xf32>
    %cst_22 = arith.constant 1.000000e+00 : f32
    %44 = vector.broadcast %cst_22 : f32 to vector<8x128xf32>
    %45 = arith.subf %44, %37 : vector<8x128xf32>
    %46 = arith.mulf %45, %43 : vector<8x128xf32>
    %47 = arith.mulf %37, %18 : vector<8x128xf32>
    %48 = arith.addf %46, %47 : vector<8x128xf32>
    %cst_23 = arith.constant dense<0.000000e+00> : vector<8x384xf32>
    %49 = tpu.matmul %48, %1, %cst_23 {dimension_numbers = #tpu.dot_dimension_numbers<[1], [0], [0], [1], [0, 0, 1, 1], [], []>} : vector<8x128xf32>, vector<128x384xf32>, vector<8x384xf32> -> vector<8x384xf32>
    %50 = arith.addf %49, %8 : vector<8x384xf32>
    %cst_24 = arith.constant dense<0.000000e+00> : vector<8x384xf32>
    %51 = tpu.matmul %19, %2, %cst_24 {dimension_numbers = #tpu.dot_dimension_numbers<[1], [0], [0], [1], [0, 0, 1, 1], [], []>} : vector<8x128xf32>, vector<128x384xf32>, vector<8x384xf32> -> vector<8x384xf32>
    %52 = vector.extract_strided_slice %50 {offsets = [0, 0], sizes = [8, 128], strides = [1, 1]} : vector<8x384xf32> to vector<8x128xf32>
    %53 = vector.extract_strided_slice %51 {offsets = [0, 0], sizes = [8, 128], strides = [1, 1]} : vector<8x384xf32> to vector<8x128xf32>
    %54 = arith.addf %52, %53 : vector<8x128xf32>
    %55 = arith.negf %54 : vector<8x128xf32>
    %56 = math.exp %55 : vector<8x128xf32>
    %cst_25 = arith.constant 1.000000e+00 : f32
    %57 = vector.broadcast %cst_25 : f32 to vector<8x128xf32>
    %58 = arith.addf %57, %56 : vector<8x128xf32>
    %59 = arith.divf %57, %58 : vector<8x128xf32>
    %60 = vector.extract_strided_slice %50 {offsets = [0, 128], sizes = [8, 128], strides = [1, 1]} : vector<8x384xf32> to vector<8x128xf32>
    %61 = vector.extract_strided_slice %51 {offsets = [0, 128], sizes = [8, 128], strides = [1, 1]} : vector<8x384xf32> to vector<8x128xf32>
    %62 = arith.addf %60, %61 : vector<8x128xf32>
    %63 = arith.negf %62 : vector<8x128xf32>
    %64 = math.exp %63 : vector<8x128xf32>
    %cst_26 = arith.constant 1.000000e+00 : f32
    %65 = vector.broadcast %cst_26 : f32 to vector<8x128xf32>
    %66 = arith.addf %65, %64 : vector<8x128xf32>
    %67 = arith.divf %65, %66 : vector<8x128xf32>
    %68 = vector.extract_strided_slice %50 {offsets = [0, 256], sizes = [8, 128], strides = [1, 1]} : vector<8x384xf32> to vector<8x128xf32>
    %69 = vector.extract_strided_slice %51 {offsets = [0, 256], sizes = [8, 128], strides = [1, 1]} : vector<8x384xf32> to vector<8x128xf32>
    %70 = arith.addf %69, %11 : vector<8x128xf32>
    %71 = arith.mulf %59, %70 : vector<8x128xf32>
    %72 = arith.addf %68, %71 : vector<8x128xf32>
    %73 = math.tanh %72 : vector<8x128xf32>
    %cst_27 = arith.constant 1.000000e+00 : f32
    %74 = vector.broadcast %cst_27 : f32 to vector<8x128xf32>
    %75 = arith.subf %74, %67 : vector<8x128xf32>
    %76 = arith.mulf %75, %73 : vector<8x128xf32>
    %77 = arith.mulf %67, %19 : vector<8x128xf32>
    %78 = arith.addf %76, %77 : vector<8x128xf32>
    %79 = vector.extract_strided_slice %17 {offsets = [8, 0], sizes = [8, 384], strides = [1, 1]} : vector<64x384xf32> to vector<8x384xf32>
    %cst_28 = arith.constant dense<0.000000e+00> : vector<8x384xf32>
    %80 = tpu.matmul %48, %0, %cst_28 {dimension_numbers = #tpu.dot_dimension_numbers<[1], [0], [0], [1], [0, 0, 1, 1], [], []>} : vector<8x128xf32>, vector<128x384xf32>, vector<8x384xf32> -> vector<8x384xf32>
    %81 = vector.extract_strided_slice %79 {offsets = [0, 0], sizes = [8, 128], strides = [1, 1]} : vector<8x384xf32> to vector<8x128xf32>
    %82 = vector.extract_strided_slice %80 {offsets = [0, 0], sizes = [8, 128], strides = [1, 1]} : vector<8x384xf32> to vector<8x128xf32>
    %83 = arith.addf %81, %82 : vector<8x128xf32>
    %84 = arith.negf %83 : vector<8x128xf32>
    %85 = math.exp %84 : vector<8x128xf32>
    %cst_29 = arith.constant 1.000000e+00 : f32
    %86 = vector.broadcast %cst_29 : f32 to vector<8x128xf32>
    %87 = arith.addf %86, %85 : vector<8x128xf32>
    %88 = arith.divf %86, %87 : vector<8x128xf32>
    %89 = vector.extract_strided_slice %79 {offsets = [0, 128], sizes = [8, 128], strides = [1, 1]} : vector<8x384xf32> to vector<8x128xf32>
    %90 = vector.extract_strided_slice %80 {offsets = [0, 128], sizes = [8, 128], strides = [1, 1]} : vector<8x384xf32> to vector<8x128xf32>
    %91 = arith.addf %89, %90 : vector<8x128xf32>
    %92 = arith.negf %91 : vector<8x128xf32>
    %93 = math.exp %92 : vector<8x128xf32>
    %cst_30 = arith.constant 1.000000e+00 : f32
    %94 = vector.broadcast %cst_30 : f32 to vector<8x128xf32>
    %95 = arith.addf %94, %93 : vector<8x128xf32>
    %96 = arith.divf %94, %95 : vector<8x128xf32>
    %97 = vector.extract_strided_slice %79 {offsets = [0, 256], sizes = [8, 128], strides = [1, 1]} : vector<8x384xf32> to vector<8x128xf32>
    %98 = vector.extract_strided_slice %80 {offsets = [0, 256], sizes = [8, 128], strides = [1, 1]} : vector<8x384xf32> to vector<8x128xf32>
    %99 = arith.addf %98, %5 : vector<8x128xf32>
    %100 = arith.mulf %88, %99 : vector<8x128xf32>
    %101 = arith.addf %97, %100 : vector<8x128xf32>
    %102 = math.tanh %101 : vector<8x128xf32>
    %cst_31 = arith.constant 1.000000e+00 : f32
    %103 = vector.broadcast %cst_31 : f32 to vector<8x128xf32>
    %104 = arith.subf %103, %96 : vector<8x128xf32>
    %105 = arith.mulf %104, %102 : vector<8x128xf32>
    %106 = arith.mulf %96, %48 : vector<8x128xf32>
    %107 = arith.addf %105, %106 : vector<8x128xf32>
    %cst_32 = arith.constant dense<0.000000e+00> : vector<8x384xf32>
    %108 = tpu.matmul %107, %1, %cst_32 {dimension_numbers = #tpu.dot_dimension_numbers<[1], [0], [0], [1], [0, 0, 1, 1], [], []>} : vector<8x128xf32>, vector<128x384xf32>, vector<8x384xf32> -> vector<8x384xf32>
    %109 = arith.addf %108, %8 : vector<8x384xf32>
    %cst_33 = arith.constant dense<0.000000e+00> : vector<8x384xf32>
    %110 = tpu.matmul %78, %2, %cst_33 {dimension_numbers = #tpu.dot_dimension_numbers<[1], [0], [0], [1], [0, 0, 1, 1], [], []>} : vector<8x128xf32>, vector<128x384xf32>, vector<8x384xf32> -> vector<8x384xf32>
    %111 = vector.extract_strided_slice %109 {offsets = [0, 0], sizes = [8, 128], strides = [1, 1]} : vector<8x384xf32> to vector<8x128xf32>
    %112 = vector.extract_strided_slice %110 {offsets = [0, 0], sizes = [8, 128], strides = [1, 1]} : vector<8x384xf32> to vector<8x128xf32>
    %113 = arith.addf %111, %112 : vector<8x128xf32>
    %114 = arith.negf %113 : vector<8x128xf32>
    %115 = math.exp %114 : vector<8x128xf32>
    %cst_34 = arith.constant 1.000000e+00 : f32
    %116 = vector.broadcast %cst_34 : f32 to vector<8x128xf32>
    %117 = arith.addf %116, %115 : vector<8x128xf32>
    %118 = arith.divf %116, %117 : vector<8x128xf32>
    %119 = vector.extract_strided_slice %109 {offsets = [0, 128], sizes = [8, 128], strides = [1, 1]} : vector<8x384xf32> to vector<8x128xf32>
    %120 = vector.extract_strided_slice %110 {offsets = [0, 128], sizes = [8, 128], strides = [1, 1]} : vector<8x384xf32> to vector<8x128xf32>
    %121 = arith.addf %119, %120 : vector<8x128xf32>
    %122 = arith.negf %121 : vector<8x128xf32>
    %123 = math.exp %122 : vector<8x128xf32>
    %cst_35 = arith.constant 1.000000e+00 : f32
    %124 = vector.broadcast %cst_35 : f32 to vector<8x128xf32>
    %125 = arith.addf %124, %123 : vector<8x128xf32>
    %126 = arith.divf %124, %125 : vector<8x128xf32>
    %127 = vector.extract_strided_slice %109 {offsets = [0, 256], sizes = [8, 128], strides = [1, 1]} : vector<8x384xf32> to vector<8x128xf32>
    %128 = vector.extract_strided_slice %110 {offsets = [0, 256], sizes = [8, 128], strides = [1, 1]} : vector<8x384xf32> to vector<8x128xf32>
    %129 = arith.addf %128, %11 : vector<8x128xf32>
    %130 = arith.mulf %118, %129 : vector<8x128xf32>
    %131 = arith.addf %127, %130 : vector<8x128xf32>
    %132 = math.tanh %131 : vector<8x128xf32>
    %cst_36 = arith.constant 1.000000e+00 : f32
    %133 = vector.broadcast %cst_36 : f32 to vector<8x128xf32>
    %134 = arith.subf %133, %126 : vector<8x128xf32>
    %135 = arith.mulf %134, %132 : vector<8x128xf32>
    %136 = arith.mulf %126, %78 : vector<8x128xf32>
    %137 = arith.addf %135, %136 : vector<8x128xf32>
    %138 = vector.extract_strided_slice %17 {offsets = [16, 0], sizes = [8, 384], strides = [1, 1]} : vector<64x384xf32> to vector<8x384xf32>
    %cst_37 = arith.constant dense<0.000000e+00> : vector<8x384xf32>
    %139 = tpu.matmul %107, %0, %cst_37 {dimension_numbers = #tpu.dot_dimension_numbers<[1], [0], [0], [1], [0, 0, 1, 1], [], []>} : vector<8x128xf32>, vector<128x384xf32>, vector<8x384xf32> -> vector<8x384xf32>
    %140 = vector.extract_strided_slice %138 {offsets = [0, 0], sizes = [8, 128], strides = [1, 1]} : vector<8x384xf32> to vector<8x128xf32>
    %141 = vector.extract_strided_slice %139 {offsets = [0, 0], sizes = [8, 128], strides = [1, 1]} : vector<8x384xf32> to vector<8x128xf32>
    %142 = arith.addf %140, %141 : vector<8x128xf32>
    %143 = arith.negf %142 : vector<8x128xf32>
    %144 = math.exp %143 : vector<8x128xf32>
    %cst_38 = arith.constant 1.000000e+00 : f32
    %145 = vector.broadcast %cst_38 : f32 to vector<8x128xf32>
    %146 = arith.addf %145, %144 : vector<8x128xf32>
    %147 = arith.divf %145, %146 : vector<8x128xf32>
    %148 = vector.extract_strided_slice %138 {offsets = [0, 128], sizes = [8, 128], strides = [1, 1]} : vector<8x384xf32> to vector<8x128xf32>
    %149 = vector.extract_strided_slice %139 {offsets = [0, 128], sizes = [8, 128], strides = [1, 1]} : vector<8x384xf32> to vector<8x128xf32>
    %150 = arith.addf %148, %149 : vector<8x128xf32>
    %151 = arith.negf %150 : vector<8x128xf32>
    %152 = math.exp %151 : vector<8x128xf32>
    %cst_39 = arith.constant 1.000000e+00 : f32
    %153 = vector.broadcast %cst_39 : f32 to vector<8x128xf32>
    %154 = arith.addf %153, %152 : vector<8x128xf32>
    %155 = arith.divf %153, %154 : vector<8x128xf32>
    %156 = vector.extract_strided_slice %138 {offsets = [0, 256], sizes = [8, 128], strides = [1, 1]} : vector<8x384xf32> to vector<8x128xf32>
    %157 = vector.extract_strided_slice %139 {offsets = [0, 256], sizes = [8, 128], strides = [1, 1]} : vector<8x384xf32> to vector<8x128xf32>
    %158 = arith.addf %157, %5 : vector<8x128xf32>
    %159 = arith.mulf %147, %158 : vector<8x128xf32>
    %160 = arith.addf %156, %159 : vector<8x128xf32>
    %161 = math.tanh %160 : vector<8x128xf32>
    %cst_40 = arith.constant 1.000000e+00 : f32
    %162 = vector.broadcast %cst_40 : f32 to vector<8x128xf32>
    %163 = arith.subf %162, %155 : vector<8x128xf32>
    %164 = arith.mulf %163, %161 : vector<8x128xf32>
    %165 = arith.mulf %155, %107 : vector<8x128xf32>
    %166 = arith.addf %164, %165 : vector<8x128xf32>
    %cst_41 = arith.constant dense<0.000000e+00> : vector<8x384xf32>
    %167 = tpu.matmul %166, %1, %cst_41 {dimension_numbers = #tpu.dot_dimension_numbers<[1], [0], [0], [1], [0, 0, 1, 1], [], []>} : vector<8x128xf32>, vector<128x384xf32>, vector<8x384xf32> -> vector<8x384xf32>
    %168 = arith.addf %167, %8 : vector<8x384xf32>
    %cst_42 = arith.constant dense<0.000000e+00> : vector<8x384xf32>
    %169 = tpu.matmul %137, %2, %cst_42 {dimension_numbers = #tpu.dot_dimension_numbers<[1], [0], [0], [1], [0, 0, 1, 1], [], []>} : vector<8x128xf32>, vector<128x384xf32>, vector<8x384xf32> -> vector<8x384xf32>
    %170 = vector.extract_strided_slice %168 {offsets = [0, 0], sizes = [8, 128], strides = [1, 1]} : vector<8x384xf32> to vector<8x128xf32>
    %171 = vector.extract_strided_slice %169 {offsets = [0, 0], sizes = [8, 128], strides = [1, 1]} : vector<8x384xf32> to vector<8x128xf32>
    %172 = arith.addf %170, %171 : vector<8x128xf32>
    %173 = arith.negf %172 : vector<8x128xf32>
    %174 = math.exp %173 : vector<8x128xf32>
    %cst_43 = arith.constant 1.000000e+00 : f32
    %175 = vector.broadcast %cst_43 : f32 to vector<8x128xf32>
    %176 = arith.addf %175, %174 : vector<8x128xf32>
    %177 = arith.divf %175, %176 : vector<8x128xf32>
    %178 = vector.extract_strided_slice %168 {offsets = [0, 128], sizes = [8, 128], strides = [1, 1]} : vector<8x384xf32> to vector<8x128xf32>
    %179 = vector.extract_strided_slice %169 {offsets = [0, 128], sizes = [8, 128], strides = [1, 1]} : vector<8x384xf32> to vector<8x128xf32>
    %180 = arith.addf %178, %179 : vector<8x128xf32>
    %181 = arith.negf %180 : vector<8x128xf32>
    %182 = math.exp %181 : vector<8x128xf32>
    %cst_44 = arith.constant 1.000000e+00 : f32
    %183 = vector.broadcast %cst_44 : f32 to vector<8x128xf32>
    %184 = arith.addf %183, %182 : vector<8x128xf32>
    %185 = arith.divf %183, %184 : vector<8x128xf32>
    %186 = vector.extract_strided_slice %168 {offsets = [0, 256], sizes = [8, 128], strides = [1, 1]} : vector<8x384xf32> to vector<8x128xf32>
    %187 = vector.extract_strided_slice %169 {offsets = [0, 256], sizes = [8, 128], strides = [1, 1]} : vector<8x384xf32> to vector<8x128xf32>
    %188 = arith.addf %187, %11 : vector<8x128xf32>
    %189 = arith.mulf %177, %188 : vector<8x128xf32>
    %190 = arith.addf %186, %189 : vector<8x128xf32>
    %191 = math.tanh %190 : vector<8x128xf32>
    %cst_45 = arith.constant 1.000000e+00 : f32
    %192 = vector.broadcast %cst_45 : f32 to vector<8x128xf32>
    %193 = arith.subf %192, %185 : vector<8x128xf32>
    %194 = arith.mulf %193, %191 : vector<8x128xf32>
    %195 = arith.mulf %185, %137 : vector<8x128xf32>
    %196 = arith.addf %194, %195 : vector<8x128xf32>
    %197 = vector.extract_strided_slice %17 {offsets = [24, 0], sizes = [8, 384], strides = [1, 1]} : vector<64x384xf32> to vector<8x384xf32>
    %cst_46 = arith.constant dense<0.000000e+00> : vector<8x384xf32>
    %198 = tpu.matmul %166, %0, %cst_46 {dimension_numbers = #tpu.dot_dimension_numbers<[1], [0], [0], [1], [0, 0, 1, 1], [], []>} : vector<8x128xf32>, vector<128x384xf32>, vector<8x384xf32> -> vector<8x384xf32>
    %199 = vector.extract_strided_slice %197 {offsets = [0, 0], sizes = [8, 128], strides = [1, 1]} : vector<8x384xf32> to vector<8x128xf32>
    %200 = vector.extract_strided_slice %198 {offsets = [0, 0], sizes = [8, 128], strides = [1, 1]} : vector<8x384xf32> to vector<8x128xf32>
    %201 = arith.addf %199, %200 : vector<8x128xf32>
    %202 = arith.negf %201 : vector<8x128xf32>
    %203 = math.exp %202 : vector<8x128xf32>
    %cst_47 = arith.constant 1.000000e+00 : f32
    %204 = vector.broadcast %cst_47 : f32 to vector<8x128xf32>
    %205 = arith.addf %204, %203 : vector<8x128xf32>
    %206 = arith.divf %204, %205 : vector<8x128xf32>
    %207 = vector.extract_strided_slice %197 {offsets = [0, 128], sizes = [8, 128], strides = [1, 1]} : vector<8x384xf32> to vector<8x128xf32>
    %208 = vector.extract_strided_slice %198 {offsets = [0, 128], sizes = [8, 128], strides = [1, 1]} : vector<8x384xf32> to vector<8x128xf32>
    %209 = arith.addf %207, %208 : vector<8x128xf32>
    %210 = arith.negf %209 : vector<8x128xf32>
    %211 = math.exp %210 : vector<8x128xf32>
    %cst_48 = arith.constant 1.000000e+00 : f32
    %212 = vector.broadcast %cst_48 : f32 to vector<8x128xf32>
    %213 = arith.addf %212, %211 : vector<8x128xf32>
    %214 = arith.divf %212, %213 : vector<8x128xf32>
    %215 = vector.extract_strided_slice %197 {offsets = [0, 256], sizes = [8, 128], strides = [1, 1]} : vector<8x384xf32> to vector<8x128xf32>
    %216 = vector.extract_strided_slice %198 {offsets = [0, 256], sizes = [8, 128], strides = [1, 1]} : vector<8x384xf32> to vector<8x128xf32>
    %217 = arith.addf %216, %5 : vector<8x128xf32>
    %218 = arith.mulf %206, %217 : vector<8x128xf32>
    %219 = arith.addf %215, %218 : vector<8x128xf32>
    %220 = math.tanh %219 : vector<8x128xf32>
    %cst_49 = arith.constant 1.000000e+00 : f32
    %221 = vector.broadcast %cst_49 : f32 to vector<8x128xf32>
    %222 = arith.subf %221, %214 : vector<8x128xf32>
    %223 = arith.mulf %222, %220 : vector<8x128xf32>
    %224 = arith.mulf %214, %166 : vector<8x128xf32>
    %225 = arith.addf %223, %224 : vector<8x128xf32>
    %cst_50 = arith.constant dense<0.000000e+00> : vector<8x384xf32>
    %226 = tpu.matmul %225, %1, %cst_50 {dimension_numbers = #tpu.dot_dimension_numbers<[1], [0], [0], [1], [0, 0, 1, 1], [], []>} : vector<8x128xf32>, vector<128x384xf32>, vector<8x384xf32> -> vector<8x384xf32>
    %227 = arith.addf %226, %8 : vector<8x384xf32>
    %cst_51 = arith.constant dense<0.000000e+00> : vector<8x384xf32>
    %228 = tpu.matmul %196, %2, %cst_51 {dimension_numbers = #tpu.dot_dimension_numbers<[1], [0], [0], [1], [0, 0, 1, 1], [], []>} : vector<8x128xf32>, vector<128x384xf32>, vector<8x384xf32> -> vector<8x384xf32>
    %229 = vector.extract_strided_slice %227 {offsets = [0, 0], sizes = [8, 128], strides = [1, 1]} : vector<8x384xf32> to vector<8x128xf32>
    %230 = vector.extract_strided_slice %228 {offsets = [0, 0], sizes = [8, 128], strides = [1, 1]} : vector<8x384xf32> to vector<8x128xf32>
    %231 = arith.addf %229, %230 : vector<8x128xf32>
    %232 = arith.negf %231 : vector<8x128xf32>
    %233 = math.exp %232 : vector<8x128xf32>
    %cst_52 = arith.constant 1.000000e+00 : f32
    %234 = vector.broadcast %cst_52 : f32 to vector<8x128xf32>
    %235 = arith.addf %234, %233 : vector<8x128xf32>
    %236 = arith.divf %234, %235 : vector<8x128xf32>
    %237 = vector.extract_strided_slice %227 {offsets = [0, 128], sizes = [8, 128], strides = [1, 1]} : vector<8x384xf32> to vector<8x128xf32>
    %238 = vector.extract_strided_slice %228 {offsets = [0, 128], sizes = [8, 128], strides = [1, 1]} : vector<8x384xf32> to vector<8x128xf32>
    %239 = arith.addf %237, %238 : vector<8x128xf32>
    %240 = arith.negf %239 : vector<8x128xf32>
    %241 = math.exp %240 : vector<8x128xf32>
    %cst_53 = arith.constant 1.000000e+00 : f32
    %242 = vector.broadcast %cst_53 : f32 to vector<8x128xf32>
    %243 = arith.addf %242, %241 : vector<8x128xf32>
    %244 = arith.divf %242, %243 : vector<8x128xf32>
    %245 = vector.extract_strided_slice %227 {offsets = [0, 256], sizes = [8, 128], strides = [1, 1]} : vector<8x384xf32> to vector<8x128xf32>
    %246 = vector.extract_strided_slice %228 {offsets = [0, 256], sizes = [8, 128], strides = [1, 1]} : vector<8x384xf32> to vector<8x128xf32>
    %247 = arith.addf %246, %11 : vector<8x128xf32>
    %248 = arith.mulf %236, %247 : vector<8x128xf32>
    %249 = arith.addf %245, %248 : vector<8x128xf32>
    %250 = math.tanh %249 : vector<8x128xf32>
    %cst_54 = arith.constant 1.000000e+00 : f32
    %251 = vector.broadcast %cst_54 : f32 to vector<8x128xf32>
    %252 = arith.subf %251, %244 : vector<8x128xf32>
    %253 = arith.mulf %252, %250 : vector<8x128xf32>
    %254 = arith.mulf %244, %196 : vector<8x128xf32>
    %255 = arith.addf %253, %254 : vector<8x128xf32>
    %256 = vector.extract_strided_slice %17 {offsets = [32, 0], sizes = [8, 384], strides = [1, 1]} : vector<64x384xf32> to vector<8x384xf32>
    %cst_55 = arith.constant dense<0.000000e+00> : vector<8x384xf32>
    %257 = tpu.matmul %225, %0, %cst_55 {dimension_numbers = #tpu.dot_dimension_numbers<[1], [0], [0], [1], [0, 0, 1, 1], [], []>} : vector<8x128xf32>, vector<128x384xf32>, vector<8x384xf32> -> vector<8x384xf32>
    %258 = vector.extract_strided_slice %256 {offsets = [0, 0], sizes = [8, 128], strides = [1, 1]} : vector<8x384xf32> to vector<8x128xf32>
    %259 = vector.extract_strided_slice %257 {offsets = [0, 0], sizes = [8, 128], strides = [1, 1]} : vector<8x384xf32> to vector<8x128xf32>
    %260 = arith.addf %258, %259 : vector<8x128xf32>
    %261 = arith.negf %260 : vector<8x128xf32>
    %262 = math.exp %261 : vector<8x128xf32>
    %cst_56 = arith.constant 1.000000e+00 : f32
    %263 = vector.broadcast %cst_56 : f32 to vector<8x128xf32>
    %264 = arith.addf %263, %262 : vector<8x128xf32>
    %265 = arith.divf %263, %264 : vector<8x128xf32>
    %266 = vector.extract_strided_slice %256 {offsets = [0, 128], sizes = [8, 128], strides = [1, 1]} : vector<8x384xf32> to vector<8x128xf32>
    %267 = vector.extract_strided_slice %257 {offsets = [0, 128], sizes = [8, 128], strides = [1, 1]} : vector<8x384xf32> to vector<8x128xf32>
    %268 = arith.addf %266, %267 : vector<8x128xf32>
    %269 = arith.negf %268 : vector<8x128xf32>
    %270 = math.exp %269 : vector<8x128xf32>
    %cst_57 = arith.constant 1.000000e+00 : f32
    %271 = vector.broadcast %cst_57 : f32 to vector<8x128xf32>
    %272 = arith.addf %271, %270 : vector<8x128xf32>
    %273 = arith.divf %271, %272 : vector<8x128xf32>
    %274 = vector.extract_strided_slice %256 {offsets = [0, 256], sizes = [8, 128], strides = [1, 1]} : vector<8x384xf32> to vector<8x128xf32>
    %275 = vector.extract_strided_slice %257 {offsets = [0, 256], sizes = [8, 128], strides = [1, 1]} : vector<8x384xf32> to vector<8x128xf32>
    %276 = arith.addf %275, %5 : vector<8x128xf32>
    %277 = arith.mulf %265, %276 : vector<8x128xf32>
    %278 = arith.addf %274, %277 : vector<8x128xf32>
    %279 = math.tanh %278 : vector<8x128xf32>
    %cst_58 = arith.constant 1.000000e+00 : f32
    %280 = vector.broadcast %cst_58 : f32 to vector<8x128xf32>
    %281 = arith.subf %280, %273 : vector<8x128xf32>
    %282 = arith.mulf %281, %279 : vector<8x128xf32>
    %283 = arith.mulf %273, %225 : vector<8x128xf32>
    %284 = arith.addf %282, %283 : vector<8x128xf32>
    %cst_59 = arith.constant dense<0.000000e+00> : vector<8x384xf32>
    %285 = tpu.matmul %284, %1, %cst_59 {dimension_numbers = #tpu.dot_dimension_numbers<[1], [0], [0], [1], [0, 0, 1, 1], [], []>} : vector<8x128xf32>, vector<128x384xf32>, vector<8x384xf32> -> vector<8x384xf32>
    %286 = arith.addf %285, %8 : vector<8x384xf32>
    %cst_60 = arith.constant dense<0.000000e+00> : vector<8x384xf32>
    %287 = tpu.matmul %255, %2, %cst_60 {dimension_numbers = #tpu.dot_dimension_numbers<[1], [0], [0], [1], [0, 0, 1, 1], [], []>} : vector<8x128xf32>, vector<128x384xf32>, vector<8x384xf32> -> vector<8x384xf32>
    %288 = vector.extract_strided_slice %286 {offsets = [0, 0], sizes = [8, 128], strides = [1, 1]} : vector<8x384xf32> to vector<8x128xf32>
    %289 = vector.extract_strided_slice %287 {offsets = [0, 0], sizes = [8, 128], strides = [1, 1]} : vector<8x384xf32> to vector<8x128xf32>
    %290 = arith.addf %288, %289 : vector<8x128xf32>
    %291 = arith.negf %290 : vector<8x128xf32>
    %292 = math.exp %291 : vector<8x128xf32>
    %cst_61 = arith.constant 1.000000e+00 : f32
    %293 = vector.broadcast %cst_61 : f32 to vector<8x128xf32>
    %294 = arith.addf %293, %292 : vector<8x128xf32>
    %295 = arith.divf %293, %294 : vector<8x128xf32>
    %296 = vector.extract_strided_slice %286 {offsets = [0, 128], sizes = [8, 128], strides = [1, 1]} : vector<8x384xf32> to vector<8x128xf32>
    %297 = vector.extract_strided_slice %287 {offsets = [0, 128], sizes = [8, 128], strides = [1, 1]} : vector<8x384xf32> to vector<8x128xf32>
    %298 = arith.addf %296, %297 : vector<8x128xf32>
    %299 = arith.negf %298 : vector<8x128xf32>
    %300 = math.exp %299 : vector<8x128xf32>
    %cst_62 = arith.constant 1.000000e+00 : f32
    %301 = vector.broadcast %cst_62 : f32 to vector<8x128xf32>
    %302 = arith.addf %301, %300 : vector<8x128xf32>
    %303 = arith.divf %301, %302 : vector<8x128xf32>
    %304 = vector.extract_strided_slice %286 {offsets = [0, 256], sizes = [8, 128], strides = [1, 1]} : vector<8x384xf32> to vector<8x128xf32>
    %305 = vector.extract_strided_slice %287 {offsets = [0, 256], sizes = [8, 128], strides = [1, 1]} : vector<8x384xf32> to vector<8x128xf32>
    %306 = arith.addf %305, %11 : vector<8x128xf32>
    %307 = arith.mulf %295, %306 : vector<8x128xf32>
    %308 = arith.addf %304, %307 : vector<8x128xf32>
    %309 = math.tanh %308 : vector<8x128xf32>
    %cst_63 = arith.constant 1.000000e+00 : f32
    %310 = vector.broadcast %cst_63 : f32 to vector<8x128xf32>
    %311 = arith.subf %310, %303 : vector<8x128xf32>
    %312 = arith.mulf %311, %309 : vector<8x128xf32>
    %313 = arith.mulf %303, %255 : vector<8x128xf32>
    %314 = arith.addf %312, %313 : vector<8x128xf32>
    %315 = vector.extract_strided_slice %17 {offsets = [40, 0], sizes = [8, 384], strides = [1, 1]} : vector<64x384xf32> to vector<8x384xf32>
    %cst_64 = arith.constant dense<0.000000e+00> : vector<8x384xf32>
    %316 = tpu.matmul %284, %0, %cst_64 {dimension_numbers = #tpu.dot_dimension_numbers<[1], [0], [0], [1], [0, 0, 1, 1], [], []>} : vector<8x128xf32>, vector<128x384xf32>, vector<8x384xf32> -> vector<8x384xf32>
    %317 = vector.extract_strided_slice %315 {offsets = [0, 0], sizes = [8, 128], strides = [1, 1]} : vector<8x384xf32> to vector<8x128xf32>
    %318 = vector.extract_strided_slice %316 {offsets = [0, 0], sizes = [8, 128], strides = [1, 1]} : vector<8x384xf32> to vector<8x128xf32>
    %319 = arith.addf %317, %318 : vector<8x128xf32>
    %320 = arith.negf %319 : vector<8x128xf32>
    %321 = math.exp %320 : vector<8x128xf32>
    %cst_65 = arith.constant 1.000000e+00 : f32
    %322 = vector.broadcast %cst_65 : f32 to vector<8x128xf32>
    %323 = arith.addf %322, %321 : vector<8x128xf32>
    %324 = arith.divf %322, %323 : vector<8x128xf32>
    %325 = vector.extract_strided_slice %315 {offsets = [0, 128], sizes = [8, 128], strides = [1, 1]} : vector<8x384xf32> to vector<8x128xf32>
    %326 = vector.extract_strided_slice %316 {offsets = [0, 128], sizes = [8, 128], strides = [1, 1]} : vector<8x384xf32> to vector<8x128xf32>
    %327 = arith.addf %325, %326 : vector<8x128xf32>
    %328 = arith.negf %327 : vector<8x128xf32>
    %329 = math.exp %328 : vector<8x128xf32>
    %cst_66 = arith.constant 1.000000e+00 : f32
    %330 = vector.broadcast %cst_66 : f32 to vector<8x128xf32>
    %331 = arith.addf %330, %329 : vector<8x128xf32>
    %332 = arith.divf %330, %331 : vector<8x128xf32>
    %333 = vector.extract_strided_slice %315 {offsets = [0, 256], sizes = [8, 128], strides = [1, 1]} : vector<8x384xf32> to vector<8x128xf32>
    %334 = vector.extract_strided_slice %316 {offsets = [0, 256], sizes = [8, 128], strides = [1, 1]} : vector<8x384xf32> to vector<8x128xf32>
    %335 = arith.addf %334, %5 : vector<8x128xf32>
    %336 = arith.mulf %324, %335 : vector<8x128xf32>
    %337 = arith.addf %333, %336 : vector<8x128xf32>
    %338 = math.tanh %337 : vector<8x128xf32>
    %cst_67 = arith.constant 1.000000e+00 : f32
    %339 = vector.broadcast %cst_67 : f32 to vector<8x128xf32>
    %340 = arith.subf %339, %332 : vector<8x128xf32>
    %341 = arith.mulf %340, %338 : vector<8x128xf32>
    %342 = arith.mulf %332, %284 : vector<8x128xf32>
    %343 = arith.addf %341, %342 : vector<8x128xf32>
    %cst_68 = arith.constant dense<0.000000e+00> : vector<8x384xf32>
    %344 = tpu.matmul %343, %1, %cst_68 {dimension_numbers = #tpu.dot_dimension_numbers<[1], [0], [0], [1], [0, 0, 1, 1], [], []>} : vector<8x128xf32>, vector<128x384xf32>, vector<8x384xf32> -> vector<8x384xf32>
    %345 = arith.addf %344, %8 : vector<8x384xf32>
    %cst_69 = arith.constant dense<0.000000e+00> : vector<8x384xf32>
    %346 = tpu.matmul %314, %2, %cst_69 {dimension_numbers = #tpu.dot_dimension_numbers<[1], [0], [0], [1], [0, 0, 1, 1], [], []>} : vector<8x128xf32>, vector<128x384xf32>, vector<8x384xf32> -> vector<8x384xf32>
    %347 = vector.extract_strided_slice %345 {offsets = [0, 0], sizes = [8, 128], strides = [1, 1]} : vector<8x384xf32> to vector<8x128xf32>
    %348 = vector.extract_strided_slice %346 {offsets = [0, 0], sizes = [8, 128], strides = [1, 1]} : vector<8x384xf32> to vector<8x128xf32>
    %349 = arith.addf %347, %348 : vector<8x128xf32>
    %350 = arith.negf %349 : vector<8x128xf32>
    %351 = math.exp %350 : vector<8x128xf32>
    %cst_70 = arith.constant 1.000000e+00 : f32
    %352 = vector.broadcast %cst_70 : f32 to vector<8x128xf32>
    %353 = arith.addf %352, %351 : vector<8x128xf32>
    %354 = arith.divf %352, %353 : vector<8x128xf32>
    %355 = vector.extract_strided_slice %345 {offsets = [0, 128], sizes = [8, 128], strides = [1, 1]} : vector<8x384xf32> to vector<8x128xf32>
    %356 = vector.extract_strided_slice %346 {offsets = [0, 128], sizes = [8, 128], strides = [1, 1]} : vector<8x384xf32> to vector<8x128xf32>
    %357 = arith.addf %355, %356 : vector<8x128xf32>
    %358 = arith.negf %357 : vector<8x128xf32>
    %359 = math.exp %358 : vector<8x128xf32>
    %cst_71 = arith.constant 1.000000e+00 : f32
    %360 = vector.broadcast %cst_71 : f32 to vector<8x128xf32>
    %361 = arith.addf %360, %359 : vector<8x128xf32>
    %362 = arith.divf %360, %361 : vector<8x128xf32>
    %363 = vector.extract_strided_slice %345 {offsets = [0, 256], sizes = [8, 128], strides = [1, 1]} : vector<8x384xf32> to vector<8x128xf32>
    %364 = vector.extract_strided_slice %346 {offsets = [0, 256], sizes = [8, 128], strides = [1, 1]} : vector<8x384xf32> to vector<8x128xf32>
    %365 = arith.addf %364, %11 : vector<8x128xf32>
    %366 = arith.mulf %354, %365 : vector<8x128xf32>
    %367 = arith.addf %363, %366 : vector<8x128xf32>
    %368 = math.tanh %367 : vector<8x128xf32>
    %cst_72 = arith.constant 1.000000e+00 : f32
    %369 = vector.broadcast %cst_72 : f32 to vector<8x128xf32>
    %370 = arith.subf %369, %362 : vector<8x128xf32>
    %371 = arith.mulf %370, %368 : vector<8x128xf32>
    %372 = arith.mulf %362, %314 : vector<8x128xf32>
    %373 = arith.addf %371, %372 : vector<8x128xf32>
    %374 = vector.extract_strided_slice %17 {offsets = [48, 0], sizes = [8, 384], strides = [1, 1]} : vector<64x384xf32> to vector<8x384xf32>
    %cst_73 = arith.constant dense<0.000000e+00> : vector<8x384xf32>
    %375 = tpu.matmul %343, %0, %cst_73 {dimension_numbers = #tpu.dot_dimension_numbers<[1], [0], [0], [1], [0, 0, 1, 1], [], []>} : vector<8x128xf32>, vector<128x384xf32>, vector<8x384xf32> -> vector<8x384xf32>
    %376 = vector.extract_strided_slice %374 {offsets = [0, 0], sizes = [8, 128], strides = [1, 1]} : vector<8x384xf32> to vector<8x128xf32>
    %377 = vector.extract_strided_slice %375 {offsets = [0, 0], sizes = [8, 128], strides = [1, 1]} : vector<8x384xf32> to vector<8x128xf32>
    %378 = arith.addf %376, %377 : vector<8x128xf32>
    %379 = arith.negf %378 : vector<8x128xf32>
    %380 = math.exp %379 : vector<8x128xf32>
    %cst_74 = arith.constant 1.000000e+00 : f32
    %381 = vector.broadcast %cst_74 : f32 to vector<8x128xf32>
    %382 = arith.addf %381, %380 : vector<8x128xf32>
    %383 = arith.divf %381, %382 : vector<8x128xf32>
    %384 = vector.extract_strided_slice %374 {offsets = [0, 128], sizes = [8, 128], strides = [1, 1]} : vector<8x384xf32> to vector<8x128xf32>
    %385 = vector.extract_strided_slice %375 {offsets = [0, 128], sizes = [8, 128], strides = [1, 1]} : vector<8x384xf32> to vector<8x128xf32>
    %386 = arith.addf %384, %385 : vector<8x128xf32>
    %387 = arith.negf %386 : vector<8x128xf32>
    %388 = math.exp %387 : vector<8x128xf32>
    %cst_75 = arith.constant 1.000000e+00 : f32
    %389 = vector.broadcast %cst_75 : f32 to vector<8x128xf32>
    %390 = arith.addf %389, %388 : vector<8x128xf32>
    %391 = arith.divf %389, %390 : vector<8x128xf32>
    %392 = vector.extract_strided_slice %374 {offsets = [0, 256], sizes = [8, 128], strides = [1, 1]} : vector<8x384xf32> to vector<8x128xf32>
    %393 = vector.extract_strided_slice %375 {offsets = [0, 256], sizes = [8, 128], strides = [1, 1]} : vector<8x384xf32> to vector<8x128xf32>
    %394 = arith.addf %393, %5 : vector<8x128xf32>
    %395 = arith.mulf %383, %394 : vector<8x128xf32>
    %396 = arith.addf %392, %395 : vector<8x128xf32>
    %397 = math.tanh %396 : vector<8x128xf32>
    %cst_76 = arith.constant 1.000000e+00 : f32
    %398 = vector.broadcast %cst_76 : f32 to vector<8x128xf32>
    %399 = arith.subf %398, %391 : vector<8x128xf32>
    %400 = arith.mulf %399, %397 : vector<8x128xf32>
    %401 = arith.mulf %391, %343 : vector<8x128xf32>
    %402 = arith.addf %400, %401 : vector<8x128xf32>
    %cst_77 = arith.constant dense<0.000000e+00> : vector<8x384xf32>
    %403 = tpu.matmul %402, %1, %cst_77 {dimension_numbers = #tpu.dot_dimension_numbers<[1], [0], [0], [1], [0, 0, 1, 1], [], []>} : vector<8x128xf32>, vector<128x384xf32>, vector<8x384xf32> -> vector<8x384xf32>
    %404 = arith.addf %403, %8 : vector<8x384xf32>
    %cst_78 = arith.constant dense<0.000000e+00> : vector<8x384xf32>
    %405 = tpu.matmul %373, %2, %cst_78 {dimension_numbers = #tpu.dot_dimension_numbers<[1], [0], [0], [1], [0, 0, 1, 1], [], []>} : vector<8x128xf32>, vector<128x384xf32>, vector<8x384xf32> -> vector<8x384xf32>
    %406 = vector.extract_strided_slice %404 {offsets = [0, 0], sizes = [8, 128], strides = [1, 1]} : vector<8x384xf32> to vector<8x128xf32>
    %407 = vector.extract_strided_slice %405 {offsets = [0, 0], sizes = [8, 128], strides = [1, 1]} : vector<8x384xf32> to vector<8x128xf32>
    %408 = arith.addf %406, %407 : vector<8x128xf32>
    %409 = arith.negf %408 : vector<8x128xf32>
    %410 = math.exp %409 : vector<8x128xf32>
    %cst_79 = arith.constant 1.000000e+00 : f32
    %411 = vector.broadcast %cst_79 : f32 to vector<8x128xf32>
    %412 = arith.addf %411, %410 : vector<8x128xf32>
    %413 = arith.divf %411, %412 : vector<8x128xf32>
    %414 = vector.extract_strided_slice %404 {offsets = [0, 128], sizes = [8, 128], strides = [1, 1]} : vector<8x384xf32> to vector<8x128xf32>
    %415 = vector.extract_strided_slice %405 {offsets = [0, 128], sizes = [8, 128], strides = [1, 1]} : vector<8x384xf32> to vector<8x128xf32>
    %416 = arith.addf %414, %415 : vector<8x128xf32>
    %417 = arith.negf %416 : vector<8x128xf32>
    %418 = math.exp %417 : vector<8x128xf32>
    %cst_80 = arith.constant 1.000000e+00 : f32
    %419 = vector.broadcast %cst_80 : f32 to vector<8x128xf32>
    %420 = arith.addf %419, %418 : vector<8x128xf32>
    %421 = arith.divf %419, %420 : vector<8x128xf32>
    %422 = vector.extract_strided_slice %404 {offsets = [0, 256], sizes = [8, 128], strides = [1, 1]} : vector<8x384xf32> to vector<8x128xf32>
    %423 = vector.extract_strided_slice %405 {offsets = [0, 256], sizes = [8, 128], strides = [1, 1]} : vector<8x384xf32> to vector<8x128xf32>
    %424 = arith.addf %423, %11 : vector<8x128xf32>
    %425 = arith.mulf %413, %424 : vector<8x128xf32>
    %426 = arith.addf %422, %425 : vector<8x128xf32>
    %427 = math.tanh %426 : vector<8x128xf32>
    %cst_81 = arith.constant 1.000000e+00 : f32
    %428 = vector.broadcast %cst_81 : f32 to vector<8x128xf32>
    %429 = arith.subf %428, %421 : vector<8x128xf32>
    %430 = arith.mulf %429, %427 : vector<8x128xf32>
    %431 = arith.mulf %421, %373 : vector<8x128xf32>
    %432 = arith.addf %430, %431 : vector<8x128xf32>
    %433 = vector.extract_strided_slice %17 {offsets = [56, 0], sizes = [8, 384], strides = [1, 1]} : vector<64x384xf32> to vector<8x384xf32>
    %cst_82 = arith.constant dense<0.000000e+00> : vector<8x384xf32>
    %434 = tpu.matmul %402, %0, %cst_82 {dimension_numbers = #tpu.dot_dimension_numbers<[1], [0], [0], [1], [0, 0, 1, 1], [], []>} : vector<8x128xf32>, vector<128x384xf32>, vector<8x384xf32> -> vector<8x384xf32>
    %435 = vector.extract_strided_slice %433 {offsets = [0, 0], sizes = [8, 128], strides = [1, 1]} : vector<8x384xf32> to vector<8x128xf32>
    %436 = vector.extract_strided_slice %434 {offsets = [0, 0], sizes = [8, 128], strides = [1, 1]} : vector<8x384xf32> to vector<8x128xf32>
    %437 = arith.addf %435, %436 : vector<8x128xf32>
    %438 = arith.negf %437 : vector<8x128xf32>
    %439 = math.exp %438 : vector<8x128xf32>
    %cst_83 = arith.constant 1.000000e+00 : f32
    %440 = vector.broadcast %cst_83 : f32 to vector<8x128xf32>
    %441 = arith.addf %440, %439 : vector<8x128xf32>
    %442 = arith.divf %440, %441 : vector<8x128xf32>
    %443 = vector.extract_strided_slice %433 {offsets = [0, 128], sizes = [8, 128], strides = [1, 1]} : vector<8x384xf32> to vector<8x128xf32>
    %444 = vector.extract_strided_slice %434 {offsets = [0, 128], sizes = [8, 128], strides = [1, 1]} : vector<8x384xf32> to vector<8x128xf32>
    %445 = arith.addf %443, %444 : vector<8x128xf32>
    %446 = arith.negf %445 : vector<8x128xf32>
    %447 = math.exp %446 : vector<8x128xf32>
    %cst_84 = arith.constant 1.000000e+00 : f32
    %448 = vector.broadcast %cst_84 : f32 to vector<8x128xf32>
    %449 = arith.addf %448, %447 : vector<8x128xf32>
    %450 = arith.divf %448, %449 : vector<8x128xf32>
    %451 = vector.extract_strided_slice %433 {offsets = [0, 256], sizes = [8, 128], strides = [1, 1]} : vector<8x384xf32> to vector<8x128xf32>
    %452 = vector.extract_strided_slice %434 {offsets = [0, 256], sizes = [8, 128], strides = [1, 1]} : vector<8x384xf32> to vector<8x128xf32>
    %453 = arith.addf %452, %5 : vector<8x128xf32>
    %454 = arith.mulf %442, %453 : vector<8x128xf32>
    %455 = arith.addf %451, %454 : vector<8x128xf32>
    %456 = math.tanh %455 : vector<8x128xf32>
    %cst_85 = arith.constant 1.000000e+00 : f32
    %457 = vector.broadcast %cst_85 : f32 to vector<8x128xf32>
    %458 = arith.subf %457, %450 : vector<8x128xf32>
    %459 = arith.mulf %458, %456 : vector<8x128xf32>
    %460 = arith.mulf %450, %402 : vector<8x128xf32>
    %461 = arith.addf %459, %460 : vector<8x128xf32>
    %cst_86 = arith.constant dense<0.000000e+00> : vector<8x384xf32>
    %462 = tpu.matmul %461, %1, %cst_86 {dimension_numbers = #tpu.dot_dimension_numbers<[1], [0], [0], [1], [0, 0, 1, 1], [], []>} : vector<8x128xf32>, vector<128x384xf32>, vector<8x384xf32> -> vector<8x384xf32>
    %463 = arith.addf %462, %8 : vector<8x384xf32>
    %cst_87 = arith.constant dense<0.000000e+00> : vector<8x384xf32>
    %464 = tpu.matmul %432, %2, %cst_87 {dimension_numbers = #tpu.dot_dimension_numbers<[1], [0], [0], [1], [0, 0, 1, 1], [], []>} : vector<8x128xf32>, vector<128x384xf32>, vector<8x384xf32> -> vector<8x384xf32>
    %465 = vector.extract_strided_slice %463 {offsets = [0, 0], sizes = [8, 128], strides = [1, 1]} : vector<8x384xf32> to vector<8x128xf32>
    %466 = vector.extract_strided_slice %464 {offsets = [0, 0], sizes = [8, 128], strides = [1, 1]} : vector<8x384xf32> to vector<8x128xf32>
    %467 = arith.addf %465, %466 : vector<8x128xf32>
    %468 = arith.negf %467 : vector<8x128xf32>
    %469 = math.exp %468 : vector<8x128xf32>
    %cst_88 = arith.constant 1.000000e+00 : f32
    %470 = vector.broadcast %cst_88 : f32 to vector<8x128xf32>
    %471 = arith.addf %470, %469 : vector<8x128xf32>
    %472 = arith.divf %470, %471 : vector<8x128xf32>
    %473 = vector.extract_strided_slice %463 {offsets = [0, 128], sizes = [8, 128], strides = [1, 1]} : vector<8x384xf32> to vector<8x128xf32>
    %474 = vector.extract_strided_slice %464 {offsets = [0, 128], sizes = [8, 128], strides = [1, 1]} : vector<8x384xf32> to vector<8x128xf32>
    %475 = arith.addf %473, %474 : vector<8x128xf32>
    %476 = arith.negf %475 : vector<8x128xf32>
    %477 = math.exp %476 : vector<8x128xf32>
    %cst_89 = arith.constant 1.000000e+00 : f32
    %478 = vector.broadcast %cst_89 : f32 to vector<8x128xf32>
    %479 = arith.addf %478, %477 : vector<8x128xf32>
    %480 = arith.divf %478, %479 : vector<8x128xf32>
    %481 = vector.extract_strided_slice %463 {offsets = [0, 256], sizes = [8, 128], strides = [1, 1]} : vector<8x384xf32> to vector<8x128xf32>
    %482 = vector.extract_strided_slice %464 {offsets = [0, 256], sizes = [8, 128], strides = [1, 1]} : vector<8x384xf32> to vector<8x128xf32>
    %483 = arith.addf %482, %11 : vector<8x128xf32>
    %484 = arith.mulf %472, %483 : vector<8x128xf32>
    %485 = arith.addf %481, %484 : vector<8x128xf32>
    %486 = math.tanh %485 : vector<8x128xf32>
    %cst_90 = arith.constant 1.000000e+00 : f32
    %487 = vector.broadcast %cst_90 : f32 to vector<8x128xf32>
    %488 = arith.subf %487, %480 : vector<8x128xf32>
    %489 = arith.mulf %488, %486 : vector<8x128xf32>
    %490 = arith.mulf %480, %432 : vector<8x128xf32>
    %491 = arith.addf %489, %490 : vector<8x128xf32>
    %c0_91 = arith.constant 0 : index
    %c0_92 = arith.constant 0 : index
    %492 = vector.load %arg13[%c0_91, %c0_92] : memref<8x8xf32, #tpu.memory_space<vmem>>, vector<8x8xf32>
    %cst_93 = arith.constant dense<0.000000e+00> : vector<8x128xf32>
    %493 = tpu.matmul %492, %461, %cst_93 {dimension_numbers = #tpu.dot_dimension_numbers<[1], [0], [0], [1], [0, 0, 1, 1], [], []>} : vector<8x8xf32>, vector<8x128xf32>, vector<8x128xf32> -> vector<8x128xf32>
    %c0_94 = arith.constant 0 : index
    %c0_95 = arith.constant 0 : index
    %494 = vector.load %arg14[%c0_94, %c0_95] : memref<8x8xf32, #tpu.memory_space<vmem>>, vector<8x8xf32>
    %cst_96 = arith.constant dense<0.000000e+00> : vector<8x128xf32>
    %495 = tpu.matmul %494, %491, %cst_96 {dimension_numbers = #tpu.dot_dimension_numbers<[1], [0], [0], [1], [0, 0, 1, 1], [], []>} : vector<8x8xf32>, vector<8x128xf32>, vector<8x128xf32> -> vector<8x128xf32>
    %496 = arith.addf %493, %495 : vector<8x128xf32>
    %c0_97 = arith.constant 0 : index
    %c0_98 = arith.constant 0 : index
    %497 = vector.load %arg15[%c0_97, %c0_98] : memref<8x128xf32, #tpu.memory_space<vmem>>, vector<8x128xf32>
    tpu.vector_store %arg15[%c0_97, %c0_98], %496 {strides = array<i32>} : memref<8x128xf32, #tpu.memory_space<vmem>>, vector<8x128xf32>,
    %c0_99 = arith.constant 0 : index
    %c0_100 = arith.constant 0 : index
    %498 = vector.load %arg9[%c0_99, %c0_100] : memref<128x128xf32, #tpu.memory_space<vmem>>, vector<128x128xf32>
    %cst_101 = arith.constant dense<0.000000e+00> : vector<8x128xf32>
    %499 = tpu.matmul %496, %498, %cst_101 {dimension_numbers = #tpu.dot_dimension_numbers<[1], [0], [0], [1], [0, 0, 1, 1], [], []>} : vector<8x128xf32>, vector<128x128xf32>, vector<8x128xf32> -> vector<8x128xf32>
    %c0_102 = arith.constant 0 : index
    %c0_103 = arith.constant 0 : index
    %500 = vector.load %arg10[%c0_102, %c0_103] : memref<1x128xf32, #tpu.memory_space<vmem>>, vector<1x128xf32>
    %501 = vector.broadcast %500 : vector<1x128xf32> to vector<8x128xf32>
    %502 = arith.addf %499, %501 : vector<8x128xf32>
    %cst_104 = arith.constant 0.000000e+00 : f32
    %503 = vector.broadcast %cst_104 : f32 to vector<8x128xf32>
    %504 = arith.maximumf %502, %503 : vector<8x128xf32>
    %c0_105 = arith.constant 0 : index
    %c0_106 = arith.constant 0 : index
    %505 = vector.load %arg11[%c0_105, %c0_106] : memref<128x128xf32, #tpu.memory_space<vmem>>, vector<128x128xf32>
    %cst_107 = arith.constant dense<0.000000e+00> : vector<8x128xf32>
    %506 = tpu.matmul %504, %505, %cst_107 {dimension_numbers = #tpu.dot_dimension_numbers<[1], [0], [0], [1], [0, 0, 1, 1], [], []>} : vector<8x128xf32>, vector<128x128xf32>, vector<8x128xf32> -> vector<8x128xf32>
    %c0_108 = arith.constant 0 : index
    %c0_109 = arith.constant 0 : index
    %507 = vector.load %arg12[%c0_108, %c0_109] : memref<1x128xf32, #tpu.memory_space<vmem>>, vector<1x128xf32>
    %508 = vector.broadcast %507 : vector<1x128xf32> to vector<8x128xf32>
    %509 = arith.addf %506, %508 : vector<8x128xf32>
    %510 = math.tanh %509 : vector<8x128xf32>
    %c0_110 = arith.constant 0 : index
    %c0_111 = arith.constant 0 : index
    %511 = vector.load %arg16[%c0_110, %c0_111] : memref<8x128xf32, #tpu.memory_space<vmem>>, vector<8x128xf32>
    tpu.vector_store %arg16[%c0_110, %c0_111], %510 {strides = array<i32>} : memref<8x128xf32, #tpu.memory_space<vmem>>, vector<8x128xf32>,
    return
  }
}

</mosaic_0001>

<llo_original>
// kernel: arnet_forward.1
$region0: #{arnet_forward.1}
  #allocation0 [shape = 'u32[]', space=smem, size = 0x4, offset = 0x4, fixed_abs, tag = 'smem constant byte address 0x4 - core index']
  #allocation1 [shape = 'u32[144,128]{1,0:T(1,128)}', space=vmem, size = 0x12000, scoped, tag = 'internal scratch']
  %s0 = inlined_call_operand.vmem [shape: f32[64,16], index: 0, kind: input, shape index: {}]
  %s1 = inlined_call_operand.hbm [shape: f32[16,384], index: 1, kind: input, shape index: {}]
  %s2 = inlined_call_operand.hbm [shape: f32[128,384], index: 2, kind: input, shape index: {}]
  %s3 = inlined_call_operand.hbm [shape: f32[1,384], index: 3, kind: input, shape index: {}]
  %s4 = inlined_call_operand.hbm [shape: f32[1,128], index: 4, kind: input, shape index: {}]
  %s5 = inlined_call_operand.hbm [shape: f32[128,384], index: 5, kind: input, shape index: {}]
  %s6 = inlined_call_operand.hbm [shape: f32[128,384], index: 6, kind: input, shape index: {}]
  %s7 = inlined_call_operand.hbm [shape: f32[1,384], index: 7, kind: input, shape index: {}]
  %s8 = inlined_call_operand.hbm [shape: f32[1,128], index: 8, kind: input, shape index: {}]
  %s9 = inlined_call_operand.hbm [shape: f32[128,128], index: 9, kind: input, shape index: {}]
  %s10 = inlined_call_operand.hbm [shape: f32[1,128], index: 10, kind: input, shape index: {}]
  %s11 = inlined_call_operand.vmem [shape: f32[128,128], index: 11, kind: input, shape index: {}]
  %s12 = inlined_call_operand.hbm [shape: f32[1,128], index: 12, kind: input, shape index: {}]
  %s13 = inlined_call_operand.hbm [shape: f32[8,8], index: 13, kind: input, shape index: {}]
  %s14 = inlined_call_operand.vmem [shape: f32[8,8], index: 14, kind: input, shape index: {}]
  %s15 = inlined_call_operand.vmem [shape: f32[8,128], index: 15, kind: output, shape index: {0}]
  %s16 = inlined_call_operand.vmem [shape: f32[8,128], index: 16, kind: output, shape index: {1}]
  %17 = xla_tuple %s15, %s16
  %s18 = sld [smem:[#allocation0]]
  $region126: #{arnet_forward.1} parent=0
    _
  %s20 = ssub.s32 1, %s18
  %s21 = scalar_select 0, %s20, %s18
  $region1: #{arnet_forward.1} parent=0
    #allocation2 [shape = 'u8[24576]{0}', space=vmem, size = 0x6000, scoped, tag = 'input window, operand 1, single buffered']
    #allocation3 [shape = 's32[1]{0}', space=sflag, size = 0x4, scoped, tag = 'scoped memory for arnet_forward.1']
    #allocation4 [shape = 'u8[196608]{0}', space=vmem, size = 0x30000, scoped, tag = 'input window, operand 2, single buffered']
    #allocation5 [shape = 's32[1]{0}', space=sflag, size = 0x4, scoped, tag = 'scoped memory for arnet_forward.1']
    #allocation6 [shape = 'u8[1536]{0}', space=vmem, size = 0x800, scoped, tag = 'input window, operand 3, single buffered']
    #allocation7 [shape = 'u8[512]{0}', space=vmem, size = 0x400, scoped, tag = 'input window, operand 4, single buffered']
    #allocation8 [shape = 's32[1]{0}', space=sflag, size = 0x4, scoped, tag = 'scoped memory for arnet_forward.1']
    #allocation9 [shape = 'u8[196608]{0}', space=vmem, size = 0x30000, scoped, tag = 'input window, operand 5, single buffered']
    #allocation10 [shape = 'u8[196608]{0}', space=vmem, size = 0x30000, scoped, tag = 'input window, operand 6, single buffered']
    #allocation11 [shape = 's32[1]{0}', space=sflag, size = 0x4, scoped, tag = 'scoped memory for arnet_forward.1']
    #allocation12 [shape = 'u8[1536]{0}', space=vmem, size = 0x800, scoped, tag = 'input window, operand 7, single buffered']
    #allocation13 [shape = 'u8[512]{0}', space=vmem, size = 0x400, scoped, tag = 'input window, operand 8, single buffered']
    #allocation14 [shape = 's32[1]{0}', space=sflag, size = 0x4, scoped, tag = 'scoped memory for arnet_forward.1']
    #allocation15 [shape = 'u8[65536]{0}', space=vmem, size = 0x10000, scoped, tag = 'input window, operand 9, single buffered']
    #allocation16 [shape = 'u8[512]{0}', space=vmem, size = 0x400, scoped, tag = 'input window, operand 10, single buffered']
    #allocation17 [shape = 's32[1]{0}', space=sflag, size = 0x4, scoped, tag = 'scoped memory for arnet_forward.1']
    #allocation18 [shape = 'u8[512]{0}', space=vmem, size = 0x400, scoped, tag = 'input window, operand 12, single buffered']
    #allocation19 [shape = 'u8[4096]{0}', space=vmem, size = 0x1000, scoped, tag = 'input window, operand 13, single buffered']
    #allocation20 [shape = 's32[1]{0}', space=sflag, size = 0x4, scoped, tag = 'scoped memory for arnet_forward.1']
    %22 = vsyncpa [#allocation3], 0
    %23 = vsyncpa [#allocation5], 0
    %24 = vsyncpa [#allocation8], 0
    %25 = vsyncpa [#allocation11], 0
    %26 = vsyncpa [#allocation14], 0
    %27 = vsyncpa [#allocation17], 0
    %28 = vsyncpa [#allocation20], 0
    // Predicated region
    $region2: #{arnet_forward.1} parent=1 // pred_check
      _
    $region3: #{arnet_forward.1} parent=1 // pred_check_branch
      %30 = sbr.rel (0) target = $region5
    $region4: #{arnet_forward.1} parent=1 // pred_region
      _
    $region5: #{arnet_forward.1} parent=1 // pred_fallthru
      _
    // Predicated region
    $region6: #{arnet_forward.1} parent=1 // pred_check
      _
    $region7: #{arnet_forward.1} parent=1 // pred_check_branch
      %32 = sbr.rel (0) target = $region9
    $region8: #{arnet_forward.1} parent=1 // pred_region
      %s34 = ssub.s32 768, 768
      %35 = vsyncadd [#allocation3], %s34
      %s36 = sshll.u32 [#allocation2], 4
      %s37 = int_to_ptr.vmem [resolvable:$true] %s36
      %42 = dma.hbm_to_vmem [thread:$0]  %s1, 768, %s37, [#allocation3], 384, 384, 24
    $region9: #{arnet_forward.1} parent=1 // pred_fallthru
      _
    // Predicated region
    $region10: #{arnet_forward.1} parent=1 // pred_check
      _
    $region11: #{arnet_forward.1} parent=1 // pred_check_branch
      %44 = sbr.rel (0) target = $region13
    $region12: #{arnet_forward.1} parent=1 // pred_region
      %s46 = ssub.s32 6144, 6144
      %47 = vsyncadd [#allocation5], %s46
      %s48 = sshll.u32 [#allocation4], 4
      %s49 = int_to_ptr.vmem [resolvable:$true] %s48
      %54 = dma.hbm_to_vmem [thread:$0]  %s2, 6144, %s49, [#allocation5], 384, 384, 24
    $region13: #{arnet_forward.1} parent=1 // pred_fallthru
      _
    // Predicated region
    $region14: #{arnet_forward.1} parent=1 // pred_check
      _
    $region15: #{arnet_forward.1} parent=1 // pred_check_branch
      %56 = sbr.rel (0) target = $region17
    $region16: #{arnet_forward.1} parent=1 // pred_region
      %s58 = ssub.s32 48, 48
      %59 = vsyncadd [#allocation5], %s58
      %s61 = sshll.u32 [#allocation6], 4
      %s62 = int_to_ptr.vmem [resolvable:$true] %s61
      %64 = dma.hbm_to_vmem [thread:$0]  %s3, 48, %s62, [#allocation5]
    $region17: #{arnet_forward.1} parent=1 // pred_fallthru
      _
    // Predicated region
    $region18: #{arnet_forward.1} parent=1 // pred_check
      _
    $region19: #{arnet_forward.1} parent=1 // pred_check_branch
      %66 = sbr.rel (0) target = $region21
    $region20: #{arnet_forward.1} parent=1 // pred_region
      %s68 = ssub.s32 16, 16
      %69 = vsyncadd [#allocation8], %s68
      %s71 = sshll.u32 [#allocation7], 4
      %s72 = int_to_ptr.vmem [resolvable:$true] %s71
      %74 = dma.hbm_to_vmem [thread:$0]  %s4, 16, %s72, [#allocation8]
    $region21: #{arnet_forward.1} parent=1 // pred_fallthru
      _
    // Predicated region
    $region22: #{arnet_forward.1} parent=1 // pred_check
      _
    $region23: #{arnet_forward.1} parent=1 // pred_check_branch
      %76 = sbr.rel (0) target = $region25
    $region24: #{arnet_forward.1} parent=1 // pred_region
      %s78 = ssub.s32 6144, 6144
      %79 = vsyncadd [#allocation8], %s78
      %s80 = sshll.u32 [#allocation9], 4
      %s81 = int_to_ptr.vmem [resolvable:$true] %s80
      %86 = dma.hbm_to_vmem [thread:$0]  %s5, 6144, %s81, [#allocation8], 384, 384, 24
    $region25: #{arnet_forward.1} parent=1 // pred_fallthru
      _
    // Predicated region
    $region26: #{arnet_forward.1} parent=1 // pred_check
      _
    $region27: #{arnet_forward.1} parent=1 // pred_check_branch
      %88 = sbr.rel (0) target = $region29
    $region28: #{arnet_forward.1} parent=1 // pred_region
      %s90 = ssub.s32 6144, 6144
      %91 = vsyncadd [#allocation11], %s90
      %s92 = sshll.u32 [#allocation10], 4
      %s93 = int_to_ptr.vmem [resolvable:$true] %s92
      %98 = dma.hbm_to_vmem [thread:$0]  %s6, 6144, %s93, [#allocation11], 384, 384, 24
    $region29: #{arnet_forward.1} parent=1 // pred_fallthru
      _
    // Predicated region
    $region30: #{arnet_forward.1} parent=1 // pred_check
      _
    $region31: #{arnet_forward.1} parent=1 // pred_check_branch
      %100 = sbr.rel (0) target = $region33
    $region32: #{arnet_forward.1} parent=1 // pred_region
      %s102 = ssub.s32 48, 48
      %103 = vsyncadd [#allocation11], %s102
      %s105 = sshll.u32 [#allocation12], 4
      %s106 = int_to_ptr.vmem [resolvable:$true] %s105
      %108 = dma.hbm_to_vmem [thread:$0]  %s7, 48, %s106, [#allocation11]
    $region33: #{arnet_forward.1} parent=1 // pred_fallthru
      _
    // Predicated region
    $region34: #{arnet_forward.1} parent=1 // pred_check
      _
    $region35: #{arnet_forward.1} parent=1 // pred_check_branch
      %110 = sbr.rel (0) target = $region37
    $region36: #{arnet_forward.1} parent=1 // pred_region
      %s112 = ssub.s32 16, 16
      %113 = vsyncadd [#allocation14], %s112
      %s115 = sshll.u32 [#allocation13], 4
      %s116 = int_to_ptr.vmem [resolvable:$true] %s115
      %118 = dma.hbm_to_vmem [thread:$0]  %s8, 16, %s116, [#allocation14]
    $region37: #{arnet_forward.1} parent=1 // pred_fallthru
      _
    // Predicated region
    $region38: #{arnet_forward.1} parent=1 // pred_check
      _
    $region39: #{arnet_forward.1} parent=1 // pred_check_branch
      %120 = sbr.rel (0) target = $region41
    $region40: #{arnet_forward.1} parent=1 // pred_region
      %s122 = ssub.s32 2048, 2048
      %123 = vsyncadd [#allocation14], %s122
      %s124 = sshll.u32 [#allocation15], 4
      %s125 = int_to_ptr.vmem [resolvable:$true] %s124
      %130 = dma.hbm_to_vmem [thread:$0]  %s9, 2048, %s125, [#allocation14], 128, 128, 8
    $region41: #{arnet_forward.1} parent=1 // pred_fallthru
      _
    // Predicated region
    $region42: #{arnet_forward.1} parent=1 // pred_check
      _
    $region43: #{arnet_forward.1} parent=1 // pred_check_branch
      %132 = sbr.rel (0) target = $region45
    $region44: #{arnet_forward.1} parent=1 // pred_region
      %s134 = ssub.s32 16, 16
      %135 = vsyncadd [#allocation17], %s134
      %s137 = sshll.u32 [#allocation16], 4
      %s138 = int_to_ptr.vmem [resolvable:$true] %s137
      %140 = dma.hbm_to_vmem [thread:$0]  %s10, 16, %s138, [#allocation17]
    $region45: #{arnet_forward.1} parent=1 // pred_fallthru
      _
    // Predicated region
    $region46: #{arnet_forward.1} parent=1 // pred_check
      _
    $region47: #{arnet_forward.1} parent=1 // pred_check_branch
      %142 = sbr.rel (0) target = $region49
    $region48: #{arnet_forward.1} parent=1 // pred_region
      _
    $region49: #{arnet_forward.1} parent=1 // pred_fallthru
      _
    // Predicated region
    $region50: #{arnet_forward.1} parent=1 // pred_check
      _
    $region51: #{arnet_forward.1} parent=1 // pred_check_branch
      %144 = sbr.rel (0) target = $region53
    $region52: #{arnet_forward.1} parent=1 // pred_region
      %s146 = ssub.s32 16, 16
      %147 = vsyncadd [#allocation17], %s146
      %s149 = sshll.u32 [#allocation18], 4
      %s150 = int_to_ptr.vmem [resolvable:$true] %s149
      %152 = dma.hbm_to_vmem [thread:$0]  %s12, 16, %s150, [#allocation17]
    $region53: #{arnet_forward.1} parent=1 // pred_fallthru
      _
    // Predicated region
    $region54: #{arnet_forward.1} parent=1 // pred_check
      _
    $region55: #{arnet_forward.1} parent=1 // pred_check_branch
      %154 = sbr.rel (0) target = $region57
    $region56: #{arnet_forward.1} parent=1 // pred_region
      %s156 = ssub.s32 128, 128
      %157 = vsyncadd [#allocation20], %s156
      %s159 = sshll.u32 [#allocation19], 4
      %s160 = int_to_ptr.vmem [resolvable:$true] %s159
      %162 = dma.hbm_to_vmem [thread:$0]  %s13, 128, %s160, [#allocation20]
    $region57: #{arnet_forward.1} parent=1 // pred_fallthru
      _
    // Predicated region
    $region58: #{arnet_forward.1} parent=1 // pred_check
      _
    $region59: #{arnet_forward.1} parent=1 // pred_check_branch
      %164 = sbr.rel (0) target = $region61
    $region60: #{arnet_forward.1} parent=1 // pred_region
      _
    $region61: #{arnet_forward.1} parent=1 // pred_fallthru
      _
    // Predicated region
    $region62: #{arnet_forward.1} parent=1 // pred_check
      _
    $region63: #{arnet_forward.1} parent=1 // pred_check_branch
      %166 = sbr.rel (0) target = $region65
    $region64: #{arnet_forward.1} parent=1 // pred_region
      %167 = dma.done [#allocation3], 768
    $region65: #{arnet_forward.1} parent=1 // pred_fallthru
      _
    // Predicated region
    $region66: #{arnet_forward.1} parent=1 // pred_check
      _
    $region67: #{arnet_forward.1} parent=1 // pred_check_branch
      %169 = sbr.rel (0) target = $region69
    $region68: #{arnet_forward.1} parent=1 // pred_region
      %170 = dma.done [#allocation5], 6144
    $region69: #{arnet_forward.1} parent=1 // pred_fallthru
      _
    // Predicated region
    $region70: #{arnet_forward.1} parent=1 // pred_check
      _
    $region71: #{arnet_forward.1} parent=1 // pred_check_branch
      %172 = sbr.rel (0) target = $region73
    $region72: #{arnet_forward.1} parent=1 // pred_region
      %173 = dma.done [#allocation5], 48
    $region73: #{arnet_forward.1} parent=1 // pred_fallthru
      _
    // Predicated region
    $region74: #{arnet_forward.1} parent=1 // pred_check
      _
    $region75: #{arnet_forward.1} parent=1 // pred_check_branch
      %175 = sbr.rel (0) target = $region77
    $region76: #{arnet_forward.1} parent=1 // pred_region
      %176 = dma.done [#allocation8], 16
    $region77: #{arnet_forward.1} parent=1 // pred_fallthru
      _
    // Predicated region
    $region78: #{arnet_forward.1} parent=1 // pred_check
      _
    $region79: #{arnet_forward.1} parent=1 // pred_check_branch
      %178 = sbr.rel (0) target = $region81
    $region80: #{arnet_forward.1} parent=1 // pred_region
      %179 = dma.done [#allocation8], 6144
    $region81: #{arnet_forward.1} parent=1 // pred_fallthru
      _
    // Predicated region
    $region82: #{arnet_forward.1} parent=1 // pred_check
      _
    $region83: #{arnet_forward.1} parent=1 // pred_check_branch
      %181 = sbr.rel (0) target = $region85
    $region84: #{arnet_forward.1} parent=1 // pred_region
      %182 = dma.done [#allocation11], 6144
    $region85: #{arnet_forward.1} parent=1 // pred_fallthru
      _
    // Predicated region
    $region86: #{arnet_forward.1} parent=1 // pred_check
      _
    $region87: #{arnet_forward.1} parent=1 // pred_check_branch
      %184 = sbr.rel (0) target = $region89
    $region88: #{arnet_forward.1} parent=1 // pred_region
      %185 = dma.done [#allocation11], 48
    $region89: #{arnet_forward.1} parent=1 // pred_fallthru
      _
    // Predicated region
    $region90: #{arnet_forward.1} parent=1 // pred_check
      _
    $region91: #{arnet_forward.1} parent=1 // pred_check_branch
      %187 = sbr.rel (0) target = $region93
    $region92: #{arnet_forward.1} parent=1 // pred_region
      %188 = dma.done [#allocation14], 16
    $region93: #{arnet_forward.1} parent=1 // pred_fallthru
      _
    // Predicated region
    $region94: #{arnet_forward.1} parent=1 // pred_check
      _
    $region95: #{arnet_forward.1} parent=1 // pred_check_branch
      %190 = sbr.rel (0) target = $region97
    $region96: #{arnet_forward.1} parent=1 // pred_region
      %191 = dma.done [#allocation14], 2048
    $region97: #{arnet_forward.1} parent=1 // pred_fallthru
      _
    // Predicated region
    $region98: #{arnet_forward.1} parent=1 // pred_check
      _
    $region99: #{arnet_forward.1} parent=1 // pred_check_branch
      %193 = sbr.rel (0) target = $region101
    $region100: #{arnet_forward.1} parent=1 // pred_region
      %194 = dma.done [#allocation17], 16
    $region101: #{arnet_forward.1} parent=1 // pred_fallthru
      _
    // Predicated region
    $region102: #{arnet_forward.1} parent=1 // pred_check
      _
    $region103: #{arnet_forward.1} parent=1 // pred_check_branch
      %196 = sbr.rel (0) target = $region105
    $region104: #{arnet_forward.1} parent=1 // pred_region
      %197 = dma.done [#allocation17], 16
    $region105: #{arnet_forward.1} parent=1 // pred_fallthru
      _
    // Predicated region
    $region106: #{arnet_forward.1} parent=1 // pred_check
      _
    $region107: #{arnet_forward.1} parent=1 // pred_check_branch
      %199 = sbr.rel (0) target = $region109
    $region108: #{arnet_forward.1} parent=1 // pred_region
      %200 = dma.done [#allocation20], 128
    $region109: #{arnet_forward.1} parent=1 // pred_fallthru
      _
    %v201 = vld [vmem:[#allocation4] sm:$0xff]
    %v202 = vld [vmem:[#allocation4 + $0x8] sm:$0xff]
    %v203 = vld [vmem:[#allocation4 + $0x10] sm:$0xff]
    %v204 = vld [vmem:[#allocation4 + $0x18] sm:$0xff]
    %v205 = vld [vmem:[#allocation4 + $0x20] sm:$0xff]
    %v206 = vld [vmem:[#allocation4 + $0x28] sm:$0xff]
    %v207 = vld [vmem:[#allocation4 + $0x30] sm:$0xff]
    %v208 = vld [vmem:[#allocation4 + $0x38] sm:$0xff]
    %v209 = vld [vmem:[#allocation4 + $0x40] sm:$0xff]
    %v210 = vld [vmem:[#allocation4 + $0x48] sm:$0xff]
    %v211 = vld [vmem:[#allocation4 + $0x50] sm:$0xff]
    %v212 = vld [vmem:[#allocation4 + $0x58] sm:$0xff]
    %v213 = vld [vmem:[#allocation4 + $0x60] sm:$0xff]
    %v214 = vld [vmem:[#allocation4 + $0x68] sm:$0xff]
    %v215 = vld [vmem:[#allocation4 + $0x70] sm:$0xff]
    %v216 = vld [vmem:[#allocation4 + $0x78] sm:$0xff]
    %v217 = vld [vmem:[#allocation4 + $0x80] sm:$0xff]
    %v218 = vld [vmem:[#allocation4 + $0x88] sm:$0xff]
    %v219 = vld [vmem:[#allocation4 + $0x90] sm:$0xff]
    %v220 = vld [vmem:[#allocation4 + $0x98] sm:$0xff]
    %v221 = vld [vmem:[#allocation4 + $0xa0] sm:$0xff]
    %v222 = vld [vmem:[#allocation4 + $0xa8] sm:$0xff]
    %v223 = vld [vmem:[#allocation4 + $0xb0] sm:$0xff]
    %v224 = vld [vmem:[#allocation4 + $0xb8] sm:$0xff]
    %v225 = vld [vmem:[#allocation4 + $0xc0] sm:$0xff]
    %v226 = vld [vmem:[#allocation4 + $0xc8] sm:$0xff]
    %v227 = vld [vmem:[#allocation4 + $0xd0] sm:$0xff]
    %v228 = vld [vmem:[#allocation4 + $0xd8] sm:$0xff]
    %v229 = vld [vmem:[#allocation4 + $0xe0] sm:$0xff]
    %v230 = vld [vmem:[#allocation4 + $0xe8] sm:$0xff]
    %v231 = vld [vmem:[#allocation4 + $0xf0] sm:$0xff]
    %v232 = vld [vmem:[#allocation4 + $0xf8] sm:$0xff]
    %v233 = vld [vmem:[#allocation4 + $0x100] sm:$0xff]
    %v234 = vld [vmem:[#allocation4 + $0x108] sm:$0xff]
    %v235 = vld [vmem:[#allocation4 + $0x110] sm:$0xff]
    %v236 = vld [vmem:[#allocation4 + $0x118] sm:$0xff]
    %v237 = vld [vmem:[#allocation4 + $0x120] sm:$0xff]
    %v238 = vld [vmem:[#allocation4 + $0x128] sm:$0xff]
    %v239 = vld [vmem:[#allocation4 + $0x130] sm:$0xff]
    %v240 = vld [vmem:[#allocation4 + $0x138] sm:$0xff]
    %v241 = vld [vmem:[#allocation4 + $0x140] sm:$0xff]
    %v242 = vld [vmem:[#allocation4 + $0x148] sm:$0xff]
    %v243 = vld [vmem:[#allocation4 + $0x150] sm:$0xff]
    %v244 = vld [vmem:[#allocation4 + $0x158] sm:$0xff]
    %v245 = vld [vmem:[#allocation4 + $0x160] sm:$0xff]
    %v246 = vld [vmem:[#allocation4 + $0x168] sm:$0xff]
    %v247 = vld [vmem:[#allocation4 + $0x170] sm:$0xff]
    %v248 = vld [vmem:[#allocation4 + $0x178] sm:$0xff]
    %v249 = vld [vmem:[#allocation9] sm:$0xff]
    %v250 = vld [vmem:[#allocation9 + $0x8] sm:$0xff]
    %v251 = vld [vmem:[#allocation9 + $0x10] sm:$0xff]
    %v252 = vld [vmem:[#allocation9 + $0x18] sm:$0xff]
    %v253 = vld [vmem:[#allocation9 + $0x20] sm:$0xff]
    %v254 = vld [vmem:[#allocation9 + $0x28] sm:$0xff]
    %v255 = vld [vmem:[#allocation9 + $0x30] sm:$0xff]
    %v256 = vld [vmem:[#allocation9 + $0x38] sm:$0xff]
    %v257 = vld [vmem:[#allocation9 + $0x40] sm:$0xff]
    %v258 = vld [vmem:[#allocation9 + $0x48] sm:$0xff]
    %v259 = vld [vmem:[#allocation9 + $0x50] sm:$0xff]
    %v260 = vld [vmem:[#allocation9 + $0x58] sm:$0xff]
    %v261 = vld [vmem:[#allocation9 + $0x60] sm:$0xff]
    %v262 = vld [vmem:[#allocation9 + $0x68] sm:$0xff]
    %v263 = vld [vmem:[#allocation9 + $0x70] sm:$0xff]
    %v264 = vld [vmem:[#allocation9 + $0x78] sm:$0xff]
    %v265 = vld [vmem:[#allocation9 + $0x80] sm:$0xff]
    %v266 = vld [vmem:[#allocation9 + $0x88] sm:$0xff]
    %v267 = vld [vmem:[#allocation9 + $0x90] sm:$0xff]
    %v268 = vld [vmem:[#allocation9 + $0x98] sm:$0xff]
    %v269 = vld [vmem:[#allocation9 + $0xa0] sm:$0xff]
    %v270 = vld [vmem:[#allocation9 + $0xa8] sm:$0xff]
    %v271 = vld [vmem:[#allocation9 + $0xb0] sm:$0xff]
    %v272 = vld [vmem:[#allocation9 + $0xb8] sm:$0xff]
    %v273 = vld [vmem:[#allocation9 + $0xc0] sm:$0xff]
    %v274 = vld [vmem:[#allocation9 + $0xc8] sm:$0xff]
    %v275 = vld [vmem:[#allocation9 + $0xd0] sm:$0xff]
    %v276 = vld [vmem:[#allocation9 + $0xd8] sm:$0xff]
    %v277 = vld [vmem:[#allocation9 + $0xe0] sm:$0xff]
    %v278 = vld [vmem:[#allocation9 + $0xe8] sm:$0xff]
    %v279 = vld [vmem:[#allocation9 + $0xf0] sm:$0xff]
    %v280 = vld [vmem:[#allocation9 + $0xf8] sm:$0xff]
    %v281 = vld [vmem:[#allocation9 + $0x100] sm:$0xff]
    %v282 = vld [vmem:[#allocation9 + $0x108] sm:$0xff]
    %v283 = vld [vmem:[#allocation9 + $0x110] sm:$0xff]
    %v284 = vld [vmem:[#allocation9 + $0x118] sm:$0xff]
    %v285 = vld [vmem:[#allocation9 + $0x120] sm:$0xff]
    %v286 = vld [vmem:[#allocation9 + $0x128] sm:$0xff]
    %v287 = vld [vmem:[#allocation9 + $0x130] sm:$0xff]
    %v288 = vld [vmem:[#allocation9 + $0x138] sm:$0xff]
    %v289 = vld [vmem:[#allocation9 + $0x140] sm:$0xff]
    %v290 = vld [vmem:[#allocation9 + $0x148] sm:$0xff]
    %v291 = vld [vmem:[#allocation9 + $0x150] sm:$0xff]
    %v292 = vld [vmem:[#allocation9 + $0x158] sm:$0xff]
    %v293 = vld [vmem:[#allocation9 + $0x160] sm:$0xff]
    %v294 = vld [vmem:[#allocation9 + $0x168] sm:$0xff]
    %v295 = vld [vmem:[#allocation9 + $0x170] sm:$0xff]
    %v296 = vld [vmem:[#allocation9 + $0x178] sm:$0xff]
    %v297 = vld [vmem:[#allocation10] sm:$0xff]
    %v298 = vld [vmem:[#allocation10 + $0x8] sm:$0xff]
    %v299 = vld [vmem:[#allocation10 + $0x10] sm:$0xff]
    %v300 = vld [vmem:[#allocation10 + $0x18] sm:$0xff]
    %v301 = vld [vmem:[#allocation10 + $0x20] sm:$0xff]
    %v302 = vld [vmem:[#allocation10 + $0x28] sm:$0xff]
    %v303 = vld [vmem:[#allocation10 + $0x30] sm:$0xff]
    %v304 = vld [vmem:[#allocation10 + $0x38] sm:$0xff]
    %v305 = vld [vmem:[#allocation10 + $0x40] sm:$0xff]
    %v306 = vld [vmem:[#allocation10 + $0x48] sm:$0xff]
    %v307 = vld [vmem:[#allocation10 + $0x50] sm:$0xff]
    %v308 = vld [vmem:[#allocation10 + $0x58] sm:$0xff]
    %v309 = vld [vmem:[#allocation10 + $0x60] sm:$0xff]
    %v310 = vld [vmem:[#allocation10 + $0x68] sm:$0xff]
    %v311 = vld [vmem:[#allocation10 + $0x70] sm:$0xff]
    %v312 = vld [vmem:[#allocation10 + $0x78] sm:$0xff]
    %v313 = vld [vmem:[#allocation10 + $0x80] sm:$0xff]
    %v314 = vld [vmem:[#allocation10 + $0x88] sm:$0xff]
    %v315 = vld [vmem:[#allocation10 + $0x90] sm:$0xff]
    %v316 = vld [vmem:[#allocation10 + $0x98] sm:$0xff]
    %v317 = vld [vmem:[#allocation10 + $0xa0] sm:$0xff]
    %v318 = vld [vmem:[#allocation10 + $0xa8] sm:$0xff]
    %v319 = vld [vmem:[#allocation10 + $0xb0] sm:$0xff]
    %v320 = vld [vmem:[#allocation10 + $0xb8] sm:$0xff]
    %v321 = vld [vmem:[#allocation10 + $0xc0] sm:$0xff]
    %v322 = vld [vmem:[#allocation10 + $0xc8] sm:$0xff]
    %v323 = vld [vmem:[#allocation10 + $0xd0] sm:$0xff]
    %v324 = vld [vmem:[#allocation10 + $0xd8] sm:$0xff]
    %v325 = vld [vmem:[#allocation10 + $0xe0] sm:$0xff]
    %v326 = vld [vmem:[#allocation10 + $0xe8] sm:$0xff]
    %v327 = vld [vmem:[#allocation10 + $0xf0] sm:$0xff]
    %v328 = vld [vmem:[#allocation10 + $0xf8] sm:$0xff]
    %v329 = vld [vmem:[#allocation10 + $0x100] sm:$0xff]
    %v330 = vld [vmem:[#allocation10 + $0x108] sm:$0xff]
    %v331 = vld [vmem:[#allocation10 + $0x110] sm:$0xff]
    %v332 = vld [vmem:[#allocation10 + $0x118] sm:$0xff]
    %v333 = vld [vmem:[#allocation10 + $0x120] sm:$0xff]
    %v334 = vld [vmem:[#allocation10 + $0x128] sm:$0xff]
    %v335 = vld [vmem:[#allocation10 + $0x130] sm:$0xff]
    %v336 = vld [vmem:[#allocation10 + $0x138] sm:$0xff]
    %v337 = vld [vmem:[#allocation10 + $0x140] sm:$0xff]
    %v338 = vld [vmem:[#allocation10 + $0x148] sm:$0xff]
    %v339 = vld [vmem:[#allocation10 + $0x150] sm:$0xff]
    %v340 = vld [vmem:[#allocation10 + $0x158] sm:$0xff]
    %v341 = vld [vmem:[#allocation10 + $0x160] sm:$0xff]
    %v342 = vld [vmem:[#allocation10 + $0x168] sm:$0xff]
    %v343 = vld [vmem:[#allocation10 + $0x170] sm:$0xff]
    %v344 = vld [vmem:[#allocation10 + $0x178] sm:$0xff]
    %v345 = vld [vmem:[#allocation7] sm:$0x1]
    %v347 = vlaneseq
    %v348 = vshrl.u32 %v347, 7
    %v349 = vsub.s32 0, %v348
    %v350 = vrot.slane %v345, %v349
    %v352 = vld [vmem:[#allocation12] sm:$0x7]
    %v354 = vlaneseq
    %v355 = vshrl.u32 %v354, 7
    %v356 = vsub.s32 0, %v355
    %v357 = vrot.slane %v352, %v356
    %v358 = vlaneseq
    %v359 = vshrl.u32 %v358, 7
    %v360 = vsub.s32 1, %v359
    %v361 = vrot.slane %v352, %v360
    %v362 = vlaneseq
    %v363 = vshrl.u32 %v362, 7
    %v364 = vsub.s32 2, %v363
    %v365 = vrot.slane %v352, %v364
    %v369 = vld [vmem:[#allocation13] sm:$0x1]
    %v371 = vlaneseq
    %v372 = vshrl.u32 %v371, 7
    %v373 = vsub.s32 0, %v372
    %v374 = vrot.slane %v369, %v373
    %v376 = vld [vmem:[%s0] sm:$0xff]
    %v377 = vld [vmem:[%s0 + $0x8] sm:$0xff]
    %v378 = vld [vmem:[%s0 + $0x10] sm:$0xff]
    %v379 = vld [vmem:[%s0 + $0x18] sm:$0xff]
    %v380 = vld [vmem:[%s0 + $0x20] sm:$0xff]
    %v381 = vld [vmem:[%s0 + $0x28] sm:$0xff]
    %v382 = vld [vmem:[%s0 + $0x30] sm:$0xff]
    %v383 = vld [vmem:[%s0 + $0x38] sm:$0xff]
    %v384 = vld [vmem:[#allocation2] sm:$0xff]
    %v385 = vld [vmem:[#allocation2 + $0x8] sm:$0xff]
    %v386 = vld [vmem:[#allocation2 + $0x10] sm:$0xff]
    %v387 = vld [vmem:[#allocation2 + $0x18] sm:$0xff]
    %v388 = vld [vmem:[#allocation2 + $0x20] sm:$0xff]
    %v389 = vld [vmem:[#allocation2 + $0x28] sm:$0xff]
    %v390 = vld [vmem:[#allocation6] sm:$0x7]
    %v392 = vlaneseq
    %v393 = vshrl.u32 %v392, 7
    %v394 = vsub.s32 0, %v393
    %v395 = vrot.slane %v390, %v394
    %v396 = vlaneseq
    %v397 = vshrl.u32 %v396, 7
    %v398 = vsub.s32 1, %v397
    %v399 = vrot.slane %v390, %v398
    %v400 = vlaneseq
    %v401 = vshrl.u32 %v400, 7
    %v402 = vsub.s32 2, %v401
    %v403 = vrot.slane %v390, %v402
    %vm407 = vcmask 130048
    %v409 = vsel %vm407, %v376, 0
    %v412 = vsel %vm407, %v377, 0
    %v415 = vsel %vm407, %v378, 0
    %v418 = vsel %vm407, %v379, 0
    %v421 = vsel %vm407, %v380, 0
    %v424 = vsel %vm407, %v381, 0
    %v427 = vsel %vm407, %v382, 0
    %v430 = vsel %vm407, %v383, 0
    %432 = vmatprep.subr.mxu0 0.0
    %433 = vmatpush1.msra.mxu0 0.0
    %434 = vmatprep.subr.mxu0 0.0
    %435 = vmatpush1.msra.mxu0 0.0
    %436 = vmatprep.subr.mxu0 0.0
    %437 = vmatpush1.msra.mxu0 0.0
    %438 = vmatprep.subr.mxu0 0.0
    %439 = vmatpush1.msra.mxu0 0.0
    %440 = vmatprep.subr.mxu0 0.0
    %441 = vmatpush1.msra.mxu0 0.0
    %442 = vmatprep.subr.mxu0 0.0
    %443 = vmatpush1.msra.mxu0 0.0
    %444 = vmatprep.subr.mxu0 0.0
    %445 = vmatpush1.msra.mxu0 0.0
    %446 = vmatprep.subr.mxu0 0.0
    %447 = vmatpush1.msra.mxu0 0.0
    %448 = vmatprep.subr.mxu0 0.0
    %449 = vmatpush1.msra.mxu0 0.0
    %450 = vmatprep.subr.mxu0 0.0
    %451 = vmatpush1.msra.mxu0 0.0
    %452 = vmatprep.subr.mxu0 0.0
    %453 = vmatpush1.msra.mxu0 0.0
    %454 = vmatprep.subr.mxu0 0.0
    %455 = vmatpush1.msra.mxu0 0.0
    %456 = vmatprep.subr.mxu0 0.0
    %457 = vmatpush1.msra.mxu0 0.0
    %458 = vmatprep.subr.mxu0 0.0
    %459 = vmatpush1.msra.mxu0 0.0
    %460 = vmatprep.subr.mxu0 %v388
    %461 = vmatpush1.msra.mxu0 %v387
    %462 = vmatprep.subr.mxu0 %v385
    %463 = vmatpush1.msra.mxu0 %v384
    %464 = vmatprep.subr.mxu0 0.0
    %465 = vmatpush2.msra.mxu0 0.0
    %466 = vmatprep.subr.mxu0 0.0
    %467 = vmatpush2.msra.mxu0 0.0
    %468 = vmatprep.subr.mxu0 0.0
    %469 = vmatpush2.msra.mxu0 0.0
    %470 = vmatprep.subr.mxu0 0.0
    %471 = vmatpush2.msra.mxu0 0.0
    %472 = vmatprep.subr.mxu0 0.0
    %473 = vmatpush2.msra.mxu0 0.0
    %474 = vmatprep.subr.mxu0 0.0
    %475 = vmatpush2.msra.mxu0 0.0
    %476 = vmatprep.subr.mxu0 0.0
    %477 = vmatpush2.msra.mxu0 0.0
    %478 = vmatprep.subr.mxu0 0.0
    %479 = vmatpush2.msra.mxu0 0.0
    %480 = vmatprep.subr.mxu0 0.0
    %481 = vmatpush2.msra.mxu0 0.0
    %482 = vmatprep.subr.mxu0 0.0
    %483 = vmatpush2.msra.mxu0 0.0
    %484 = vmatprep.subr.mxu0 0.0
    %485 = vmatpush2.msra.mxu0 0.0
    %486 = vmatprep.subr.mxu0 0.0
    %487 = vmatpush2.msra.mxu0 0.0
    %488 = vmatprep.subr.mxu0 0.0
    %489 = vmatpush2.msra.mxu0 0.0
    %490 = vmatprep.subr.mxu0 0.0
    %491 = vmatpush2.msra.mxu0 0.0
    %492 = vmatprep.subr.mxu0 0.0
    %493 = vmatpush2.msra.mxu0 0.0
    %494 = vmatprep.subr.mxu0 0.0
    %495 = vmatpush2.msra.mxu0 0.0
    %496 = vmatprep.mubr.f32.mxu0 0.0
    %497 = vmatmul.mubr.f32.gmra.mxu0 %v409
    %v498 = vpop.f32.mrf.mxu0
    %v499 = vadd.f32 %v395, %v498
    %v500 = vpop.f32.mrf.mxu0
    %v501 = vadd.f32 %v399, %v500
    %502 = vmatprep.mubr.f32.mxu0 0.0
    %503 = vmatmul.mubr.f32.gmra.mxu0 %v412
    %v504 = vpop.f32.mrf.mxu0
    %v505 = vadd.f32 %v395, %v504
    %v506 = vpop.f32.mrf.mxu0
    %v507 = vadd.f32 %v399, %v506
    %508 = vmatprep.mubr.f32.mxu0 0.0
    %509 = vmatmul.mubr.f32.gmra.mxu0 %v415
    %v510 = vpop.f32.mrf.mxu0
    %v511 = vadd.f32 %v395, %v510
    %v512 = vpop.f32.mrf.mxu0
    %v513 = vadd.f32 %v399, %v512
    %514 = vmatprep.mubr.f32.mxu0 0.0
    %515 = vmatmul.mubr.f32.gmra.mxu0 %v418
    %v516 = vpop.f32.mrf.mxu0
    %v517 = vadd.f32 %v395, %v516
    %v518 = vpop.f32.mrf.mxu0
    %v519 = vadd.f32 %v399, %v518
    %520 = vmatprep.mubr.f32.mxu0 0.0
    %521 = vmatmul.mubr.f32.gmra.mxu0 %v421
    %v522 = vpop.f32.mrf.mxu0
    %v523 = vadd.f32 %v395, %v522
    %v524 = vpop.f32.mrf.mxu0
    %v525 = vadd.f32 %v399, %v524
    %526 = vmatprep.mubr.f32.mxu0 0.0
    %527 = vmatmul.mubr.f32.gmra.mxu0 %v424
    %v528 = vpop.f32.mrf.mxu0
    %v529 = vadd.f32 %v395, %v528
    %v530 = vpop.f32.mrf.mxu0
    %v531 = vadd.f32 %v399, %v530
    %532 = vmatprep.mubr.f32.mxu0 0.0
    %533 = vmatmul.mubr.f32.gmra.mxu0 %v427
    %v534 = vpop.f32.mrf.mxu0
    %v535 = vadd.f32 %v395, %v534
    %v536 = vpop.f32.mrf.mxu0
    %v537 = vadd.f32 %v399, %v536
    %538 = vmatprep.mubr.f32.mxu0 0.0
    %539 = vmatmul.mubr.f32.gmra.mxu0 %v430
    %v540 = vpop.f32.mrf.mxu0
    %v541 = vadd.f32 %v395, %v540
    %v542 = vpop.f32.mrf.mxu0
    %v543 = vadd.f32 %v399, %v542
    %544 = vdwg.mxu0
    %545 = vmatprep.subr.mxu0 0.0
    %546 = vmatpush1.msra.mxu0 0.0
    %547 = vmatprep.subr.mxu0 0.0
    %548 = vmatpush1.msra.mxu0 0.0
    %549 = vmatprep.subr.mxu0 0.0
    %550 = vmatpush1.msra.mxu0 0.0
    %551 = vmatprep.subr.mxu0 0.0
    %552 = vmatpush1.msra.mxu0 0.0
    %553 = vmatprep.subr.mxu0 0.0
    %554 = vmatpush1.msra.mxu0 0.0
    %555 = vmatprep.subr.mxu0 0.0
    %556 = vmatpush1.msra.mxu0 0.0
    %557 = vmatprep.subr.mxu0 0.0
    %558 = vmatpush1.msra.mxu0 0.0
    %559 = vmatprep.subr.mxu0 0.0
    %560 = vmatpush1.msra.mxu0 0.0
    %561 = vmatprep.subr.mxu0 0.0
    %562 = vmatpush1.msra.mxu0 0.0
    %563 = vmatprep.subr.mxu0 0.0
    %564 = vmatpush1.msra.mxu0 0.0
    %565 = vmatprep.subr.mxu0 0.0
    %566 = vmatpush1.msra.mxu0 0.0
    %567 = vmatprep.subr.mxu0 0.0
    %568 = vmatpush1.msra.mxu0 0.0
    %569 = vmatprep.subr.mxu0 0.0
    %570 = vmatpush1.msra.mxu0 0.0
    %571 = vmatprep.subr.mxu0 0.0
    %572 = vmatpush1.msra.mxu0 0.0
    %573 = vmatprep.subr.mxu0 0.0
    %574 = vmatpush1.msra.mxu0 %v389
    %575 = vmatprep.subr.mxu0 0.0
    %576 = vmatpush1.msra.mxu0 %v386
    %577 = vmatprep.subr.mxu0 0.0
    %578 = vmatpush2.msra.mxu0 0.0
    %579 = vmatprep.subr.mxu0 0.0
    %580 = vmatpush2.msra.mxu0 0.0
    %581 = vmatprep.subr.mxu0 0.0
    %582 = vmatpush2.msra.mxu0 0.0
    %583 = vmatprep.subr.mxu0 0.0
    %584 = vmatpush2.msra.mxu0 0.0
    %585 = vmatprep.subr.mxu0 0.0
    %586 = vmatpush2.msra.mxu0 0.0
    %587 = vmatprep.subr.mxu0 0.0
    %588 = vmatpush2.msra.mxu0 0.0
    %589 = vmatprep.subr.mxu0 0.0
    %590 = vmatpush2.msra.mxu0 0.0
    %591 = vmatprep.subr.mxu0 0.0
    %592 = vmatpush2.msra.mxu0 0.0
    %593 = vmatprep.subr.mxu0 0.0
    %594 = vmatpush2.msra.mxu0 0.0
    %595 = vmatprep.subr.mxu0 0.0
    %596 = vmatpush2.msra.mxu0 0.0
    %597 = vmatprep.subr.mxu0 0.0
    %598 = vmatpush2.msra.mxu0 0.0
    %599 = vmatprep.subr.mxu0 0.0
    %600 = vmatpush2.msra.mxu0 0.0
    %601 = vmatprep.subr.mxu0 0.0
    %602 = vmatpush2.msra.mxu0 0.0
    %603 = vmatprep.subr.mxu0 0.0
    %604 = vmatpush2.msra.mxu0 0.0
    %605 = vmatprep.subr.mxu0 0.0
    %606 = vmatpush2.msra.mxu0 0.0
    %607 = vmatprep.subr.mxu0 0.0
    %608 = vmatpush2.msra.mxu0 0.0
    %609 = vmatprep.mubr.f32.mxu0 0.0
    %610 = vmatmul.mubr.f32.gmra.mxu0 %v409
    %v611 = vpop.f32.mrf.mxu0
    %v612 = vadd.f32 %v403, %v611
    %v613 = vpop.f32.mrf.mxu0
    %614 = vmatprep.mubr.f32.mxu0 0.0
    %615 = vmatmul.mubr.f32.gmra.mxu0 %v412
    %v616 = vpop.f32.mrf.mxu0
    %v617 = vadd.f32 %v403, %v616
    %v618 = vpop.f32.mrf.mxu0
    %619 = vmatprep.mubr.f32.mxu0 0.0
    %620 = vmatmul.mubr.f32.gmra.mxu0 %v415
    %v621 = vpop.f32.mrf.mxu0
    %v622 = vadd.f32 %v403, %v621
    %v623 = vpop.f32.mrf.mxu0
    %624 = vmatprep.mubr.f32.mxu0 0.0
    %625 = vmatmul.mubr.f32.gmra.mxu0 %v418
    %v626 = vpop.f32.mrf.mxu0
    %v627 = vadd.f32 %v403, %v626
    %v628 = vpop.f32.mrf.mxu0
    %629 = vmatprep.mubr.f32.mxu0 0.0
    %630 = vmatmul.mubr.f32.gmra.mxu0 %v421
    %v631 = vpop.f32.mrf.mxu0
    %v632 = vadd.f32 %v403, %v631
    %v633 = vpop.f32.mrf.mxu0
    %634 = vmatprep.mubr.f32.mxu0 0.0
    %635 = vmatmul.mubr.f32.gmra.mxu0 %v424
    %v636 = vpop.f32.mrf.mxu0
    %v637 = vadd.f32 %v403, %v636
    %v638 = vpop.f32.mrf.mxu0
    %639 = vmatprep.mubr.f32.mxu0 0.0
    %640 = vmatmul.mubr.f32.gmra.mxu0 %v427
    %v641 = vpop.f32.mrf.mxu0
    %v642 = vadd.f32 %v403, %v641
    %v643 = vpop.f32.mrf.mxu0
    %644 = vmatprep.mubr.f32.mxu0 0.0
    %645 = vmatmul.mubr.f32.gmra.mxu0 %v430
    %v646 = vpop.f32.mrf.mxu0
    %v647 = vadd.f32 %v403, %v646
    %v648 = vpop.f32.mrf.mxu0
    %649 = vdwg.mxu0
    %650 = vmatprep.subr.mxu0 %v247
    %651 = vmatpush1.msra.mxu0 %v246
    %652 = vmatprep.subr.mxu0 %v244
    %653 = vmatpush1.msra.mxu0 %v243
    %654 = vmatprep.subr.mxu0 %v241
    %655 = vmatpush1.msra.mxu0 %v240
    %656 = vmatprep.subr.mxu0 %v238
    %657 = vmatpush1.msra.mxu0 %v237
    %658 = vmatprep.subr.mxu0 %v235
    %659 = vmatpush1.msra.mxu0 %v234
    %660 = vmatprep.subr.mxu0 %v232
    %661 = vmatpush1.msra.mxu0 %v231
    %662 = vmatprep.subr.mxu0 %v229
    %663 = vmatpush1.msra.mxu0 %v228
    %664 = vmatprep.subr.mxu0 %v226
    %665 = vmatpush1.msra.mxu0 %v225
    %666 = vmatprep.subr.mxu0 %v223
    %667 = vmatpush1.msra.mxu0 %v222
    %668 = vmatprep.subr.mxu0 %v220
    %669 = vmatpush1.msra.mxu0 %v219
    %670 = vmatprep.subr.mxu0 %v217
    %671 = vmatpush1.msra.mxu0 %v216
    %672 = vmatprep.subr.mxu0 %v214
    %673 = vmatpush1.msra.mxu0 %v213
    %674 = vmatprep.subr.mxu0 %v211
    %675 = vmatpush1.msra.mxu0 %v210
    %676 = vmatprep.subr.mxu0 %v208
    %677 = vmatpush1.msra.mxu0 %v207
    %678 = vmatprep.subr.mxu0 %v205
    %679 = vmatpush1.msra.mxu0 %v204
    %680 = vmatprep.subr.mxu0 %v202
    %681 = vmatpush1.msra.mxu0 %v201
    %682 = vmatprep.subr.mxu0 0.0
    %683 = vmatpush2.msra.mxu0 0.0
    %684 = vmatprep.subr.mxu0 0.0
    %685 = vmatpush2.msra.mxu0 0.0
    %686 = vmatprep.subr.mxu0 0.0
    %687 = vmatpush2.msra.mxu0 0.0
    %688 = vmatprep.subr.mxu0 0.0
    %689 = vmatpush2.msra.mxu0 0.0
    %690 = vmatprep.subr.mxu0 0.0
    %691 = vmatpush2.msra.mxu0 0.0
    %692 = vmatprep.subr.mxu0 0.0
    %693 = vmatpush2.msra.mxu0 0.0
    %694 = vmatprep.subr.mxu0 0.0
    %695 = vmatpush2.msra.mxu0 0.0
    %696 = vmatprep.subr.mxu0 0.0
    %697 = vmatpush2.msra.mxu0 0.0
    %698 = vmatprep.subr.mxu0 0.0
    %699 = vmatpush2.msra.mxu0 0.0
    %700 = vmatprep.subr.mxu0 0.0
    %701 = vmatpush2.msra.mxu0 0.0
    %702 = vmatprep.subr.mxu0 0.0
    %703 = vmatpush2.msra.mxu0 0.0
    %704 = vmatprep.subr.mxu0 0.0
    %705 = vmatpush2.msra.mxu0 0.0
    %706 = vmatprep.subr.mxu0 0.0
    %707 = vmatpush2.msra.mxu0 0.0
    %708 = vmatprep.subr.mxu0 0.0
    %709 = vmatpush2.msra.mxu0 0.0
    %710 = vmatprep.subr.mxu0 0.0
    %711 = vmatpush2.msra.mxu0 0.0
    %712 = vmatprep.subr.mxu0 0.0
    %713 = vmatpush2.msra.mxu0 0.0
    %714 = vmatprep.mubr.f32.mxu0 0.0
    %715 = vmatmul.mubr.f32.gmra.mxu0 0.0
    %v716 = vpop.f32.mrf.mxu0
    %v717 = vadd.f32 0.0, %v716
    %v718 = vpop.f32.mrf.mxu0
    %v719 = vadd.f32 0.0, %v718
    %720 = vdwg.mxu0
    %721 = vmatprep.subr.mxu0 0.0
    %722 = vmatpush1.msra.mxu0 %v248
    %723 = vmatprep.subr.mxu0 0.0
    %724 = vmatpush1.msra.mxu0 %v245
    %725 = vmatprep.subr.mxu0 0.0
    %726 = vmatpush1.msra.mxu0 %v242
    %727 = vmatprep.subr.mxu0 0.0
    %728 = vmatpush1.msra.mxu0 %v239
    %729 = vmatprep.subr.mxu0 0.0
    %730 = vmatpush1.msra.mxu0 %v236
    %731 = vmatprep.subr.mxu0 0.0
    %732 = vmatpush1.msra.mxu0 %v233
    %733 = vmatprep.subr.mxu0 0.0
    %734 = vmatpush1.msra.mxu0 %v230
    %735 = vmatprep.subr.mxu0 0.0
    %736 = vmatpush1.msra.mxu0 %v227
    %737 = vmatprep.subr.mxu0 0.0
    %738 = vmatpush1.msra.mxu0 %v224
    %739 = vmatprep.subr.mxu0 0.0
    %740 = vmatpush1.msra.mxu0 %v221
    %741 = vmatprep.subr.mxu0 0.0
    %742 = vmatpush1.msra.mxu0 %v218
    %743 = vmatprep.subr.mxu0 0.0
    %744 = vmatpush1.msra.mxu0 %v215
    %745 = vmatprep.subr.mxu0 0.0
    %746 = vmatpush1.msra.mxu0 %v212
    %747 = vmatprep.subr.mxu0 0.0
    %748 = vmatpush1.msra.mxu0 %v209
    %749 = vmatprep.subr.mxu0 0.0
    %750 = vmatpush1.msra.mxu0 %v206
    %751 = vmatprep.subr.mxu0 0.0
    %752 = vmatpush1.msra.mxu0 %v203
    %753 = vmatprep.subr.mxu0 0.0
    %754 = vmatpush2.msra.mxu0 0.0
    %755 = vmatprep.subr.mxu0 0.0
    %756 = vmatpush2.msra.mxu0 0.0
    %757 = vmatprep.subr.mxu0 0.0
    %758 = vmatpush2.msra.mxu0 0.0
    %759 = vmatprep.subr.mxu0 0.0
    %760 = vmatpush2.msra.mxu0 0.0
    %761 = vmatprep.subr.mxu0 0.0
    %762 = vmatpush2.msra.mxu0 0.0
    %763 = vmatprep.subr.mxu0 0.0
    %764 = vmatpush2.msra.mxu0 0.0
    %765 = vmatprep.subr.mxu0 0.0
    %766 = vmatpush2.msra.mxu0 0.0
    %767 = vmatprep.subr.mxu0 0.0
    %768 = vmatpush2.msra.mxu0 0.0
    %769 = vmatprep.subr.mxu0 0.0
    %770 = vmatpush2.msra.mxu0 0.0
    %771 = vmatprep.subr.mxu0 0.0
    %772 = vmatpush2.msra.mxu0 0.0
    %773 = vmatprep.subr.mxu0 0.0
    %774 = vmatpush2.msra.mxu0 0.0
    %775 = vmatprep.subr.mxu0 0.0
    %776 = vmatpush2.msra.mxu0 0.0
    %777 = vmatprep.subr.mxu0 0.0
    %778 = vmatpush2.msra.mxu0 0.0
    %779 = vmatprep.subr.mxu0 0.0
    %780 = vmatpush2.msra.mxu0 0.0
    %781 = vmatprep.subr.mxu0 0.0
    %782 = vmatpush2.msra.mxu0 0.0
    %783 = vmatprep.subr.mxu0 0.0
    %784 = vmatpush2.msra.mxu0 0.0
    %785 = vmatprep.mubr.f32.mxu0 0.0
    %786 = vmatmul.mubr.f32.gmra.mxu0 0.0
    %v787 = vpop.f32.mrf.mxu0
    %v788 = vadd.f32 0.0, %v787
    %v789 = vpop.f32.mrf.mxu0
    %790 = vdwg.mxu0
    %v791 = vadd.f32 %v499, %v717
    %v792 = vxor.u32 %v791, 2147483648
    %v793 = vmul.f32 %v792, 1.442695
    %v794 = vpow.pop %v793
    %v795 = vadd.f32 %v794, 1.0
    %v796 = vrcp.pop %v795
    %v797 = vmul.f32 1.0, %v796
    %v798 = vadd.f32 %v501, %v719
    %v799 = vxor.u32 %v798, 2147483648
    %v800 = vmul.f32 %v799, 1.442695
    %v801 = vpow.pop %v800
    %v802 = vadd.f32 %v801, 1.0
    %v803 = vrcp.pop %v802
    %v804 = vmul.f32 1.0, %v803
    %v805 = vadd.f32 %v788, %v350
    %v806 = vmul.f32 %v797, %v805
    %v807 = vadd.f32 %v612, %v806
    %v808 = vtanh.pop %v807
    %v809 = vsub.f32 1.0, %v804
    %v810 = vmul.f32 %v809, %v808
    %v811 = vmul.f32 %v804, 0.0
    %v812 = vadd.f32 %v810, %v811
    %813 = vmatprep.subr.mxu0 %v295
    %814 = vmatpush1.msra.mxu0 %v294
    %815 = vmatprep.subr.mxu0 %v292
    %816 = vmatpush1.msra.mxu0 %v291
    %817 = vmatprep.subr.mxu0 %v289
    %818 = vmatpush1.msra.mxu0 %v288
    %819 = vmatprep.subr.mxu0 %v286
    %820 = vmatpush1.msra.mxu0 %v285
    %821 = vmatprep.subr.mxu0 %v283
    %822 = vmatpush1.msra.mxu0 %v282
    %823 = vmatprep.subr.mxu0 %v280
    %824 = vmatpush1.msra.mxu0 %v279
    %825 = vmatprep.subr.mxu0 %v277
    %826 = vmatpush1.msra.mxu0 %v276
    %827 = vmatprep.subr.mxu0 %v274
    %828 = vmatpush1.msra.mxu0 %v273
    %829 = vmatprep.subr.mxu0 %v271
    %830 = vmatpush1.msra.mxu0 %v270
    %831 = vmatprep.subr.mxu0 %v268
    %832 = vmatpush1.msra.mxu0 %v267
    %833 = vmatprep.subr.mxu0 %v265
    %834 = vmatpush1.msra.mxu0 %v264
    %835 = vmatprep.subr.mxu0 %v262
    %836 = vmatpush1.msra.mxu0 %v261
    %837 = vmatprep.subr.mxu0 %v259
    %838 = vmatpush1.msra.mxu0 %v258
    %839 = vmatprep.subr.mxu0 %v256
    %840 = vmatpush1.msra.mxu0 %v255
    %841 = vmatprep.subr.mxu0 %v253
    %842 = vmatpush1.msra.mxu0 %v252
    %843 = vmatprep.subr.mxu0 %v250
    %844 = vmatpush1.msra.mxu0 %v249
    %845 = vmatprep.subr.mxu0 0.0
    %846 = vmatpush2.msra.mxu0 0.0
    %847 = vmatprep.subr.mxu0 0.0
    %848 = vmatpush2.msra.mxu0 0.0
    %849 = vmatprep.subr.mxu0 0.0
    %850 = vmatpush2.msra.mxu0 0.0
    %851 = vmatprep.subr.mxu0 0.0
    %852 = vmatpush2.msra.mxu0 0.0
    %853 = vmatprep.subr.mxu0 0.0
    %854 = vmatpush2.msra.mxu0 0.0
    %855 = vmatprep.subr.mxu0 0.0
    %856 = vmatpush2.msra.mxu0 0.0
    %857 = vmatprep.subr.mxu0 0.0
    %858 = vmatpush2.msra.mxu0 0.0
    %859 = vmatprep.subr.mxu0 0.0
    %860 = vmatpush2.msra.mxu0 0.0
    %861 = vmatprep.subr.mxu0 0.0
    %862 = vmatpush2.msra.mxu0 0.0
    %863 = vmatprep.subr.mxu0 0.0
    %864 = vmatpush2.msra.mxu0 0.0
    %865 = vmatprep.subr.mxu0 0.0
    %866 = vmatpush2.msra.mxu0 0.0
    %867 = vmatprep.subr.mxu0 0.0
    %868 = vmatpush2.msra.mxu0 0.0
    %869 = vmatprep.subr.mxu0 0.0
    %870 = vmatpush2.msra.mxu0 0.0
    %871 = vmatprep.subr.mxu0 0.0
    %872 = vmatpush2.msra.mxu0 0.0
    %873 = vmatprep.subr.mxu0 0.0
    %874 = vmatpush2.msra.mxu0 0.0
    %875 = vmatprep.subr.mxu0 0.0
    %876 = vmatpush2.msra.mxu0 0.0
    %877 = vmatprep.mubr.f32.mxu0 0.0
    %878 = vmatmul.mubr.f32.gmra.mxu0 %v812
    %v879 = vpop.f32.mrf.mxu0
    %v880 = vadd.f32 %v357, %v879
    %v881 = vpop.f32.mrf.mxu0
    %v882 = vadd.f32 %v361, %v881
    %883 = vdwg.mxu0
    %884 = vmatprep.subr.mxu0 0.0
    %885 = vmatpush1.msra.mxu0 %v296
    %886 = vmatprep.subr.mxu0 0.0
    %887 = vmatpush1.msra.mxu0 %v293
    %888 = vmatprep.subr.mxu0 0.0
    %889 = vmatpush1.msra.mxu0 %v290
    %890 = vmatprep.subr.mxu0 0.0
    %891 = vmatpush1.msra.mxu0 %v287
    %892 = vmatprep.subr.mxu0 0.0
    %893 = vmatpush1.msra.mxu0 %v284
    %894 = vmatprep.subr.mxu0 0.0
    %895 = vmatpush1.msra.mxu0 %v281
    %896 = vmatprep.subr.mxu0 0.0
    %897 = vmatpush1.msra.mxu0 %v278
    %898 = vmatprep.subr.mxu0 0.0
    %899 = vmatpush1.msra.mxu0 %v275
    %900 = vmatprep.subr.mxu0 0.0
    %901 = vmatpush1.msra.mxu0 %v272
    %902 = vmatprep.subr.mxu0 0.0
    %903 = vmatpush1.msra.mxu0 %v269
    %904 = vmatprep.subr.mxu0 0.0
    %905 = vmatpush1.msra.mxu0 %v266
    %906 = vmatprep.subr.mxu0 0.0
    %907 = vmatpush1.msra.mxu0 %v263
    %908 = vmatprep.subr.mxu0 0.0
    %909 = vmatpush1.msra.mxu0 %v260
    %910 = vmatprep.subr.mxu0 0.0
    %911 = vmatpush1.msra.mxu0 %v257
    %912 = vmatprep.subr.mxu0 0.0
    %913 = vmatpush1.msra.mxu0 %v254
    %914 = vmatprep.subr.mxu0 0.0
    %915 = vmatpush1.msra.mxu0 %v251
    %916 = vmatprep.subr.mxu0 0.0
    %917 = vmatpush2.msra.mxu0 0.0
    %918 = vmatprep.subr.mxu0 0.0
    %919 = vmatpush2.msra.mxu0 0.0
    %920 = vmatprep.subr.mxu0 0.0
    %921 = vmatpush2.msra.mxu0 0.0
    %922 = vmatprep.subr.mxu0 0.0
    %923 = vmatpush2.msra.mxu0 0.0
    %924 = vmatprep.subr.mxu0 0.0
    %925 = vmatpush2.msra.mxu0 0.0
    %926 = vmatprep.subr.mxu0 0.0
    %927 = vmatpush2.msra.mxu0 0.0
    %928 = vmatprep.subr.mxu0 0.0
    %929 = vmatpush2.msra.mxu0 0.0
    %930 = vmatprep.subr.mxu0 0.0
    %931 = vmatpush2.msra.mxu0 0.0
    %932 = vmatprep.subr.mxu0 0.0
    %933 = vmatpush2.msra.mxu0 0.0
    %934 = vmatprep.subr.mxu0 0.0
    %935 = vmatpush2.msra.mxu0 0.0
    %936 = vmatprep.subr.mxu0 0.0
    %937 = vmatpush2.msra.mxu0 0.0
    %938 = vmatprep.subr.mxu0 0.0
    %939 = vmatpush2.msra.mxu0 0.0
    %940 = vmatprep.subr.mxu0 0.0
    %941 = vmatpush2.msra.mxu0 0.0
    %942 = vmatprep.subr.mxu0 0.0
    %943 = vmatpush2.msra.mxu0 0.0
    %944 = vmatprep.subr.mxu0 0.0
    %945 = vmatpush2.msra.mxu0 0.0
    %946 = vmatprep.subr.mxu0 0.0
    %947 = vmatpush2.msra.mxu0 0.0
    %948 = vmatprep.mubr.f32.mxu0 0.0
    %949 = vmatmul.mubr.f32.gmra.mxu0 %v812
    %v950 = vpop.f32.mrf.mxu0
    %v951 = vadd.f32 %v365, %v950
    %v952 = vpop.f32.mrf.mxu0
    %953 = vdwg.mxu0
    %954 = vmatprep.subr.mxu0 %v343
    %955 = vmatpush1.msra.mxu0 %v342
    %956 = vmatprep.subr.mxu0 %v340
    %957 = vmatpush1.msra.mxu0 %v339
    %958 = vmatprep.subr.mxu0 %v337
    %959 = vmatpush1.msra.mxu0 %v336
    %960 = vmatprep.subr.mxu0 %v334
    %961 = vmatpush1.msra.mxu0 %v333
    %962 = vmatprep.subr.mxu0 %v331
    %963 = vmatpush1.msra.mxu0 %v330
    %964 = vmatprep.subr.mxu0 %v328
    %965 = vmatpush1.msra.mxu0 %v327
    %966 = vmatprep.subr.mxu0 %v325
    %967 = vmatpush1.msra.mxu0 %v324
    %968 = vmatprep.subr.mxu0 %v322
    %969 = vmatpush1.msra.mxu0 %v321
    %970 = vmatprep.subr.mxu0 %v319
    %971 = vmatpush1.msra.mxu0 %v318
    %972 = vmatprep.subr.mxu0 %v316
    %973 = vmatpush1.msra.mxu0 %v315
    %974 = vmatprep.subr.mxu0 %v313
    %975 = vmatpush1.msra.mxu0 %v312
    %976 = vmatprep.subr.mxu0 %v310
    %977 = vmatpush1.msra.mxu0 %v309
    %978 = vmatprep.subr.mxu0 %v307
    %979 = vmatpush1.msra.mxu0 %v306
    %980 = vmatprep.subr.mxu0 %v304
    %981 = vmatpush1.msra.mxu0 %v303
    %982 = vmatprep.subr.mxu0 %v301
    %983 = vmatpush1.msra.mxu0 %v300
    %984 = vmatprep.subr.mxu0 %v298
    %985 = vmatpush1.msra.mxu0 %v297
    %986 = vmatprep.subr.mxu0 0.0
    %987 = vmatpush2.msra.mxu0 0.0
    %988 = vmatprep.subr.mxu0 0.0
    %989 = vmatpush2.msra.mxu0 0.0
    %990 = vmatprep.subr.mxu0 0.0
    %991 = vmatpush2.msra.mxu0 0.0
    %992 = vmatprep.subr.mxu0 0.0
    %993 = vmatpush2.msra.mxu0 0.0
    %994 = vmatprep.subr.mxu0 0.0
    %995 = vmatpush2.msra.mxu0 0.0
    %996 = vmatprep.subr.mxu0 0.0
    %997 = vmatpush2.msra.mxu0 0.0
    %998 = vmatprep.subr.mxu0 0.0
    %999 = vmatpush2.msra.mxu0 0.0
    %1000 = vmatprep.subr.mxu0 0.0
    %1001 = vmatpush2.msra.mxu0 0.0
    %1002 = vmatprep.subr.mxu0 0.0
    %1003 = vmatpush2.msra.mxu0 0.0
    %1004 = vmatprep.subr.mxu0 0.0
    %1005 = vmatpush2.msra.mxu0 0.0
    %1006 = vmatprep.subr.mxu0 0.0
    %1007 = vmatpush2.msra.mxu0 0.0
    %1008 = vmatprep.subr.mxu0 0.0
    %1009 = vmatpush2.msra.mxu0 0.0
    %1010 = vmatprep.subr.mxu0 0.0
    %1011 = vmatpush2.msra.mxu0 0.0
    %1012 = vmatprep.subr.mxu0 0.0
    %1013 = vmatpush2.msra.mxu0 0.0
    %1014 = vmatprep.subr.mxu0 0.0
    %1015 = vmatpush2.msra.mxu0 0.0
    %1016 = vmatprep.subr.mxu0 0.0
    %1017 = vmatpush2.msra.mxu0 0.0
    %1018 = vmatprep.mubr.f32.mxu0 0.0
    %1019 = vmatmul.mubr.f32.gmra.mxu0 0.0
    %v1020 = vpop.f32.mrf.mxu0
    %v1021 = vadd.f32 0.0, %v1020
    %v1022 = vpop.f32.mrf.mxu0
    %v1023 = vadd.f32 0.0, %v1022
    %1024 = vdwg.mxu0
    %1025 = vmatprep.subr.mxu0 0.0
    %1026 = vmatpush1.msra.mxu0 %v344
    %1027 = vmatprep.subr.mxu0 0.0
    %1028 = vmatpush1.msra.mxu0 %v341
    %1029 = vmatprep.subr.mxu0 0.0
    %1030 = vmatpush1.msra.mxu0 %v338
    %1031 = vmatprep.subr.mxu0 0.0
    %1032 = vmatpush1.msra.mxu0 %v335
    %1033 = vmatprep.subr.mxu0 0.0
    %1034 = vmatpush1.msra.mxu0 %v332
    %1035 = vmatprep.subr.mxu0 0.0
    %1036 = vmatpush1.msra.mxu0 %v329
    %1037 = vmatprep.subr.mxu0 0.0
    %1038 = vmatpush1.msra.mxu0 %v326
    %1039 = vmatprep.subr.mxu0 0.0
    %1040 = vmatpush1.msra.mxu0 %v323
    %1041 = vmatprep.subr.mxu0 0.0
    %1042 = vmatpush1.msra.mxu0 %v320
    %1043 = vmatprep.subr.mxu0 0.0
    %1044 = vmatpush1.msra.mxu0 %v317
    %1045 = vmatprep.subr.mxu0 0.0
    %1046 = vmatpush1.msra.mxu0 %v314
    %1047 = vmatprep.subr.mxu0 0.0
    %1048 = vmatpush1.msra.mxu0 %v311
    %1049 = vmatprep.subr.mxu0 0.0
    %1050 = vmatpush1.msra.mxu0 %v308
    %1051 = vmatprep.subr.mxu0 0.0
    %1052 = vmatpush1.msra.mxu0 %v305
    %1053 = vmatprep.subr.mxu0 0.0
    %1054 = vmatpush1.msra.mxu0 %v302
    %1055 = vmatprep.subr.mxu0 0.0
    %1056 = vmatpush1.msra.mxu0 %v299
    %1057 = vmatprep.subr.mxu0 0.0
    %1058 = vmatpush2.msra.mxu0 0.0
    %1059 = vmatprep.subr.mxu0 0.0
    %1060 = vmatpush2.msra.mxu0 0.0
    %1061 = vmatprep.subr.mxu0 0.0
    %1062 = vmatpush2.msra.mxu0 0.0
    %1063 = vmatprep.subr.mxu0 0.0
    %1064 = vmatpush2.msra.mxu0 0.0
    %1065 = vmatprep.subr.mxu0 0.0
    %1066 = vmatpush2.msra.mxu0 0.0
    %1067 = vmatprep.subr.mxu0 0.0
    %1068 = vmatpush2.msra.mxu0 0.0
    %1069 = vmatprep.subr.mxu0 0.0
    %1070 = vmatpush2.msra.mxu0 0.0
    %1071 = vmatprep.subr.mxu0 0.0
    %1072 = vmatpush2.msra.mxu0 0.0
    %1073 = vmatprep.subr.mxu0 0.0
    %1074 = vmatpush2.msra.mxu0 0.0
    %1075 = vmatprep.subr.mxu0 0.0
    %1076 = vmatpush2.msra.mxu0 0.0
    %1077 = vmatprep.subr.mxu0 0.0
    %1078 = vmatpush2.msra.mxu0 0.0
    %1079 = vmatprep.subr.mxu0 0.0
    %1080 = vmatpush2.msra.mxu0 0.0
    %1081 = vmatprep.subr.mxu0 0.0
    %1082 = vmatpush2.msra.mxu0 0.0
    %1083 = vmatprep.subr.mxu0 0.0
    %1084 = vmatpush2.msra.mxu0 0.0
    %1085 = vmatprep.subr.mxu0 0.0
    %1086 = vmatpush2.msra.mxu0 0.0
    %1087 = vmatprep.subr.mxu0 0.0
    %1088 = vmatpush2.msra.mxu0 0.0
    %1089 = vmatprep.mubr.f32.mxu0 0.0
    %1090 = vmatmul.mubr.f32.gmra.mxu0 0.0
    %v1091 = vpop.f32.mrf.mxu0
    %v1092 = vadd.f32 0.0, %v1091
    %v1093 = vpop.f32.mrf.mxu0
    %1094 = vdwg.mxu0
    %v1095 = vadd.f32 %v880, %v1021
    %v1096 = vxor.u32 %v1095, 2147483648
    %v1097 = vmul.f32 %v1096, 1.442695
    %v1098 = vpow.pop %v1097
    %v1099 = vadd.f32 %v1098, 1.0
    %v1100 = vrcp.pop %v1099
    %v1101 = vmul.f32 1.0, %v1100
    %v1102 = vadd.f32 %v882, %v1023
    %v1103 = vxor.u32 %v1102, 2147483648
    %v1104 = vmul.f32 %v1103, 1.442695
    %v1105 = vpow.pop %v1104
    %v1106 = vadd.f32 %v1105, 1.0
    %v1107 = vrcp.pop %v1106
    %v1108 = vmul.f32 1.0, %v1107
    %v1109 = vadd.f32 %v1092, %v374
    %v1110 = vmul.f32 %v1101, %v1109
    %v1111 = vadd.f32 %v951, %v1110
    %v1112 = vtanh.pop %v1111
    %v1113 = vsub.f32 1.0, %v1108
    %v1114 = vmul.f32 %v1113, %v1112
    %v1115 = vmul.f32 %v1108, 0.0
    %v1116 = vadd.f32 %v1114, %v1115
    %1117 = vmatprep.subr.mxu0 %v247
    %1118 = vmatpush1.msra.mxu0 %v246
    %1119 = vmatprep.subr.mxu0 %v244
    %1120 = vmatpush1.msra.mxu0 %v243
    %1121 = vmatprep.subr.mxu0 %v241
    %1122 = vmatpush1.msra.mxu0 %v240
    %1123 = vmatprep.subr.mxu0 %v238
    %1124 = vmatpush1.msra.mxu0 %v237
    %1125 = vmatprep.subr.mxu0 %v235
    %1126 = vmatpush1.msra.mxu0 %v234
    %1127 = vmatprep.subr.mxu0 %v232
    %1128 = vmatpush1.msra.mxu0 %v231
    %1129 = vmatprep.subr.mxu0 %v229
    %1130 = vmatpush1.msra.mxu0 %v228
    %1131 = vmatprep.subr.mxu0 %v226
    %1132 = vmatpush1.msra.mxu0 %v225
    %1133 = vmatprep.subr.mxu0 %v223
    %1134 = vmatpush1.msra.mxu0 %v222
    %1135 = vmatprep.subr.mxu0 %v220
    %1136 = vmatpush1.msra.mxu0 %v219
    %1137 = vmatprep.subr.mxu0 %v217
    %1138 = vmatpush1.msra.mxu0 %v216
    %1139 = vmatprep.subr.mxu0 %v214
    %1140 = vmatpush1.msra.mxu0 %v213
    %1141 = vmatprep.subr.mxu0 %v211
    %1142 = vmatpush1.msra.mxu0 %v210
    %1143 = vmatprep.subr.mxu0 %v208
    %1144 = vmatpush1.msra.mxu0 %v207
    %1145 = vmatprep.subr.mxu0 %v205
    %1146 = vmatpush1.msra.mxu0 %v204
    %1147 = vmatprep.subr.mxu0 %v202
    %1148 = vmatpush1.msra.mxu0 %v201
    %1149 = vmatprep.subr.mxu0 0.0
    %1150 = vmatpush2.msra.mxu0 0.0
    %1151 = vmatprep.subr.mxu0 0.0
    %1152 = vmatpush2.msra.mxu0 0.0
    %1153 = vmatprep.subr.mxu0 0.0
    %1154 = vmatpush2.msra.mxu0 0.0
    %1155 = vmatprep.subr.mxu0 0.0
    %1156 = vmatpush2.msra.mxu0 0.0
    %1157 = vmatprep.subr.mxu0 0.0
    %1158 = vmatpush2.msra.mxu0 0.0
    %1159 = vmatprep.subr.mxu0 0.0
    %1160 = vmatpush2.msra.mxu0 0.0
    %1161 = vmatprep.subr.mxu0 0.0
    %1162 = vmatpush2.msra.mxu0 0.0
    %1163 = vmatprep.subr.mxu0 0.0
    %1164 = vmatpush2.msra.mxu0 0.0
    %1165 = vmatprep.subr.mxu0 0.0
    %1166 = vmatpush2.msra.mxu0 0.0
    %1167 = vmatprep.subr.mxu0 0.0
    %1168 = vmatpush2.msra.mxu0 0.0
    %1169 = vmatprep.subr.mxu0 0.0
    %1170 = vmatpush2.msra.mxu0 0.0
    %1171 = vmatprep.subr.mxu0 0.0
    %1172 = vmatpush2.msra.mxu0 0.0
    %1173 = vmatprep.subr.mxu0 0.0
    %1174 = vmatpush2.msra.mxu0 0.0
    %1175 = vmatprep.subr.mxu0 0.0
    %1176 = vmatpush2.msra.mxu0 0.0
    %1177 = vmatprep.subr.mxu0 0.0
    %1178 = vmatpush2.msra.mxu0 0.0
    %1179 = vmatprep.subr.mxu0 0.0
    %1180 = vmatpush2.msra.mxu0 0.0
    %1181 = vmatprep.mubr.f32.mxu0 0.0
    %1182 = vmatmul.mubr.f32.gmra.mxu0 %v812
    %v1183 = vpop.f32.mrf.mxu0
    %v1184 = vadd.f32 0.0, %v1183
    %v1185 = vpop.f32.mrf.mxu0
    %v1186 = vadd.f32 0.0, %v1185
    %1187 = vdwg.mxu0
    %1188 = vmatprep.subr.mxu0 0.0
    %1189 = vmatpush1.msra.mxu0 %v248
    %1190 = vmatprep.subr.mxu0 0.0
    %1191 = vmatpush1.msra.mxu0 %v245
    %1192 = vmatprep.subr.mxu0 0.0
    %1193 = vmatpush1.msra.mxu0 %v242
    %1194 = vmatprep.subr.mxu0 0.0
    %1195 = vmatpush1.msra.mxu0 %v239
    %1196 = vmatprep.subr.mxu0 0.0
    %1197 = vmatpush1.msra.mxu0 %v236
    %1198 = vmatprep.subr.mxu0 0.0
    %1199 = vmatpush1.msra.mxu0 %v233
    %1200 = vmatprep.subr.mxu0 0.0
    %1201 = vmatpush1.msra.mxu0 %v230
    %1202 = vmatprep.subr.mxu0 0.0
    %1203 = vmatpush1.msra.mxu0 %v227
    %1204 = vmatprep.subr.mxu0 0.0
    %1205 = vmatpush1.msra.mxu0 %v224
    %1206 = vmatprep.subr.mxu0 0.0
    %1207 = vmatpush1.msra.mxu0 %v221
    %1208 = vmatprep.subr.mxu0 0.0
    %1209 = vmatpush1.msra.mxu0 %v218
    %1210 = vmatprep.subr.mxu0 0.0
    %1211 = vmatpush1.msra.mxu0 %v215
    %1212 = vmatprep.subr.mxu0 0.0
    %1213 = vmatpush1.msra.mxu0 %v212
    %1214 = vmatprep.subr.mxu0 0.0
    %1215 = vmatpush1.msra.mxu0 %v209
    %1216 = vmatprep.subr.mxu0 0.0
    %1217 = vmatpush1.msra.mxu0 %v206
    %1218 = vmatprep.subr.mxu0 0.0
    %1219 = vmatpush1.msra.mxu0 %v203
    %1220 = vmatprep.subr.mxu0 0.0
    %1221 = vmatpush2.msra.mxu0 0.0
    %1222 = vmatprep.subr.mxu0 0.0
    %1223 = vmatpush2.msra.mxu0 0.0
    %1224 = vmatprep.subr.mxu0 0.0
    %1225 = vmatpush2.msra.mxu0 0.0
    %1226 = vmatprep.subr.mxu0 0.0
    %1227 = vmatpush2.msra.mxu0 0.0
    %1228 = vmatprep.subr.mxu0 0.0
    %1229 = vmatpush2.msra.mxu0 0.0
    %1230 = vmatprep.subr.mxu0 0.0
    %1231 = vmatpush2.msra.mxu0 0.0
    %1232 = vmatprep.subr.mxu0 0.0
    %1233 = vmatpush2.msra.mxu0 0.0
    %1234 = vmatprep.subr.mxu0 0.0
    %1235 = vmatpush2.msra.mxu0 0.0
    %1236 = vmatprep.subr.mxu0 0.0
    %1237 = vmatpush2.msra.mxu0 0.0
    %1238 = vmatprep.subr.mxu0 0.0
    %1239 = vmatpush2.msra.mxu0 0.0
    %1240 = vmatprep.subr.mxu0 0.0
    %1241 = vmatpush2.msra.mxu0 0.0
    %1242 = vmatprep.subr.mxu0 0.0
    %1243 = vmatpush2.msra.mxu0 0.0
    %1244 = vmatprep.subr.mxu0 0.0
    %1245 = vmatpush2.msra.mxu0 0.0
    %1246 = vmatprep.subr.mxu0 0.0
    %1247 = vmatpush2.msra.mxu0 0.0
    %1248 = vmatprep.subr.mxu0 0.0
    %1249 = vmatpush2.msra.mxu0 0.0
    %1250 = vmatprep.subr.mxu0 0.0
    %1251 = vmatpush2.msra.mxu0 0.0
    %1252 = vmatprep.mubr.f32.mxu0 0.0
    %1253 = vmatmul.mubr.f32.gmra.mxu0 %v812
    %v1254 = vpop.f32.mrf.mxu0
    %v1255 = vadd.f32 0.0, %v1254
    %v1256 = vpop.f32.mrf.mxu0
    %1257 = vdwg.mxu0
    %v1258 = vadd.f32 %v505, %v1184
    %v1259 = vxor.u32 %v1258, 2147483648
    %v1260 = vmul.f32 %v1259, 1.442695
    %v1261 = vpow.pop %v1260
    %v1262 = vadd.f32 %v1261, 1.0
    %v1263 = vrcp.pop %v1262
    %v1264 = vmul.f32 1.0, %v1263
    %v1265 = vadd.f32 %v507, %v1186
    %v1266 = vxor.u32 %v1265, 2147483648
    %v1267 = vmul.f32 %v1266, 1.442695
    %v1268 = vpow.pop %v1267
    %v1269 = vadd.f32 %v1268, 1.0
    %v1270 = vrcp.pop %v1269
    %v1271 = vmul.f32 1.0, %v1270
    %v1272 = vadd.f32 %v1255, %v350
    %v1273 = vmul.f32 %v1264, %v1272
    %v1274 = vadd.f32 %v617, %v1273
    %v1275 = vtanh.pop %v1274
    %v1276 = vsub.f32 1.0, %v1271
    %v1277 = vmul.f32 %v1276, %v1275
    %v1278 = vmul.f32 %v1271, %v812
    %v1279 = vadd.f32 %v1277, %v1278
    %1280 = vmatprep.subr.mxu0 %v295
    %1281 = vmatpush1.msra.mxu0 %v294
    %1282 = vmatprep.subr.mxu0 %v292
    %1283 = vmatpush1.msra.mxu0 %v291
    %1284 = vmatprep.subr.mxu0 %v289
    %1285 = vmatpush1.msra.mxu0 %v288
    %1286 = vmatprep.subr.mxu0 %v286
    %1287 = vmatpush1.msra.mxu0 %v285
    %1288 = vmatprep.subr.mxu0 %v283
    %1289 = vmatpush1.msra.mxu0 %v282
    %1290 = vmatprep.subr.mxu0 %v280
    %1291 = vmatpush1.msra.mxu0 %v279
    %1292 = vmatprep.subr.mxu0 %v277
    %1293 = vmatpush1.msra.mxu0 %v276
    %1294 = vmatprep.subr.mxu0 %v274
    %1295 = vmatpush1.msra.mxu0 %v273
    %1296 = vmatprep.subr.mxu0 %v271
    %1297 = vmatpush1.msra.mxu0 %v270
    %1298 = vmatprep.subr.mxu0 %v268
    %1299 = vmatpush1.msra.mxu0 %v267
    %1300 = vmatprep.subr.mxu0 %v265
    %1301 = vmatpush1.msra.mxu0 %v264
    %1302 = vmatprep.subr.mxu0 %v262
    %1303 = vmatpush1.msra.mxu0 %v261
    %1304 = vmatprep.subr.mxu0 %v259
    %1305 = vmatpush1.msra.mxu0 %v258
    %1306 = vmatprep.subr.mxu0 %v256
    %1307 = vmatpush1.msra.mxu0 %v255
    %1308 = vmatprep.subr.mxu0 %v253
    %1309 = vmatpush1.msra.mxu0 %v252
    %1310 = vmatprep.subr.mxu0 %v250
    %1311 = vmatpush1.msra.mxu0 %v249
    %1312 = vmatprep.subr.mxu0 0.0
    %1313 = vmatpush2.msra.mxu0 0.0
    %1314 = vmatprep.subr.mxu0 0.0
    %1315 = vmatpush2.msra.mxu0 0.0
    %1316 = vmatprep.subr.mxu0 0.0
    %1317 = vmatpush2.msra.mxu0 0.0
    %1318 = vmatprep.subr.mxu0 0.0
    %1319 = vmatpush2.msra.mxu0 0.0
    %1320 = vmatprep.subr.mxu0 0.0
    %1321 = vmatpush2.msra.mxu0 0.0
    %1322 = vmatprep.subr.mxu0 0.0
    %1323 = vmatpush2.msra.mxu0 0.0
    %1324 = vmatprep.subr.mxu0 0.0
    %1325 = vmatpush2.msra.mxu0 0.0
    %1326 = vmatprep.subr.mxu0 0.0
    %1327 = vmatpush2.msra.mxu0 0.0
    %1328 = vmatprep.subr.mxu0 0.0
    %1329 = vmatpush2.msra.mxu0 0.0
    %1330 = vmatprep.subr.mxu0 0.0
    %1331 = vmatpush2.msra.mxu0 0.0
    %1332 = vmatprep.subr.mxu0 0.0
    %1333 = vmatpush2.msra.mxu0 0.0
    %1334 = vmatprep.subr.mxu0 0.0
    %1335 = vmatpush2.msra.mxu0 0.0
    %1336 = vmatprep.subr.mxu0 0.0
    %1337 = vmatpush2.msra.mxu0 0.0
    %1338 = vmatprep.subr.mxu0 0.0
    %1339 = vmatpush2.msra.mxu0 0.0
    %1340 = vmatprep.subr.mxu0 0.0
    %1341 = vmatpush2.msra.mxu0 0.0
    %1342 = vmatprep.subr.mxu0 0.0
    %1343 = vmatpush2.msra.mxu0 0.0
    %1344 = vmatprep.mubr.f32.mxu0 0.0
    %1345 = vmatmul.mubr.f32.gmra.mxu0 %v1279
    %v1346 = vpop.f32.mrf.mxu0
    %v1347 = vadd.f32 %v357, %v1346
    %v1348 = vpop.f32.mrf.mxu0
    %v1349 = vadd.f32 %v361, %v1348
    %1350 = vdwg.mxu0
    %1351 = vmatprep.subr.mxu0 0.0
    %1352 = vmatpush1.msra.mxu0 %v296
    %1353 = vmatprep.subr.mxu0 0.0
    %1354 = vmatpush1.msra.mxu0 %v293
    %1355 = vmatprep.subr.mxu0 0.0
    %1356 = vmatpush1.msra.mxu0 %v290
    %1357 = vmatprep.subr.mxu0 0.0
    %1358 = vmatpush1.msra.mxu0 %v287
    %1359 = vmatprep.subr.mxu0 0.0
    %1360 = vmatpush1.msra.mxu0 %v284
    %1361 = vmatprep.subr.mxu0 0.0
    %1362 = vmatpush1.msra.mxu0 %v281
    %1363 = vmatprep.subr.mxu0 0.0
    %1364 = vmatpush1.msra.mxu0 %v278
    %1365 = vmatprep.subr.mxu0 0.0
    %1366 = vmatpush1.msra.mxu0 %v275
    %1367 = vmatprep.subr.mxu0 0.0
    %1368 = vmatpush1.msra.mxu0 %v272
    %1369 = vmatprep.subr.mxu0 0.0
    %1370 = vmatpush1.msra.mxu0 %v269
    %1371 = vmatprep.subr.mxu0 0.0
    %1372 = vmatpush1.msra.mxu0 %v266
    %1373 = vmatprep.subr.mxu0 0.0
    %1374 = vmatpush1.msra.mxu0 %v263
    %1375 = vmatprep.subr.mxu0 0.0
    %1376 = vmatpush1.msra.mxu0 %v260
    %1377 = vmatprep.subr.mxu0 0.0
    %1378 = vmatpush1.msra.mxu0 %v257
    %1379 = vmatprep.subr.mxu0 0.0
    %1380 = vmatpush1.msra.mxu0 %v254
    %1381 = vmatprep.subr.mxu0 0.0
    %1382 = vmatpush1.msra.mxu0 %v251
    %1383 = vmatprep.subr.mxu0 0.0
    %1384 = vmatpush2.msra.mxu0 0.0
    %1385 = vmatprep.subr.mxu0 0.0
    %1386 = vmatpush2.msra.mxu0 0.0
    %1387 = vmatprep.subr.mxu0 0.0
    %1388 = vmatpush2.msra.mxu0 0.0
    %1389 = vmatprep.subr.mxu0 0.0
    %1390 = vmatpush2.msra.mxu0 0.0
    %1391 = vmatprep.subr.mxu0 0.0
    %1392 = vmatpush2.msra.mxu0 0.0
    %1393 = vmatprep.subr.mxu0 0.0
    %1394 = vmatpush2.msra.mxu0 0.0
    %1395 = vmatprep.subr.mxu0 0.0
    %1396 = vmatpush2.msra.mxu0 0.0
    %1397 = vmatprep.subr.mxu0 0.0
    %1398 = vmatpush2.msra.mxu0 0.0
    %1399 = vmatprep.subr.mxu0 0.0
    %1400 = vmatpush2.msra.mxu0 0.0
    %1401 = vmatprep.subr.mxu0 0.0
    %1402 = vmatpush2.msra.mxu0 0.0
    %1403 = vmatprep.subr.mxu0 0.0
    %1404 = vmatpush2.msra.mxu0 0.0
    %1405 = vmatprep.subr.mxu0 0.0
    %1406 = vmatpush2.msra.mxu0 0.0
    %1407 = vmatprep.subr.mxu0 0.0
    %1408 = vmatpush2.msra.mxu0 0.0
    %1409 = vmatprep.subr.mxu0 0.0
    %1410 = vmatpush2.msra.mxu0 0.0
    %1411 = vmatprep.subr.mxu0 0.0
    %1412 = vmatpush2.msra.mxu0 0.0
    %1413 = vmatprep.subr.mxu0 0.0
    %1414 = vmatpush2.msra.mxu0 0.0
    %1415 = vmatprep.mubr.f32.mxu0 0.0
    %1416 = vmatmul.mubr.f32.gmra.mxu0 %v1279
    %v1417 = vpop.f32.mrf.mxu0
    %v1418 = vadd.f32 %v365, %v1417
    %v1419 = vpop.f32.mrf.mxu0
    %1420 = vdwg.mxu0
    %1421 = vmatprep.subr.mxu0 %v343
    %1422 = vmatpush1.msra.mxu0 %v342
    %1423 = vmatprep.subr.mxu0 %v340
    %1424 = vmatpush1.msra.mxu0 %v339
    %1425 = vmatprep.subr.mxu0 %v337
    %1426 = vmatpush1.msra.mxu0 %v336
    %1427 = vmatprep.subr.mxu0 %v334
    %1428 = vmatpush1.msra.mxu0 %v333
    %1429 = vmatprep.subr.mxu0 %v331
    %1430 = vmatpush1.msra.mxu0 %v330
    %1431 = vmatprep.subr.mxu0 %v328
    %1432 = vmatpush1.msra.mxu0 %v327
    %1433 = vmatprep.subr.mxu0 %v325
    %1434 = vmatpush1.msra.mxu0 %v324
    %1435 = vmatprep.subr.mxu0 %v322
    %1436 = vmatpush1.msra.mxu0 %v321
    %1437 = vmatprep.subr.mxu0 %v319
    %1438 = vmatpush1.msra.mxu0 %v318
    %1439 = vmatprep.subr.mxu0 %v316
    %1440 = vmatpush1.msra.mxu0 %v315
    %1441 = vmatprep.subr.mxu0 %v313
    %1442 = vmatpush1.msra.mxu0 %v312
    %1443 = vmatprep.subr.mxu0 %v310
    %1444 = vmatpush1.msra.mxu0 %v309
    %1445 = vmatprep.subr.mxu0 %v307
    %1446 = vmatpush1.msra.mxu0 %v306
    %1447 = vmatprep.subr.mxu0 %v304
    %1448 = vmatpush1.msra.mxu0 %v303
    %1449 = vmatprep.subr.mxu0 %v301
    %1450 = vmatpush1.msra.mxu0 %v300
    %1451 = vmatprep.subr.mxu0 %v298
    %1452 = vmatpush1.msra.mxu0 %v297
    %1453 = vmatprep.subr.mxu0 0.0
    %1454 = vmatpush2.msra.mxu0 0.0
    %1455 = vmatprep.subr.mxu0 0.0
    %1456 = vmatpush2.msra.mxu0 0.0
    %1457 = vmatprep.subr.mxu0 0.0
    %1458 = vmatpush2.msra.mxu0 0.0
    %1459 = vmatprep.subr.mxu0 0.0
    %1460 = vmatpush2.msra.mxu0 0.0
    %1461 = vmatprep.subr.mxu0 0.0
    %1462 = vmatpush2.msra.mxu0 0.0
    %1463 = vmatprep.subr.mxu0 0.0
    %1464 = vmatpush2.msra.mxu0 0.0
    %1465 = vmatprep.subr.mxu0 0.0
    %1466 = vmatpush2.msra.mxu0 0.0
    %1467 = vmatprep.subr.mxu0 0.0
    %1468 = vmatpush2.msra.mxu0 0.0
    %1469 = vmatprep.subr.mxu0 0.0
    %1470 = vmatpush2.msra.mxu0 0.0
    %1471 = vmatprep.subr.mxu0 0.0
    %1472 = vmatpush2.msra.mxu0 0.0
    %1473 = vmatprep.subr.mxu0 0.0
    %1474 = vmatpush2.msra.mxu0 0.0
    %1475 = vmatprep.subr.mxu0 0.0
    %1476 = vmatpush2.msra.mxu0 0.0
    %1477 = vmatprep.subr.mxu0 0.0
    %1478 = vmatpush2.msra.mxu0 0.0
    %1479 = vmatprep.subr.mxu0 0.0
    %1480 = vmatpush2.msra.mxu0 0.0
    %1481 = vmatprep.subr.mxu0 0.0
    %1482 = vmatpush2.msra.mxu0 0.0
    %1483 = vmatprep.subr.mxu0 0.0
    %1484 = vmatpush2.msra.mxu0 0.0
    %1485 = vmatprep.mubr.f32.mxu0 0.0
    %1486 = vmatmul.mubr.f32.gmra.mxu0 %v1116
    %v1487 = vpop.f32.mrf.mxu0
    %v1488 = vadd.f32 0.0, %v1487
    %v1489 = vpop.f32.mrf.mxu0
    %v1490 = vadd.f32 0.0, %v1489
    %1491 = vdwg.mxu0
    %1492 = vmatprep.subr.mxu0 0.0
    %1493 = vmatpush1.msra.mxu0 %v344
    %1494 = vmatprep.subr.mxu0 0.0
    %1495 = vmatpush1.msra.mxu0 %v341
    %1496 = vmatprep.subr.mxu0 0.0
    %1497 = vmatpush1.msra.mxu0 %v338
    %1498 = vmatprep.subr.mxu0 0.0
    %1499 = vmatpush1.msra.mxu0 %v335
    %1500 = vmatprep.subr.mxu0 0.0
    %1501 = vmatpush1.msra.mxu0 %v332
    %1502 = vmatprep.subr.mxu0 0.0
    %1503 = vmatpush1.msra.mxu0 %v329
    %1504 = vmatprep.subr.mxu0 0.0
    %1505 = vmatpush1.msra.mxu0 %v326
    %1506 = vmatprep.subr.mxu0 0.0
    %1507 = vmatpush1.msra.mxu0 %v323
    %1508 = vmatprep.subr.mxu0 0.0
    %1509 = vmatpush1.msra.mxu0 %v320
    %1510 = vmatprep.subr.mxu0 0.0
    %1511 = vmatpush1.msra.mxu0 %v317
    %1512 = vmatprep.subr.mxu0 0.0
    %1513 = vmatpush1.msra.mxu0 %v314
    %1514 = vmatprep.subr.mxu0 0.0
    %1515 = vmatpush1.msra.mxu0 %v311
    %1516 = vmatprep.subr.mxu0 0.0
    %1517 = vmatpush1.msra.mxu0 %v308
    %1518 = vmatprep.subr.mxu0 0.0
    %1519 = vmatpush1.msra.mxu0 %v305
    %1520 = vmatprep.subr.mxu0 0.0
    %1521 = vmatpush1.msra.mxu0 %v302
    %1522 = vmatprep.subr.mxu0 0.0
    %1523 = vmatpush1.msra.mxu0 %v299
    %1524 = vmatprep.subr.mxu0 0.0
    %1525 = vmatpush2.msra.mxu0 0.0
    %1526 = vmatprep.subr.mxu0 0.0
    %1527 = vmatpush2.msra.mxu0 0.0
    %1528 = vmatprep.subr.mxu0 0.0
    %1529 = vmatpush2.msra.mxu0 0.0
    %1530 = vmatprep.subr.mxu0 0.0
    %1531 = vmatpush2.msra.mxu0 0.0
    %1532 = vmatprep.subr.mxu0 0.0
    %1533 = vmatpush2.msra.mxu0 0.0
    %1534 = vmatprep.subr.mxu0 0.0
    %1535 = vmatpush2.msra.mxu0 0.0
    %1536 = vmatprep.subr.mxu0 0.0
    %1537 = vmatpush2.msra.mxu0 0.0
    %1538 = vmatprep.subr.mxu0 0.0
    %1539 = vmatpush2.msra.mxu0 0.0
    %1540 = vmatprep.subr.mxu0 0.0
    %1541 = vmatpush2.msra.mxu0 0.0
    %1542 = vmatprep.subr.mxu0 0.0
    %1543 = vmatpush2.msra.mxu0 0.0
    %1544 = vmatprep.subr.mxu0 0.0
    %1545 = vmatpush2.msra.mxu0 0.0
    %1546 = vmatprep.subr.mxu0 0.0
    %1547 = vmatpush2.msra.mxu0 0.0
    %1548 = vmatprep.subr.mxu0 0.0
    %1549 = vmatpush2.msra.mxu0 0.0
    %1550 = vmatprep.subr.mxu0 0.0
    %1551 = vmatpush2.msra.mxu0 0.0
    %1552 = vmatprep.subr.mxu0 0.0
    %1553 = vmatpush2.msra.mxu0 0.0
    %1554 = vmatprep.subr.mxu0 0.0
    %1555 = vmatpush2.msra.mxu0 0.0
    %1556 = vmatprep.mubr.f32.mxu0 0.0
    %1557 = vmatmul.mubr.f32.gmra.mxu0 %v1116
    %v1558 = vpop.f32.mrf.mxu0
    %v1559 = vadd.f32 0.0, %v1558
    %v1560 = vpop.f32.mrf.mxu0
    %1561 = vdwg.mxu0
    %v1562 = vadd.f32 %v1347, %v1488
    %v1563 = vxor.u32 %v1562, 2147483648
    %v1564 = vmul.f32 %v1563, 1.442695
    %v1565 = vpow.pop %v1564
    %v1566 = vadd.f32 %v1565, 1.0
    %v1567 = vrcp.pop %v1566
    %v1568 = vmul.f32 1.0, %v1567
    %v1569 = vadd.f32 %v1349, %v1490
    %v1570 = vxor.u32 %v1569, 2147483648
    %v1571 = vmul.f32 %v1570, 1.442695
    %v1572 = vpow.pop %v1571
    %v1573 = vadd.f32 %v1572, 1.0
    %v1574 = vrcp.pop %v1573
    %v1575 = vmul.f32 1.0, %v1574
    %v1576 = vadd.f32 %v1559, %v374
    %v1577 = vmul.f32 %v1568, %v1576
    %v1578 = vadd.f32 %v1418, %v1577
    %v1579 = vtanh.pop %v1578
    %v1580 = vsub.f32 1.0, %v1575
    %v1581 = vmul.f32 %v1580, %v1579
    %v1582 = vmul.f32 %v1575, %v1116
    %v1583 = vadd.f32 %v1581, %v1582
    %1584 = vmatprep.subr.mxu0 %v247
    %1585 = vmatpush1.msra.mxu0 %v246
    %1586 = vmatprep.subr.mxu0 %v244
    %1587 = vmatpush1.msra.mxu0 %v243
    %1588 = vmatprep.subr.mxu0 %v241
    %1589 = vmatpush1.msra.mxu0 %v240
    %1590 = vmatprep.subr.mxu0 %v238
    %1591 = vmatpush1.msra.mxu0 %v237
    %1592 = vmatprep.subr.mxu0 %v235
    %1593 = vmatpush1.msra.mxu0 %v234
    %1594 = vmatprep.subr.mxu0 %v232
    %1595 = vmatpush1.msra.mxu0 %v231
    %1596 = vmatprep.subr.mxu0 %v229
    %1597 = vmatpush1.msra.mxu0 %v228
    %1598 = vmatprep.subr.mxu0 %v226
    %1599 = vmatpush1.msra.mxu0 %v225
    %1600 = vmatprep.subr.mxu0 %v223
    %1601 = vmatpush1.msra.mxu0 %v222
    %1602 = vmatprep.subr.mxu0 %v220
    %1603 = vmatpush1.msra.mxu0 %v219
    %1604 = vmatprep.subr.mxu0 %v217
    %1605 = vmatpush1.msra.mxu0 %v216
    %1606 = vmatprep.subr.mxu0 %v214
    %1607 = vmatpush1.msra.mxu0 %v213
    %1608 = vmatprep.subr.mxu0 %v211
    %1609 = vmatpush1.msra.mxu0 %v210
    %1610 = vmatprep.subr.mxu0 %v208
    %1611 = vmatpush1.msra.mxu0 %v207
    %1612 = vmatprep.subr.mxu0 %v205
    %1613 = vmatpush1.msra.mxu0 %v204
    %1614 = vmatprep.subr.mxu0 %v202
    %1615 = vmatpush1.msra.mxu0 %v201
    %1616 = vmatprep.subr.mxu0 0.0
    %1617 = vmatpush2.msra.mxu0 0.0
    %1618 = vmatprep.subr.mxu0 0.0
    %1619 = vmatpush2.msra.mxu0 0.0
    %1620 = vmatprep.subr.mxu0 0.0
    %1621 = vmatpush2.msra.mxu0 0.0
    %1622 = vmatprep.subr.mxu0 0.0
    %1623 = vmatpush2.msra.mxu0 0.0
    %1624 = vmatprep.subr.mxu0 0.0
    %1625 = vmatpush2.msra.mxu0 0.0
    %1626 = vmatprep.subr.mxu0 0.0
    %1627 = vmatpush2.msra.mxu0 0.0
    %1628 = vmatprep.subr.mxu0 0.0
    %1629 = vmatpush2.msra.mxu0 0.0
    %1630 = vmatprep.subr.mxu0 0.0
    %1631 = vmatpush2.msra.mxu0 0.0
    %1632 = vmatprep.subr.mxu0 0.0
    %1633 = vmatpush2.msra.mxu0 0.0
    %1634 = vmatprep.subr.mxu0 0.0
    %1635 = vmatpush2.msra.mxu0 0.0
    %1636 = vmatprep.subr.mxu0 0.0
    %1637 = vmatpush2.msra.mxu0 0.0
    %1638 = vmatprep.subr.mxu0 0.0
    %1639 = vmatpush2.msra.mxu0 0.0
    %1640 = vmatprep.subr.mxu0 0.0
    %1641 = vmatpush2.msra.mxu0 0.0
    %1642 = vmatprep.subr.mxu0 0.0
    %1643 = vmatpush2.msra.mxu0 0.0
    %1644 = vmatprep.subr.mxu0 0.0
    %1645 = vmatpush2.msra.mxu0 0.0
    %1646 = vmatprep.subr.mxu0 0.0
    %1647 = vmatpush2.msra.mxu0 0.0
    %1648 = vmatprep.mubr.f32.mxu0 0.0
    %1649 = vmatmul.mubr.f32.gmra.mxu0 %v1279
    %v1650 = vpop.f32.mrf.mxu0
    %v1651 = vadd.f32 0.0, %v1650
    %v1652 = vpop.f32.mrf.mxu0
    %v1653 = vadd.f32 0.0, %v1652
    %1654 = vdwg.mxu0
    %1655 = vmatprep.subr.mxu0 0.0
    %1656 = vmatpush1.msra.mxu0 %v248
    %1657 = vmatprep.subr.mxu0 0.0
    %1658 = vmatpush1.msra.mxu0 %v245
    %1659 = vmatprep.subr.mxu0 0.0
    %1660 = vmatpush1.msra.mxu0 %v242
    %1661 = vmatprep.subr.mxu0 0.0
    %1662 = vmatpush1.msra.mxu0 %v239
    %1663 = vmatprep.subr.mxu0 0.0
    %1664 = vmatpush1.msra.mxu0 %v236
    %1665 = vmatprep.subr.mxu0 0.0
    %1666 = vmatpush1.msra.mxu0 %v233
    %1667 = vmatprep.subr.mxu0 0.0
    %1668 = vmatpush1.msra.mxu0 %v230
    %1669 = vmatprep.subr.mxu0 0.0
    %1670 = vmatpush1.msra.mxu0 %v227
    %1671 = vmatprep.subr.mxu0 0.0
    %1672 = vmatpush1.msra.mxu0 %v224
    %1673 = vmatprep.subr.mxu0 0.0
    %1674 = vmatpush1.msra.mxu0 %v221
    %1675 = vmatprep.subr.mxu0 0.0
    %1676 = vmatpush1.msra.mxu0 %v218
    %1677 = vmatprep.subr.mxu0 0.0
    %1678 = vmatpush1.msra.mxu0 %v215
    %1679 = vmatprep.subr.mxu0 0.0
    %1680 = vmatpush1.msra.mxu0 %v212
    %1681 = vmatprep.subr.mxu0 0.0
    %1682 = vmatpush1.msra.mxu0 %v209
    %1683 = vmatprep.subr.mxu0 0.0
    %1684 = vmatpush1.msra.mxu0 %v206
    %1685 = vmatprep.subr.mxu0 0.0
    %1686 = vmatpush1.msra.mxu0 %v203
    %1687 = vmatprep.subr.mxu0 0.0
    %1688 = vmatpush2.msra.mxu0 0.0
    %1689 = vmatprep.subr.mxu0 0.0
    %1690 = vmatpush2.msra.mxu0 0.0
    %1691 = vmatprep.subr.mxu0 0.0
    %1692 = vmatpush2.msra.mxu0 0.0
    %1693 = vmatprep.subr.mxu0 0.0
    %1694 = vmatpush2.msra.mxu0 0.0
    %1695 = vmatprep.subr.mxu0 0.0
    %1696 = vmatpush2.msra.mxu0 0.0
    %1697 = vmatprep.subr.mxu0 0.0
    %1698 = vmatpush2.msra.mxu0 0.0
    %1699 = vmatprep.subr.mxu0 0.0
    %1700 = vmatpush2.msra.mxu0 0.0
    %1701 = vmatprep.subr.mxu0 0.0
    %1702 = vmatpush2.msra.mxu0 0.0
    %1703 = vmatprep.subr.mxu0 0.0
    %1704 = vmatpush2.msra.mxu0 0.0
    %1705 = vmatprep.subr.mxu0 0.0
    %1706 = vmatpush2.msra.mxu0 0.0
    %1707 = vmatprep.subr.mxu0 0.0
    %1708 = vmatpush2.msra.mxu0 0.0
    %1709 = vmatprep.subr.mxu0 0.0
    %1710 = vmatpush2.msra.mxu0 0.0
    %1711 = vmatprep.subr.mxu0 0.0
    %1712 = vmatpush2.msra.mxu0 0.0
    %1713 = vmatprep.subr.mxu0 0.0
    %1714 = vmatpush2.msra.mxu0 0.0
    %1715 = vmatprep.subr.mxu0 0.0
    %1716 = vmatpush2.msra.mxu0 0.0
    %1717 = vmatprep.subr.mxu0 0.0
    %1718 = vmatpush2.msra.mxu0 0.0
    %1719 = vmatprep.mubr.f32.mxu0 0.0
    %1720 = vmatmul.mubr.f32.gmra.mxu0 %v1279
    %v1721 = vpop.f32.mrf.mxu0
    %v1722 = vadd.f32 0.0, %v1721
    %v1723 = vpop.f32.mrf.mxu0
    %1724 = vdwg.mxu0
    %v1725 = vadd.f32 %v511, %v1651
    %v1726 = vxor.u32 %v1725, 2147483648
    %v1727 = vmul.f32 %v1726, 1.442695
    %v1728 = vpow.pop %v1727
    %v1729 = vadd.f32 %v1728, 1.0
    %v1730 = vrcp.pop %v1729
    %v1731 = vmul.f32 1.0, %v1730
    %v1732 = vadd.f32 %v513, %v1653
    %v1733 = vxor.u32 %v1732, 2147483648
    %v1734 = vmul.f32 %v1733, 1.442695
    %v1735 = vpow.pop %v1734
    %v1736 = vadd.f32 %v1735, 1.0
    %v1737 = vrcp.pop %v1736
    %v1738 = vmul.f32 1.0, %v1737
    %v1739 = vadd.f32 %v1722, %v350
    %v1740 = vmul.f32 %v1731, %v1739
    %v1741 = vadd.f32 %v622, %v1740
    %v1742 = vtanh.pop %v1741
    %v1743 = vsub.f32 1.0, %v1738
    %v1744 = vmul.f32 %v1743, %v1742
    %v1745 = vmul.f32 %v1738, %v1279
    %v1746 = vadd.f32 %v1744, %v1745
    %1747 = vmatprep.subr.mxu0 %v295
    %1748 = vmatpush1.msra.mxu0 %v294
    %1749 = vmatprep.subr.mxu0 %v292
    %1750 = vmatpush1.msra.mxu0 %v291
    %1751 = vmatprep.subr.mxu0 %v289
    %1752 = vmatpush1.msra.mxu0 %v288
    %1753 = vmatprep.subr.mxu0 %v286
    %1754 = vmatpush1.msra.mxu0 %v285
    %1755 = vmatprep.subr.mxu0 %v283
    %1756 = vmatpush1.msra.mxu0 %v282
    %1757 = vmatprep.subr.mxu0 %v280
    %1758 = vmatpush1.msra.mxu0 %v279
    %1759 = vmatprep.subr.mxu0 %v277
    %1760 = vmatpush1.msra.mxu0 %v276
    %1761 = vmatprep.subr.mxu0 %v274
    %1762 = vmatpush1.msra.mxu0 %v273
    %1763 = vmatprep.subr.mxu0 %v271
    %1764 = vmatpush1.msra.mxu0 %v270
    %1765 = vmatprep.subr.mxu0 %v268
    %1766 = vmatpush1.msra.mxu0 %v267
    %1767 = vmatprep.subr.mxu0 %v265
    %1768 = vmatpush1.msra.mxu0 %v264
    %1769 = vmatprep.subr.mxu0 %v262
    %1770 = vmatpush1.msra.mxu0 %v261
    %1771 = vmatprep.subr.mxu0 %v259
    %1772 = vmatpush1.msra.mxu0 %v258
    %1773 = vmatprep.subr.mxu0 %v256
    %1774 = vmatpush1.msra.mxu0 %v255
    %1775 = vmatprep.subr.mxu0 %v253
    %1776 = vmatpush1.msra.mxu0 %v252
    %1777 = vmatprep.subr.mxu0 %v250
    %1778 = vmatpush1.msra.mxu0 %v249
    %1779 = vmatprep.subr.mxu0 0.0
    %1780 = vmatpush2.msra.mxu0 0.0
    %1781 = vmatprep.subr.mxu0 0.0
    %1782 = vmatpush2.msra.mxu0 0.0
    %1783 = vmatprep.subr.mxu0 0.0
    %1784 = vmatpush2.msra.mxu0 0.0
    %1785 = vmatprep.subr.mxu0 0.0
    %1786 = vmatpush2.msra.mxu0 0.0
    %1787 = vmatprep.subr.mxu0 0.0
    %1788 = vmatpush2.msra.mxu0 0.0
    %1789 = vmatprep.subr.mxu0 0.0
    %1790 = vmatpush2.msra.mxu0 0.0
    %1791 = vmatprep.subr.mxu0 0.0
    %1792 = vmatpush2.msra.mxu0 0.0
    %1793 = vmatprep.subr.mxu0 0.0
    %1794 = vmatpush2.msra.mxu0 0.0
    %1795 = vmatprep.subr.mxu0 0.0
    %1796 = vmatpush2.msra.mxu0 0.0
    %1797 = vmatprep.subr.mxu0 0.0
    %1798 = vmatpush2.msra.mxu0 0.0
    %1799 = vmatprep.subr.mxu0 0.0
    %1800 = vmatpush2.msra.mxu0 0.0
    %1801 = vmatprep.subr.mxu0 0.0
    %1802 = vmatpush2.msra.mxu0 0.0
    %1803 = vmatprep.subr.mxu0 0.0
    %1804 = vmatpush2.msra.mxu0 0.0
    %1805 = vmatprep.subr.mxu0 0.0
    %1806 = vmatpush2.msra.mxu0 0.0
    %1807 = vmatprep.subr.mxu0 0.0
    %1808 = vmatpush2.msra.mxu0 0.0
    %1809 = vmatprep.subr.mxu0 0.0
    %1810 = vmatpush2.msra.mxu0 0.0
    %1811 = vmatprep.mubr.f32.mxu0 0.0
    %1812 = vmatmul.mubr.f32.gmra.mxu0 %v1746
    %v1813 = vpop.f32.mrf.mxu0
    %v1814 = vadd.f32 %v357, %v1813
    %v1815 = vpop.f32.mrf.mxu0
    %v1816 = vadd.f32 %v361, %v1815
    %1817 = vdwg.mxu0
    %1818 = vmatprep.subr.mxu0 0.0
    %1819 = vmatpush1.msra.mxu0 %v296
    %1820 = vmatprep.subr.mxu0 0.0
    %1821 = vmatpush1.msra.mxu0 %v293
    %1822 = vmatprep.subr.mxu0 0.0
    %1823 = vmatpush1.msra.mxu0 %v290
    %1824 = vmatprep.subr.mxu0 0.0
    %1825 = vmatpush1.msra.mxu0 %v287
    %1826 = vmatprep.subr.mxu0 0.0
    %1827 = vmatpush1.msra.mxu0 %v284
    %1828 = vmatprep.subr.mxu0 0.0
    %1829 = vmatpush1.msra.mxu0 %v281
    %1830 = vmatprep.subr.mxu0 0.0
    %1831 = vmatpush1.msra.mxu0 %v278
    %1832 = vmatprep.subr.mxu0 0.0
    %1833 = vmatpush1.msra.mxu0 %v275
    %1834 = vmatprep.subr.mxu0 0.0
    %1835 = vmatpush1.msra.mxu0 %v272
    %1836 = vmatprep.subr.mxu0 0.0
    %1837 = vmatpush1.msra.mxu0 %v269
    %1838 = vmatprep.subr.mxu0 0.0
    %1839 = vmatpush1.msra.mxu0 %v266
    %1840 = vmatprep.subr.mxu0 0.0
    %1841 = vmatpush1.msra.mxu0 %v263
    %1842 = vmatprep.subr.mxu0 0.0
    %1843 = vmatpush1.msra.mxu0 %v260
    %1844 = vmatprep.subr.mxu0 0.0
    %1845 = vmatpush1.msra.mxu0 %v257
    %1846 = vmatprep.subr.mxu0 0.0
    %1847 = vmatpush1.msra.mxu0 %v254
    %1848 = vmatprep.subr.mxu0 0.0
    %1849 = vmatpush1.msra.mxu0 %v251
    %1850 = vmatprep.subr.mxu0 0.0
    %1851 = vmatpush2.msra.mxu0 0.0
    %1852 = vmatprep.subr.mxu0 0.0
    %1853 = vmatpush2.msra.mxu0 0.0
    %1854 = vmatprep.subr.mxu0 0.0
    %1855 = vmatpush2.msra.mxu0 0.0
    %1856 = vmatprep.subr.mxu0 0.0
    %1857 = vmatpush2.msra.mxu0 0.0
    %1858 = vmatprep.subr.mxu0 0.0
    %1859 = vmatpush2.msra.mxu0 0.0
    %1860 = vmatprep.subr.mxu0 0.0
    %1861 = vmatpush2.msra.mxu0 0.0
    %1862 = vmatprep.subr.mxu0 0.0
    %1863 = vmatpush2.msra.mxu0 0.0
    %1864 = vmatprep.subr.mxu0 0.0
    %1865 = vmatpush2.msra.mxu0 0.0
    %1866 = vmatprep.subr.mxu0 0.0
    %1867 = vmatpush2.msra.mxu0 0.0
    %1868 = vmatprep.subr.mxu0 0.0
    %1869 = vmatpush2.msra.mxu0 0.0
    %1870 = vmatprep.subr.mxu0 0.0
    %1871 = vmatpush2.msra.mxu0 0.0
    %1872 = vmatprep.subr.mxu0 0.0
    %1873 = vmatpush2.msra.mxu0 0.0
    %1874 = vmatprep.subr.mxu0 0.0
    %1875 = vmatpush2.msra.mxu0 0.0
    %1876 = vmatprep.subr.mxu0 0.0
    %1877 = vmatpush2.msra.mxu0 0.0
    %1878 = vmatprep.subr.mxu0 0.0
    %1879 = vmatpush2.msra.mxu0 0.0
    %1880 = vmatprep.subr.mxu0 0.0
    %1881 = vmatpush2.msra.mxu0 0.0
    %1882 = vmatprep.mubr.f32.mxu0 0.0
    %1883 = vmatmul.mubr.f32.gmra.mxu0 %v1746
    %v1884 = vpop.f32.mrf.mxu0
    %v1885 = vadd.f32 %v365, %v1884
    %v1886 = vpop.f32.mrf.mxu0
    %1887 = vdwg.mxu0
    %1888 = vmatprep.subr.mxu0 %v343
    %1889 = vmatpush1.msra.mxu0 %v342
    %1890 = vmatprep.subr.mxu0 %v340
    %1891 = vmatpush1.msra.mxu0 %v339
    %1892 = vmatprep.subr.mxu0 %v337
    %1893 = vmatpush1.msra.mxu0 %v336
    %1894 = vmatprep.subr.mxu0 %v334
    %1895 = vmatpush1.msra.mxu0 %v333
    %1896 = vmatprep.subr.mxu0 %v331
    %1897 = vmatpush1.msra.mxu0 %v330
    %1898 = vmatprep.subr.mxu0 %v328
    %1899 = vmatpush1.msra.mxu0 %v327
    %1900 = vmatprep.subr.mxu0 %v325
    %1901 = vmatpush1.msra.mxu0 %v324
    %1902 = vmatprep.subr.mxu0 %v322
    %1903 = vmatpush1.msra.mxu0 %v321
    %1904 = vmatprep.subr.mxu0 %v319
    %1905 = vmatpush1.msra.mxu0 %v318
    %1906 = vmatprep.subr.mxu0 %v316
    %1907 = vmatpush1.msra.mxu0 %v315
    %1908 = vmatprep.subr.mxu0 %v313
    %1909 = vmatpush1.msra.mxu0 %v312
    %1910 = vmatprep.subr.mxu0 %v310
    %1911 = vmatpush1.msra.mxu0 %v309
    %1912 = vmatprep.subr.mxu0 %v307
    %1913 = vmatpush1.msra.mxu0 %v306
    %1914 = vmatprep.subr.mxu0 %v304
    %1915 = vmatpush1.msra.mxu0 %v303
    %1916 = vmatprep.subr.mxu0 %v301
    %1917 = vmatpush1.msra.mxu0 %v300
    %1918 = vmatprep.subr.mxu0 %v298
    %1919 = vmatpush1.msra.mxu0 %v297
    %1920 = vmatprep.subr.mxu0 0.0
    %1921 = vmatpush2.msra.mxu0 0.0
    %1922 = vmatprep.subr.mxu0 0.0
    %1923 = vmatpush2.msra.mxu0 0.0
    %1924 = vmatprep.subr.mxu0 0.0
    %1925 = vmatpush2.msra.mxu0 0.0
    %1926 = vmatprep.subr.mxu0 0.0
    %1927 = vmatpush2.msra.mxu0 0.0
    %1928 = vmatprep.subr.mxu0 0.0
    %1929 = vmatpush2.msra.mxu0 0.0
    %1930 = vmatprep.subr.mxu0 0.0
    %1931 = vmatpush2.msra.mxu0 0.0
    %1932 = vmatprep.subr.mxu0 0.0
    %1933 = vmatpush2.msra.mxu0 0.0
    %1934 = vmatprep.subr.mxu0 0.0
    %1935 = vmatpush2.msra.mxu0 0.0
    %1936 = vmatprep.subr.mxu0 0.0
    %1937 = vmatpush2.msra.mxu0 0.0
    %1938 = vmatprep.subr.mxu0 0.0
    %1939 = vmatpush2.msra.mxu0 0.0
    %1940 = vmatprep.subr.mxu0 0.0
    %1941 = vmatpush2.msra.mxu0 0.0
    %1942 = vmatprep.subr.mxu0 0.0
    %1943 = vmatpush2.msra.mxu0 0.0
    %1944 = vmatprep.subr.mxu0 0.0
    %1945 = vmatpush2.msra.mxu0 0.0
    %1946 = vmatprep.subr.mxu0 0.0
    %1947 = vmatpush2.msra.mxu0 0.0
    %1948 = vmatprep.subr.mxu0 0.0
    %1949 = vmatpush2.msra.mxu0 0.0
    %1950 = vmatprep.subr.mxu0 0.0
    %1951 = vmatpush2.msra.mxu0 0.0
    %1952 = vmatprep.mubr.f32.mxu0 0.0
    %1953 = vmatmul.mubr.f32.gmra.mxu0 %v1583
    %v1954 = vpop.f32.mrf.mxu0
    %v1955 = vadd.f32 0.0, %v1954
    %v1956 = vpop.f32.mrf.mxu0
    %v1957 = vadd.f32 0.0, %v1956
    %1958 = vdwg.mxu0
    %1959 = vmatprep.subr.mxu0 0.0
    %1960 = vmatpush1.msra.mxu0 %v344
    %1961 = vmatprep.subr.mxu0 0.0
    %1962 = vmatpush1.msra.mxu0 %v341
    %1963 = vmatprep.subr.mxu0 0.0
    %1964 = vmatpush1.msra.mxu0 %v338
    %1965 = vmatprep.subr.mxu0 0.0
    %1966 = vmatpush1.msra.mxu0 %v335
    %1967 = vmatprep.subr.mxu0 0.0
    %1968 = vmatpush1.msra.mxu0 %v332
    %1969 = vmatprep.subr.mxu0 0.0
    %1970 = vmatpush1.msra.mxu0 %v329
    %1971 = vmatprep.subr.mxu0 0.0
    %1972 = vmatpush1.msra.mxu0 %v326
    %1973 = vmatprep.subr.mxu0 0.0
    %1974 = vmatpush1.msra.mxu0 %v323
    %1975 = vmatprep.subr.mxu0 0.0
    %1976 = vmatpush1.msra.mxu0 %v320
    %1977 = vmatprep.subr.mxu0 0.0
    %1978 = vmatpush1.msra.mxu0 %v317
    %1979 = vmatprep.subr.mxu0 0.0
    %1980 = vmatpush1.msra.mxu0 %v314
    %1981 = vmatprep.subr.mxu0 0.0
    %1982 = vmatpush1.msra.mxu0 %v311
    %1983 = vmatprep.subr.mxu0 0.0
    %1984 = vmatpush1.msra.mxu0 %v308
    %1985 = vmatprep.subr.mxu0 0.0
    %1986 = vmatpush1.msra.mxu0 %v305
    %1987 = vmatprep.subr.mxu0 0.0
    %1988 = vmatpush1.msra.mxu0 %v302
    %1989 = vmatprep.subr.mxu0 0.0
    %1990 = vmatpush1.msra.mxu0 %v299
    %1991 = vmatprep.subr.mxu0 0.0
    %1992 = vmatpush2.msra.mxu0 0.0
    %1993 = vmatprep.subr.mxu0 0.0
    %1994 = vmatpush2.msra.mxu0 0.0
    %1995 = vmatprep.subr.mxu0 0.0
    %1996 = vmatpush2.msra.mxu0 0.0
    %1997 = vmatprep.subr.mxu0 0.0
    %1998 = vmatpush2.msra.mxu0 0.0
    %1999 = vmatprep.subr.mxu0 0.0
    %2000 = vmatpush2.msra.mxu0 0.0
    %2001 = vmatprep.subr.mxu0 0.0
    %2002 = vmatpush2.msra.mxu0 0.0
    %2003 = vmatprep.subr.mxu0 0.0
    %2004 = vmatpush2.msra.mxu0 0.0
    %2005 = vmatprep.subr.mxu0 0.0
    %2006 = vmatpush2.msra.mxu0 0.0
    %2007 = vmatprep.subr.mxu0 0.0
    %2008 = vmatpush2.msra.mxu0 0.0
    %2009 = vmatprep.subr.mxu0 0.0
    %2010 = vmatpush2.msra.mxu0 0.0
    %2011 = vmatprep.subr.mxu0 0.0
    %2012 = vmatpush2.msra.mxu0 0.0
    %2013 = vmatprep.subr.mxu0 0.0
    %2014 = vmatpush2.msra.mxu0 0.0
    %2015 = vmatprep.subr.mxu0 0.0
    %2016 = vmatpush2.msra.mxu0 0.0
    %2017 = vmatprep.subr.mxu0 0.0
    %2018 = vmatpush2.msra.mxu0 0.0
    %2019 = vmatprep.subr.mxu0 0.0
    %2020 = vmatpush2.msra.mxu0 0.0
    %2021 = vmatprep.subr.mxu0 0.0
    %2022 = vmatpush2.msra.mxu0 0.0
    %2023 = vmatprep.mubr.f32.mxu0 0.0
    %2024 = vmatmul.mubr.f32.gmra.mxu0 %v1583
    %v2025 = vpop.f32.mrf.mxu0
    %v2026 = vadd.f32 0.0, %v2025
    %v2027 = vpop.f32.mrf.mxu0
    %2028 = vdwg.mxu0
    %v2029 = vadd.f32 %v1814, %v1955
    %v2030 = vxor.u32 %v2029, 2147483648
    %v2031 = vmul.f32 %v2030, 1.442695
    %v2032 = vpow.pop %v2031
    %v2033 = vadd.f32 %v2032, 1.0
    %v2034 = vrcp.pop %v2033
    %v2035 = vmul.f32 1.0, %v2034
    %v2036 = vadd.f32 %v1816, %v1957
    %v2037 = vxor.u32 %v2036, 2147483648
    %v2038 = vmul.f32 %v2037, 1.442695
    %v2039 = vpow.pop %v2038
    %v2040 = vadd.f32 %v2039, 1.0
    %v2041 = vrcp.pop %v2040
    %v2042 = vmul.f32 1.0, %v2041
    %v2043 = vadd.f32 %v2026, %v374
    %v2044 = vmul.f32 %v2035, %v2043
    %v2045 = vadd.f32 %v1885, %v2044
    %v2046 = vtanh.pop %v2045
    %v2047 = vsub.f32 1.0, %v2042
    %v2048 = vmul.f32 %v2047, %v2046
    %v2049 = vmul.f32 %v2042, %v1583
    %v2050 = vadd.f32 %v2048, %v2049
    %2051 = vmatprep.subr.mxu0 %v247
    %2052 = vmatpush1.msra.mxu0 %v246
    %2053 = vmatprep.subr.mxu0 %v244
    %2054 = vmatpush1.msra.mxu0 %v243
    %2055 = vmatprep.subr.mxu0 %v241
    %2056 = vmatpush1.msra.mxu0 %v240
    %2057 = vmatprep.subr.mxu0 %v238
    %2058 = vmatpush1.msra.mxu0 %v237
    %2059 = vmatprep.subr.mxu0 %v235
    %2060 = vmatpush1.msra.mxu0 %v234
    %2061 = vmatprep.subr.mxu0 %v232
    %2062 = vmatpush1.msra.mxu0 %v231
    %2063 = vmatprep.subr.mxu0 %v229
    %2064 = vmatpush1.msra.mxu0 %v228
    %2065 = vmatprep.subr.mxu0 %v226
    %2066 = vmatpush1.msra.mxu0 %v225
    %2067 = vmatprep.subr.mxu0 %v223
    %2068 = vmatpush1.msra.mxu0 %v222
    %2069 = vmatprep.subr.mxu0 %v220
    %2070 = vmatpush1.msra.mxu0 %v219
    %2071 = vmatprep.subr.mxu0 %v217
    %2072 = vmatpush1.msra.mxu0 %v216
    %2073 = vmatprep.subr.mxu0 %v214
    %2074 = vmatpush1.msra.mxu0 %v213
    %2075 = vmatprep.subr.mxu0 %v211
    %2076 = vmatpush1.msra.mxu0 %v210
    %2077 = vmatprep.subr.mxu0 %v208
    %2078 = vmatpush1.msra.mxu0 %v207
    %2079 = vmatprep.subr.mxu0 %v205
    %2080 = vmatpush1.msra.mxu0 %v204
    %2081 = vmatprep.subr.mxu0 %v202
    %2082 = vmatpush1.msra.mxu0 %v201
    %2083 = vmatprep.subr.mxu0 0.0
    %2084 = vmatpush2.msra.mxu0 0.0
    %2085 = vmatprep.subr.mxu0 0.0
    %2086 = vmatpush2.msra.mxu0 0.0
    %2087 = vmatprep.subr.mxu0 0.0
    %2088 = vmatpush2.msra.mxu0 0.0
    %2089 = vmatprep.subr.mxu0 0.0
    %2090 = vmatpush2.msra.mxu0 0.0
    %2091 = vmatprep.subr.mxu0 0.0
    %2092 = vmatpush2.msra.mxu0 0.0
    %2093 = vmatprep.subr.mxu0 0.0
    %2094 = vmatpush2.msra.mxu0 0.0
    %2095 = vmatprep.subr.mxu0 0.0
    %2096 = vmatpush2.msra.mxu0 0.0
    %2097 = vmatprep.subr.mxu0 0.0
    %2098 = vmatpush2.msra.mxu0 0.0
    %2099 = vmatprep.subr.mxu0 0.0
    %2100 = vmatpush2.msra.mxu0 0.0
    %2101 = vmatprep.subr.mxu0 0.0
    %2102 = vmatpush2.msra.mxu0 0.0
    %2103 = vmatprep.subr.mxu0 0.0
    %2104 = vmatpush2.msra.mxu0 0.0
    %2105 = vmatprep.subr.mxu0 0.0
    %2106 = vmatpush2.msra.mxu0 0.0
    %2107 = vmatprep.subr.mxu0 0.0
    %2108 = vmatpush2.msra.mxu0 0.0
    %2109 = vmatprep.subr.mxu0 0.0
    %2110 = vmatpush2.msra.mxu0 0.0
    %2111 = vmatprep.subr.mxu0 0.0
    %2112 = vmatpush2.msra.mxu0 0.0
    %2113 = vmatprep.subr.mxu0 0.0
    %2114 = vmatpush2.msra.mxu0 0.0
    %2115 = vmatprep.mubr.f32.mxu0 0.0
    %2116 = vmatmul.mubr.f32.gmra.mxu0 %v1746
    %v2117 = vpop.f32.mrf.mxu0
    %v2118 = vadd.f32 0.0, %v2117
    %v2119 = vpop.f32.mrf.mxu0
    %v2120 = vadd.f32 0.0, %v2119
    %2121 = vdwg.mxu0
    %2122 = vmatprep.subr.mxu0 0.0
    %2123 = vmatpush1.msra.mxu0 %v248
    %2124 = vmatprep.subr.mxu0 0.0
    %2125 = vmatpush1.msra.mxu0 %v245
    %2126 = vmatprep.subr.mxu0 0.0
    %2127 = vmatpush1.msra.mxu0 %v242
    %2128 = vmatprep.subr.mxu0 0.0
    %2129 = vmatpush1.msra.mxu0 %v239
    %2130 = vmatprep.subr.mxu0 0.0
    %2131 = vmatpush1.msra.mxu0 %v236
    %2132 = vmatprep.subr.mxu0 0.0
    %2133 = vmatpush1.msra.mxu0 %v233
    %2134 = vmatprep.subr.mxu0 0.0
    %2135 = vmatpush1.msra.mxu0 %v230
    %2136 = vmatprep.subr.mxu0 0.0
    %2137 = vmatpush1.msra.mxu0 %v227
    %2138 = vmatprep.subr.mxu0 0.0
    %2139 = vmatpush1.msra.mxu0 %v224
    %2140 = vmatprep.subr.mxu0 0.0
    %2141 = vmatpush1.msra.mxu0 %v221
    %2142 = vmatprep.subr.mxu0 0.0
    %2143 = vmatpush1.msra.mxu0 %v218
    %2144 = vmatprep.subr.mxu0 0.0
    %2145 = vmatpush1.msra.mxu0 %v215
    %2146 = vmatprep.subr.mxu0 0.0
    %2147 = vmatpush1.msra.mxu0 %v212
    %2148 = vmatprep.subr.mxu0 0.0
    %2149 = vmatpush1.msra.mxu0 %v209
    %2150 = vmatprep.subr.mxu0 0.0
    %2151 = vmatpush1.msra.mxu0 %v206
    %2152 = vmatprep.subr.mxu0 0.0
    %2153 = vmatpush1.msra.mxu0 %v203
    %2154 = vmatprep.subr.mxu0 0.0
    %2155 = vmatpush2.msra.mxu0 0.0
    %2156 = vmatprep.subr.mxu0 0.0
    %2157 = vmatpush2.msra.mxu0 0.0
    %2158 = vmatprep.subr.mxu0 0.0
    %2159 = vmatpush2.msra.mxu0 0.0
    %2160 = vmatprep.subr.mxu0 0.0
    %2161 = vmatpush2.msra.mxu0 0.0
    %2162 = vmatprep.subr.mxu0 0.0
    %2163 = vmatpush2.msra.mxu0 0.0
    %2164 = vmatprep.subr.mxu0 0.0
    %2165 = vmatpush2.msra.mxu0 0.0
    %2166 = vmatprep.subr.mxu0 0.0
    %2167 = vmatpush2.msra.mxu0 0.0
    %2168 = vmatprep.subr.mxu0 0.0
    %2169 = vmatpush2.msra.mxu0 0.0
    %2170 = vmatprep.subr.mxu0 0.0
    %2171 = vmatpush2.msra.mxu0 0.0
    %2172 = vmatprep.subr.mxu0 0.0
    %2173 = vmatpush2.msra.mxu0 0.0
    %2174 = vmatprep.subr.mxu0 0.0
    %2175 = vmatpush2.msra.mxu0 0.0
    %2176 = vmatprep.subr.mxu0 0.0
    %2177 = vmatpush2.msra.mxu0 0.0
    %2178 = vmatprep.subr.mxu0 0.0
    %2179 = vmatpush2.msra.mxu0 0.0
    %2180 = vmatprep.subr.mxu0 0.0
    %2181 = vmatpush2.msra.mxu0 0.0
    %2182 = vmatprep.subr.mxu0 0.0
    %2183 = vmatpush2.msra.mxu0 0.0
    %2184 = vmatprep.subr.mxu0 0.0
    %2185 = vmatpush2.msra.mxu0 0.0
    %2186 = vmatprep.mubr.f32.mxu0 0.0
    %2187 = vmatmul.mubr.f32.gmra.mxu0 %v1746
    %v2188 = vpop.f32.mrf.mxu0
    %v2189 = vadd.f32 0.0, %v2188
    %v2190 = vpop.f32.mrf.mxu0
    %2191 = vdwg.mxu0
    %v2192 = vadd.f32 %v517, %v2118
    %v2193 = vxor.u32 %v2192, 2147483648
    %v2194 = vmul.f32 %v2193, 1.442695
    %v2195 = vpow.pop %v2194
    %v2196 = vadd.f32 %v2195, 1.0
    %v2197 = vrcp.pop %v2196
    %v2198 = vmul.f32 1.0, %v2197
    %v2199 = vadd.f32 %v519, %v2120
    %v2200 = vxor.u32 %v2199, 2147483648
    %v2201 = vmul.f32 %v2200, 1.442695
    %v2202 = vpow.pop %v2201
    %v2203 = vadd.f32 %v2202, 1.0
    %v2204 = vrcp.pop %v2203
    %v2205 = vmul.f32 1.0, %v2204
    %v2206 = vadd.f32 %v2189, %v350
    %v2207 = vmul.f32 %v2198, %v2206
    %v2208 = vadd.f32 %v627, %v2207
    %v2209 = vtanh.pop %v2208
    %v2210 = vsub.f32 1.0, %v2205
    %v2211 = vmul.f32 %v2210, %v2209
    %v2212 = vmul.f32 %v2205, %v1746
    %v2213 = vadd.f32 %v2211, %v2212
    %2214 = vmatprep.subr.mxu0 %v295
    %2215 = vmatpush1.msra.mxu0 %v294
    %2216 = vmatprep.subr.mxu0 %v292
    %2217 = vmatpush1.msra.mxu0 %v291
    %2218 = vmatprep.subr.mxu0 %v289
    %2219 = vmatpush1.msra.mxu0 %v288
    %2220 = vmatprep.subr.mxu0 %v286
    %2221 = vmatpush1.msra.mxu0 %v285
    %2222 = vmatprep.subr.mxu0 %v283
    %2223 = vmatpush1.msra.mxu0 %v282
    %2224 = vmatprep.subr.mxu0 %v280
    %2225 = vmatpush1.msra.mxu0 %v279
    %2226 = vmatprep.subr.mxu0 %v277
    %2227 = vmatpush1.msra.mxu0 %v276
    %2228 = vmatprep.subr.mxu0 %v274
    %2229 = vmatpush1.msra.mxu0 %v273
    %2230 = vmatprep.subr.mxu0 %v271
    %2231 = vmatpush1.msra.mxu0 %v270
    %2232 = vmatprep.subr.mxu0 %v268
    %2233 = vmatpush1.msra.mxu0 %v267
    %2234 = vmatprep.subr.mxu0 %v265
    %2235 = vmatpush1.msra.mxu0 %v264
    %2236 = vmatprep.subr.mxu0 %v262
    %2237 = vmatpush1.msra.mxu0 %v261
    %2238 = vmatprep.subr.mxu0 %v259
    %2239 = vmatpush1.msra.mxu0 %v258
    %2240 = vmatprep.subr.mxu0 %v256
    %2241 = vmatpush1.msra.mxu0 %v255
    %2242 = vmatprep.subr.mxu0 %v253
    %2243 = vmatpush1.msra.mxu0 %v252
    %2244 = vmatprep.subr.mxu0 %v250
    %2245 = vmatpush1.msra.mxu0 %v249
    %2246 = vmatprep.subr.mxu0 0.0
    %2247 = vmatpush2.msra.mxu0 0.0
    %2248 = vmatprep.subr.mxu0 0.0
    %2249 = vmatpush2.msra.mxu0 0.0
    %2250 = vmatprep.subr.mxu0 0.0
    %2251 = vmatpush2.msra.mxu0 0.0
    %2252 = vmatprep.subr.mxu0 0.0
    %2253 = vmatpush2.msra.mxu0 0.0
    %2254 = vmatprep.subr.mxu0 0.0
    %2255 = vmatpush2.msra.mxu0 0.0
    %2256 = vmatprep.subr.mxu0 0.0
    %2257 = vmatpush2.msra.mxu0 0.0
    %2258 = vmatprep.subr.mxu0 0.0
    %2259 = vmatpush2.msra.mxu0 0.0
    %2260 = vmatprep.subr.mxu0 0.0
    %2261 = vmatpush2.msra.mxu0 0.0
    %2262 = vmatprep.subr.mxu0 0.0
    %2263 = vmatpush2.msra.mxu0 0.0
    %2264 = vmatprep.subr.mxu0 0.0
    %2265 = vmatpush2.msra.mxu0 0.0
    %2266 = vmatprep.subr.mxu0 0.0
    %2267 = vmatpush2.msra.mxu0 0.0
    %2268 = vmatprep.subr.mxu0 0.0
    %2269 = vmatpush2.msra.mxu0 0.0
    %2270 = vmatprep.subr.mxu0 0.0
    %2271 = vmatpush2.msra.mxu0 0.0
    %2272 = vmatprep.subr.mxu0 0.0
    %2273 = vmatpush2.msra.mxu0 0.0
    %2274 = vmatprep.subr.mxu0 0.0
    %2275 = vmatpush2.msra.mxu0 0.0
    %2276 = vmatprep.subr.mxu0 0.0
    %2277 = vmatpush2.msra.mxu0 0.0
    %2278 = vmatprep.mubr.f32.mxu0 0.0
    %2279 = vmatmul.mubr.f32.gmra.mxu0 %v2213
    %v2280 = vpop.f32.mrf.mxu0
    %v2281 = vadd.f32 %v357, %v2280
    %v2282 = vpop.f32.mrf.mxu0
    %v2283 = vadd.f32 %v361, %v2282
    %2284 = vdwg.mxu0
    %2285 = vmatprep.subr.mxu0 0.0
    %2286 = vmatpush1.msra.mxu0 %v296
    %2287 = vmatprep.subr.mxu0 0.0
    %2288 = vmatpush1.msra.mxu0 %v293
    %2289 = vmatprep.subr.mxu0 0.0
    %2290 = vmatpush1.msra.mxu0 %v290
    %2291 = vmatprep.subr.mxu0 0.0
    %2292 = vmatpush1.msra.mxu0 %v287
    %2293 = vmatprep.subr.mxu0 0.0
    %2294 = vmatpush1.msra.mxu0 %v284
    %2295 = vmatprep.subr.mxu0 0.0
    %2296 = vmatpush1.msra.mxu0 %v281
    %2297 = vmatprep.subr.mxu0 0.0
    %2298 = vmatpush1.msra.mxu0 %v278
    %2299 = vmatprep.subr.mxu0 0.0
    %2300 = vmatpush1.msra.mxu0 %v275
    %2301 = vmatprep.subr.mxu0 0.0
    %2302 = vmatpush1.msra.mxu0 %v272
    %2303 = vmatprep.subr.mxu0 0.0
    %2304 = vmatpush1.msra.mxu0 %v269
    %2305 = vmatprep.subr.mxu0 0.0
    %2306 = vmatpush1.msra.mxu0 %v266
    %2307 = vmatprep.subr.mxu0 0.0
    %2308 = vmatpush1.msra.mxu0 %v263
    %2309 = vmatprep.subr.mxu0 0.0
    %2310 = vmatpush1.msra.mxu0 %v260
    %2311 = vmatprep.subr.mxu0 0.0
    %2312 = vmatpush1.msra.mxu0 %v257
    %2313 = vmatprep.subr.mxu0 0.0
    %2314 = vmatpush1.msra.mxu0 %v254
    %2315 = vmatprep.subr.mxu0 0.0
    %2316 = vmatpush1.msra.mxu0 %v251
    %2317 = vmatprep.subr.mxu0 0.0
    %2318 = vmatpush2.msra.mxu0 0.0
    %2319 = vmatprep.subr.mxu0 0.0
    %2320 = vmatpush2.msra.mxu0 0.0
    %2321 = vmatprep.subr.mxu0 0.0
    %2322 = vmatpush2.msra.mxu0 0.0
    %2323 = vmatprep.subr.mxu0 0.0
    %2324 = vmatpush2.msra.mxu0 0.0
    %2325 = vmatprep.subr.mxu0 0.0
    %2326 = vmatpush2.msra.mxu0 0.0
    %2327 = vmatprep.subr.mxu0 0.0
    %2328 = vmatpush2.msra.mxu0 0.0
    %2329 = vmatprep.subr.mxu0 0.0
    %2330 = vmatpush2.msra.mxu0 0.0
    %2331 = vmatprep.subr.mxu0 0.0
    %2332 = vmatpush2.msra.mxu0 0.0
    %2333 = vmatprep.subr.mxu0 0.0
    %2334 = vmatpush2.msra.mxu0 0.0
    %2335 = vmatprep.subr.mxu0 0.0
    %2336 = vmatpush2.msra.mxu0 0.0
    %2337 = vmatprep.subr.mxu0 0.0
    %2338 = vmatpush2.msra.mxu0 0.0
    %2339 = vmatprep.subr.mxu0 0.0
    %2340 = vmatpush2.msra.mxu0 0.0
    %2341 = vmatprep.subr.mxu0 0.0
    %2342 = vmatpush2.msra.mxu0 0.0
    %2343 = vmatprep.subr.mxu0 0.0
    %2344 = vmatpush2.msra.mxu0 0.0
    %2345 = vmatprep.subr.mxu0 0.0
    %2346 = vmatpush2.msra.mxu0 0.0
    %2347 = vmatprep.subr.mxu0 0.0
    %2348 = vmatpush2.msra.mxu0 0.0
    %2349 = vmatprep.mubr.f32.mxu0 0.0
    %2350 = vmatmul.mubr.f32.gmra.mxu0 %v2213
    %v2351 = vpop.f32.mrf.mxu0
    %v2352 = vadd.f32 %v365, %v2351
    %v2353 = vpop.f32.mrf.mxu0
    %2354 = vdwg.mxu0
    %2355 = vmatprep.subr.mxu0 %v343
    %2356 = vmatpush1.msra.mxu0 %v342
    %2357 = vmatprep.subr.mxu0 %v340
    %2358 = vmatpush1.msra.mxu0 %v339
    %2359 = vmatprep.subr.mxu0 %v337
    %2360 = vmatpush1.msra.mxu0 %v336
    %2361 = vmatprep.subr.mxu0 %v334
    %2362 = vmatpush1.msra.mxu0 %v333
    %2363 = vmatprep.subr.mxu0 %v331
    %2364 = vmatpush1.msra.mxu0 %v330
    %2365 = vmatprep.subr.mxu0 %v328
    %2366 = vmatpush1.msra.mxu0 %v327
    %2367 = vmatprep.subr.mxu0 %v325
    %2368 = vmatpush1.msra.mxu0 %v324
    %2369 = vmatprep.subr.mxu0 %v322
    %2370 = vmatpush1.msra.mxu0 %v321
    %2371 = vmatprep.subr.mxu0 %v319
    %2372 = vmatpush1.msra.mxu0 %v318
    %2373 = vmatprep.subr.mxu0 %v316
    %2374 = vmatpush1.msra.mxu0 %v315
    %2375 = vmatprep.subr.mxu0 %v313
    %2376 = vmatpush1.msra.mxu0 %v312
    %2377 = vmatprep.subr.mxu0 %v310
    %2378 = vmatpush1.msra.mxu0 %v309
    %2379 = vmatprep.subr.mxu0 %v307
    %2380 = vmatpush1.msra.mxu0 %v306
    %2381 = vmatprep.subr.mxu0 %v304
    %2382 = vmatpush1.msra.mxu0 %v303
    %2383 = vmatprep.subr.mxu0 %v301
    %2384 = vmatpush1.msra.mxu0 %v300
    %2385 = vmatprep.subr.mxu0 %v298
    %2386 = vmatpush1.msra.mxu0 %v297
    %2387 = vmatprep.subr.mxu0 0.0
    %2388 = vmatpush2.msra.mxu0 0.0
    %2389 = vmatprep.subr.mxu0 0.0
    %2390 = vmatpush2.msra.mxu0 0.0
    %2391 = vmatprep.subr.mxu0 0.0
    %2392 = vmatpush2.msra.mxu0 0.0
    %2393 = vmatprep.subr.mxu0 0.0
    %2394 = vmatpush2.msra.mxu0 0.0
    %2395 = vmatprep.subr.mxu0 0.0
    %2396 = vmatpush2.msra.mxu0 0.0
    %2397 = vmatprep.subr.mxu0 0.0
    %2398 = vmatpush2.msra.mxu0 0.0
    %2399 = vmatprep.subr.mxu0 0.0
    %2400 = vmatpush2.msra.mxu0 0.0
    %2401 = vmatprep.subr.mxu0 0.0
    %2402 = vmatpush2.msra.mxu0 0.0
    %2403 = vmatprep.subr.mxu0 0.0
    %2404 = vmatpush2.msra.mxu0 0.0
    %2405 = vmatprep.subr.mxu0 0.0
    %2406 = vmatpush2.msra.mxu0 0.0
    %2407 = vmatprep.subr.mxu0 0.0
    %2408 = vmatpush2.msra.mxu0 0.0
    %2409 = vmatprep.subr.mxu0 0.0
    %2410 = vmatpush2.msra.mxu0 0.0
    %2411 = vmatprep.subr.mxu0 0.0
    %2412 = vmatpush2.msra.mxu0 0.0
    %2413 = vmatprep.subr.mxu0 0.0
    %2414 = vmatpush2.msra.mxu0 0.0
    %2415 = vmatprep.subr.mxu0 0.0
    %2416 = vmatpush2.msra.mxu0 0.0
    %2417 = vmatprep.subr.mxu0 0.0
    %2418 = vmatpush2.msra.mxu0 0.0
    %2419 = vmatprep.mubr.f32.mxu0 0.0
    %2420 = vmatmul.mubr.f32.gmra.mxu0 %v2050
    %v2421 = vpop.f32.mrf.mxu0
    %v2422 = vadd.f32 0.0, %v2421
    %v2423 = vpop.f32.mrf.mxu0
    %v2424 = vadd.f32 0.0, %v2423
    %2425 = vdwg.mxu0
    %2426 = vmatprep.subr.mxu0 0.0
    %2427 = vmatpush1.msra.mxu0 %v344
    %2428 = vmatprep.subr.mxu0 0.0
    %2429 = vmatpush1.msra.mxu0 %v341
    %2430 = vmatprep.subr.mxu0 0.0
    %2431 = vmatpush1.msra.mxu0 %v338
    %2432 = vmatprep.subr.mxu0 0.0
    %2433 = vmatpush1.msra.mxu0 %v335
    %2434 = vmatprep.subr.mxu0 0.0
    %2435 = vmatpush1.msra.mxu0 %v332
    %2436 = vmatprep.subr.mxu0 0.0
    %2437 = vmatpush1.msra.mxu0 %v329
    %2438 = vmatprep.subr.mxu0 0.0
    %2439 = vmatpush1.msra.mxu0 %v326
    %2440 = vmatprep.subr.mxu0 0.0
    %2441 = vmatpush1.msra.mxu0 %v323
    %2442 = vmatprep.subr.mxu0 0.0
    %2443 = vmatpush1.msra.mxu0 %v320
    %2444 = vmatprep.subr.mxu0 0.0
    %2445 = vmatpush1.msra.mxu0 %v317
    %2446 = vmatprep.subr.mxu0 0.0
    %2447 = vmatpush1.msra.mxu0 %v314
    %2448 = vmatprep.subr.mxu0 0.0
    %2449 = vmatpush1.msra.mxu0 %v311
    %2450 = vmatprep.subr.mxu0 0.0
    %2451 = vmatpush1.msra.mxu0 %v308
    %2452 = vmatprep.subr.mxu0 0.0
    %2453 = vmatpush1.msra.mxu0 %v305
    %2454 = vmatprep.subr.mxu0 0.0
    %2455 = vmatpush1.msra.mxu0 %v302
    %2456 = vmatprep.subr.mxu0 0.0
    %2457 = vmatpush1.msra.mxu0 %v299
    %2458 = vmatprep.subr.mxu0 0.0
    %2459 = vmatpush2.msra.mxu0 0.0
    %2460 = vmatprep.subr.mxu0 0.0
    %2461 = vmatpush2.msra.mxu0 0.0
    %2462 = vmatprep.subr.mxu0 0.0
    %2463 = vmatpush2.msra.mxu0 0.0
    %2464 = vmatprep.subr.mxu0 0.0
    %2465 = vmatpush2.msra.mxu0 0.0
    %2466 = vmatprep.subr.mxu0 0.0
    %2467 = vmatpush2.msra.mxu0 0.0
    %2468 = vmatprep.subr.mxu0 0.0
    %2469 = vmatpush2.msra.mxu0 0.0
    %2470 = vmatprep.subr.mxu0 0.0
    %2471 = vmatpush2.msra.mxu0 0.0
    %2472 = vmatprep.subr.mxu0 0.0
    %2473 = vmatpush2.msra.mxu0 0.0
    %2474 = vmatprep.subr.mxu0 0.0
    %2475 = vmatpush2.msra.mxu0 0.0
    %2476 = vmatprep.subr.mxu0 0.0
    %2477 = vmatpush2.msra.mxu0 0.0
    %2478 = vmatprep.subr.mxu0 0.0
    %2479 = vmatpush2.msra.mxu0 0.0
    %2480 = vmatprep.subr.mxu0 0.0
    %2481 = vmatpush2.msra.mxu0 0.0
    %2482 = vmatprep.subr.mxu0 0.0
    %2483 = vmatpush2.msra.mxu0 0.0
    %2484 = vmatprep.subr.mxu0 0.0
    %2485 = vmatpush2.msra.mxu0 0.0
    %2486 = vmatprep.subr.mxu0 0.0
    %2487 = vmatpush2.msra.mxu0 0.0
    %2488 = vmatprep.subr.mxu0 0.0
    %2489 = vmatpush2.msra.mxu0 0.0
    %2490 = vmatprep.mubr.f32.mxu0 0.0
    %2491 = vmatmul.mubr.f32.gmra.mxu0 %v2050
    %v2492 = vpop.f32.mrf.mxu0
    %v2493 = vadd.f32 0.0, %v2492
    %v2494 = vpop.f32.mrf.mxu0
    %2495 = vdwg.mxu0
    %v2496 = vadd.f32 %v2281, %v2422
    %v2497 = vxor.u32 %v2496, 2147483648
    %v2498 = vmul.f32 %v2497, 1.442695
    %v2499 = vpow.pop %v2498
    %v2500 = vadd.f32 %v2499, 1.0
    %v2501 = vrcp.pop %v2500
    %v2502 = vmul.f32 1.0, %v2501
    %v2503 = vadd.f32 %v2283, %v2424
    %v2504 = vxor.u32 %v2503, 2147483648
    %v2505 = vmul.f32 %v2504, 1.442695
    %v2506 = vpow.pop %v2505
    %v2507 = vadd.f32 %v2506, 1.0
    %v2508 = vrcp.pop %v2507
    %v2509 = vmul.f32 1.0, %v2508
    %v2510 = vadd.f32 %v2493, %v374
    %v2511 = vmul.f32 %v2502, %v2510
    %v2512 = vadd.f32 %v2352, %v2511
    %v2513 = vtanh.pop %v2512
    %v2514 = vsub.f32 1.0, %v2509
    %v2515 = vmul.f32 %v2514, %v2513
    %v2516 = vmul.f32 %v2509, %v2050
    %v2517 = vadd.f32 %v2515, %v2516
    %2518 = vmatprep.subr.mxu0 %v247
    %2519 = vmatpush1.msra.mxu0 %v246
    %2520 = vmatprep.subr.mxu0 %v244
    %2521 = vmatpush1.msra.mxu0 %v243
    %2522 = vmatprep.subr.mxu0 %v241
    %2523 = vmatpush1.msra.mxu0 %v240
    %2524 = vmatprep.subr.mxu0 %v238
    %2525 = vmatpush1.msra.mxu0 %v237
    %2526 = vmatprep.subr.mxu0 %v235
    %2527 = vmatpush1.msra.mxu0 %v234
    %2528 = vmatprep.subr.mxu0 %v232
    %2529 = vmatpush1.msra.mxu0 %v231
    %2530 = vmatprep.subr.mxu0 %v229
    %2531 = vmatpush1.msra.mxu0 %v228
    %2532 = vmatprep.subr.mxu0 %v226
    %2533 = vmatpush1.msra.mxu0 %v225
    %2534 = vmatprep.subr.mxu0 %v223
    %2535 = vmatpush1.msra.mxu0 %v222
    %2536 = vmatprep.subr.mxu0 %v220
    %2537 = vmatpush1.msra.mxu0 %v219
    %2538 = vmatprep.subr.mxu0 %v217
    %2539 = vmatpush1.msra.mxu0 %v216
    %2540 = vmatprep.subr.mxu0 %v214
    %2541 = vmatpush1.msra.mxu0 %v213
    %2542 = vmatprep.subr.mxu0 %v211
    %2543 = vmatpush1.msra.mxu0 %v210
    %2544 = vmatprep.subr.mxu0 %v208
    %2545 = vmatpush1.msra.mxu0 %v207
    %2546 = vmatprep.subr.mxu0 %v205
    %2547 = vmatpush1.msra.mxu0 %v204
    %2548 = vmatprep.subr.mxu0 %v202
    %2549 = vmatpush1.msra.mxu0 %v201
    %2550 = vmatprep.subr.mxu0 0.0
    %2551 = vmatpush2.msra.mxu0 0.0
    %2552 = vmatprep.subr.mxu0 0.0
    %2553 = vmatpush2.msra.mxu0 0.0
    %2554 = vmatprep.subr.mxu0 0.0
    %2555 = vmatpush2.msra.mxu0 0.0
    %2556 = vmatprep.subr.mxu0 0.0
    %2557 = vmatpush2.msra.mxu0 0.0
    %2558 = vmatprep.subr.mxu0 0.0
    %2559 = vmatpush2.msra.mxu0 0.0
    %2560 = vmatprep.subr.mxu0 0.0
    %2561 = vmatpush2.msra.mxu0 0.0
    %2562 = vmatprep.subr.mxu0 0.0
    %2563 = vmatpush2.msra.mxu0 0.0
    %2564 = vmatprep.subr.mxu0 0.0
    %2565 = vmatpush2.msra.mxu0 0.0
    %2566 = vmatprep.subr.mxu0 0.0
    %2567 = vmatpush2.msra.mxu0 0.0
    %2568 = vmatprep.subr.mxu0 0.0
    %2569 = vmatpush2.msra.mxu0 0.0
    %2570 = vmatprep.subr.mxu0 0.0
    %2571 = vmatpush2.msra.mxu0 0.0
    %2572 = vmatprep.subr.mxu0 0.0
    %2573 = vmatpush2.msra.mxu0 0.0
    %2574 = vmatprep.subr.mxu0 0.0
    %2575 = vmatpush2.msra.mxu0 0.0
    %2576 = vmatprep.subr.mxu0 0.0
    %2577 = vmatpush2.msra.mxu0 0.0
    %2578 = vmatprep.subr.mxu0 0.0
    %2579 = vmatpush2.msra.mxu0 0.0
    %2580 = vmatprep.subr.mxu0 0.0
    %2581 = vmatpush2.msra.mxu0 0.0
    %2582 = vmatprep.mubr.f32.mxu0 0.0
    %2583 = vmatmul.mubr.f32.gmra.mxu0 %v2213
    %v2584 = vpop.f32.mrf.mxu0
    %v2585 = vadd.f32 0.0, %v2584
    %v2586 = vpop.f32.mrf.mxu0
    %v2587 = vadd.f32 0.0, %v2586
    %2588 = vdwg.mxu0
    %2589 = vmatprep.subr.mxu0 0.0
    %2590 = vmatpush1.msra.mxu0 %v248
    %2591 = vmatprep.subr.mxu0 0.0
    %2592 = vmatpush1.msra.mxu0 %v245
    %2593 = vmatprep.subr.mxu0 0.0
    %2594 = vmatpush1.msra.mxu0 %v242
    %2595 = vmatprep.subr.mxu0 0.0
    %2596 = vmatpush1.msra.mxu0 %v239
    %2597 = vmatprep.subr.mxu0 0.0
    %2598 = vmatpush1.msra.mxu0 %v236
    %2599 = vmatprep.subr.mxu0 0.0
    %2600 = vmatpush1.msra.mxu0 %v233
    %2601 = vmatprep.subr.mxu0 0.0
    %2602 = vmatpush1.msra.mxu0 %v230
    %2603 = vmatprep.subr.mxu0 0.0
    %2604 = vmatpush1.msra.mxu0 %v227
    %2605 = vmatprep.subr.mxu0 0.0
    %2606 = vmatpush1.msra.mxu0 %v224
    %2607 = vmatprep.subr.mxu0 0.0
    %2608 = vmatpush1.msra.mxu0 %v221
    %2609 = vmatprep.subr.mxu0 0.0
    %2610 = vmatpush1.msra.mxu0 %v218
    %2611 = vmatprep.subr.mxu0 0.0
    %2612 = vmatpush1.msra.mxu0 %v215
    %2613 = vmatprep.subr.mxu0 0.0
    %2614 = vmatpush1.msra.mxu0 %v212
    %2615 = vmatprep.subr.mxu0 0.0
    %2616 = vmatpush1.msra.mxu0 %v209
    %2617 = vmatprep.subr.mxu0 0.0
    %2618 = vmatpush1.msra.mxu0 %v206
    %2619 = vmatprep.subr.mxu0 0.0
    %2620 = vmatpush1.msra.mxu0 %v203
    %2621 = vmatprep.subr.mxu0 0.0
    %2622 = vmatpush2.msra.mxu0 0.0
    %2623 = vmatprep.subr.mxu0 0.0
    %2624 = vmatpush2.msra.mxu0 0.0
    %2625 = vmatprep.subr.mxu0 0.0
    %2626 = vmatpush2.msra.mxu0 0.0
    %2627 = vmatprep.subr.mxu0 0.0
    %2628 = vmatpush2.msra.mxu0 0.0
    %2629 = vmatprep.subr.mxu0 0.0
    %2630 = vmatpush2.msra.mxu0 0.0
    %2631 = vmatprep.subr.mxu0 0.0
    %2632 = vmatpush2.msra.mxu0 0.0
    %2633 = vmatprep.subr.mxu0 0.0
    %2634 = vmatpush2.msra.mxu0 0.0
    %2635 = vmatprep.subr.mxu0 0.0
    %2636 = vmatpush2.msra.mxu0 0.0
    %2637 = vmatprep.subr.mxu0 0.0
    %2638 = vmatpush2.msra.mxu0 0.0
    %2639 = vmatprep.subr.mxu0 0.0
    %2640 = vmatpush2.msra.mxu0 0.0
    %2641 = vmatprep.subr.mxu0 0.0
    %2642 = vmatpush2.msra.mxu0 0.0
    %2643 = vmatprep.subr.mxu0 0.0
    %2644 = vmatpush2.msra.mxu0 0.0
    %2645 = vmatprep.subr.mxu0 0.0
    %2646 = vmatpush2.msra.mxu0 0.0
    %2647 = vmatprep.subr.mxu0 0.0
    %2648 = vmatpush2.msra.mxu0 0.0
    %2649 = vmatprep.subr.mxu0 0.0
    %2650 = vmatpush2.msra.mxu0 0.0
    %2651 = vmatprep.subr.mxu0 0.0
    %2652 = vmatpush2.msra.mxu0 0.0
    %2653 = vmatprep.mubr.f32.mxu0 0.0
    %2654 = vmatmul.mubr.f32.gmra.mxu0 %v2213
    %v2655 = vpop.f32.mrf.mxu0
    %v2656 = vadd.f32 0.0, %v2655
    %v2657 = vpop.f32.mrf.mxu0
    %2658 = vdwg.mxu0
    %v2659 = vadd.f32 %v523, %v2585
    %v2660 = vxor.u32 %v2659, 2147483648
    %v2661 = vmul.f32 %v2660, 1.442695
    %v2662 = vpow.pop %v2661
    %v2663 = vadd.f32 %v2662, 1.0
    %v2664 = vrcp.pop %v2663
    %v2665 = vmul.f32 1.0, %v2664
    %v2666 = vadd.f32 %v525, %v2587
    %v2667 = vxor.u32 %v2666, 2147483648
    %v2668 = vmul.f32 %v2667, 1.442695
    %v2669 = vpow.pop %v2668
    %v2670 = vadd.f32 %v2669, 1.0
    %v2671 = vrcp.pop %v2670
    %v2672 = vmul.f32 1.0, %v2671
    %v2673 = vadd.f32 %v2656, %v350
    %v2674 = vmul.f32 %v2665, %v2673
    %v2675 = vadd.f32 %v632, %v2674
    %v2676 = vtanh.pop %v2675
    %v2677 = vsub.f32 1.0, %v2672
    %v2678 = vmul.f32 %v2677, %v2676
    %v2679 = vmul.f32 %v2672, %v2213
    %v2680 = vadd.f32 %v2678, %v2679
    %2681 = vmatprep.subr.mxu0 %v295
    %2682 = vmatpush1.msra.mxu0 %v294
    %2683 = vmatprep.subr.mxu0 %v292
    %2684 = vmatpush1.msra.mxu0 %v291
    %2685 = vmatprep.subr.mxu0 %v289
    %2686 = vmatpush1.msra.mxu0 %v288
    %2687 = vmatprep.subr.mxu0 %v286
    %2688 = vmatpush1.msra.mxu0 %v285
    %2689 = vmatprep.subr.mxu0 %v283
    %2690 = vmatpush1.msra.mxu0 %v282
    %2691 = vmatprep.subr.mxu0 %v280
    %2692 = vmatpush1.msra.mxu0 %v279
    %2693 = vmatprep.subr.mxu0 %v277
    %2694 = vmatpush1.msra.mxu0 %v276
    %2695 = vmatprep.subr.mxu0 %v274
    %2696 = vmatpush1.msra.mxu0 %v273
    %2697 = vmatprep.subr.mxu0 %v271
    %2698 = vmatpush1.msra.mxu0 %v270
    %2699 = vmatprep.subr.mxu0 %v268
    %2700 = vmatpush1.msra.mxu0 %v267
    %2701 = vmatprep.subr.mxu0 %v265
    %2702 = vmatpush1.msra.mxu0 %v264
    %2703 = vmatprep.subr.mxu0 %v262
    %2704 = vmatpush1.msra.mxu0 %v261
    %2705 = vmatprep.subr.mxu0 %v259
    %2706 = vmatpush1.msra.mxu0 %v258
    %2707 = vmatprep.subr.mxu0 %v256
    %2708 = vmatpush1.msra.mxu0 %v255
    %2709 = vmatprep.subr.mxu0 %v253
    %2710 = vmatpush1.msra.mxu0 %v252
    %2711 = vmatprep.subr.mxu0 %v250
    %2712 = vmatpush1.msra.mxu0 %v249
    %2713 = vmatprep.subr.mxu0 0.0
    %2714 = vmatpush2.msra.mxu0 0.0
    %2715 = vmatprep.subr.mxu0 0.0
    %2716 = vmatpush2.msra.mxu0 0.0
    %2717 = vmatprep.subr.mxu0 0.0
    %2718 = vmatpush2.msra.mxu0 0.0
    %2719 = vmatprep.subr.mxu0 0.0
    %2720 = vmatpush2.msra.mxu0 0.0
    %2721 = vmatprep.subr.mxu0 0.0
    %2722 = vmatpush2.msra.mxu0 0.0
    %2723 = vmatprep.subr.mxu0 0.0
    %2724 = vmatpush2.msra.mxu0 0.0
    %2725 = vmatprep.subr.mxu0 0.0
    %2726 = vmatpush2.msra.mxu0 0.0
    %2727 = vmatprep.subr.mxu0 0.0
    %2728 = vmatpush2.msra.mxu0 0.0
    %2729 = vmatprep.subr.mxu0 0.0
    %2730 = vmatpush2.msra.mxu0 0.0
    %2731 = vmatprep.subr.mxu0 0.0
    %2732 = vmatpush2.msra.mxu0 0.0
    %2733 = vmatprep.subr.mxu0 0.0
    %2734 = vmatpush2.msra.mxu0 0.0
    %2735 = vmatprep.subr.mxu0 0.0
    %2736 = vmatpush2.msra.mxu0 0.0
    %2737 = vmatprep.subr.mxu0 0.0
    %2738 = vmatpush2.msra.mxu0 0.0
    %2739 = vmatprep.subr.mxu0 0.0
    %2740 = vmatpush2.msra.mxu0 0.0
    %2741 = vmatprep.subr.mxu0 0.0
    %2742 = vmatpush2.msra.mxu0 0.0
    %2743 = vmatprep.subr.mxu0 0.0
    %2744 = vmatpush2.msra.mxu0 0.0
    %2745 = vmatprep.mubr.f32.mxu0 0.0
    %2746 = vmatmul.mubr.f32.gmra.mxu0 %v2680
    %v2747 = vpop.f32.mrf.mxu0
    %v2748 = vadd.f32 %v357, %v2747
    %v2749 = vpop.f32.mrf.mxu0
    %v2750 = vadd.f32 %v361, %v2749
    %2751 = vdwg.mxu0
    %2752 = vmatprep.subr.mxu0 0.0
    %2753 = vmatpush1.msra.mxu0 %v296
    %2754 = vmatprep.subr.mxu0 0.0
    %2755 = vmatpush1.msra.mxu0 %v293
    %2756 = vmatprep.subr.mxu0 0.0
    %2757 = vmatpush1.msra.mxu0 %v290
    %2758 = vmatprep.subr.mxu0 0.0
    %2759 = vmatpush1.msra.mxu0 %v287
    %2760 = vmatprep.subr.mxu0 0.0
    %2761 = vmatpush1.msra.mxu0 %v284
    %2762 = vmatprep.subr.mxu0 0.0
    %2763 = vmatpush1.msra.mxu0 %v281
    %2764 = vmatprep.subr.mxu0 0.0
    %2765 = vmatpush1.msra.mxu0 %v278
    %2766 = vmatprep.subr.mxu0 0.0
    %2767 = vmatpush1.msra.mxu0 %v275
    %2768 = vmatprep.subr.mxu0 0.0
    %2769 = vmatpush1.msra.mxu0 %v272
    %2770 = vmatprep.subr.mxu0 0.0
    %2771 = vmatpush1.msra.mxu0 %v269
    %2772 = vmatprep.subr.mxu0 0.0
    %2773 = vmatpush1.msra.mxu0 %v266
    %2774 = vmatprep.subr.mxu0 0.0
    %2775 = vmatpush1.msra.mxu0 %v263
    %2776 = vmatprep.subr.mxu0 0.0
    %2777 = vmatpush1.msra.mxu0 %v260
    %2778 = vmatprep.subr.mxu0 0.0
    %2779 = vmatpush1.msra.mxu0 %v257
    %2780 = vmatprep.subr.mxu0 0.0
    %2781 = vmatpush1.msra.mxu0 %v254
    %2782 = vmatprep.subr.mxu0 0.0
    %2783 = vmatpush1.msra.mxu0 %v251
    %2784 = vmatprep.subr.mxu0 0.0
    %2785 = vmatpush2.msra.mxu0 0.0
    %2786 = vmatprep.subr.mxu0 0.0
    %2787 = vmatpush2.msra.mxu0 0.0
    %2788 = vmatprep.subr.mxu0 0.0
    %2789 = vmatpush2.msra.mxu0 0.0
    %2790 = vmatprep.subr.mxu0 0.0
    %2791 = vmatpush2.msra.mxu0 0.0
    %2792 = vmatprep.subr.mxu0 0.0
    %2793 = vmatpush2.msra.mxu0 0.0
    %2794 = vmatprep.subr.mxu0 0.0
    %2795 = vmatpush2.msra.mxu0 0.0
    %2796 = vmatprep.subr.mxu0 0.0
    %2797 = vmatpush2.msra.mxu0 0.0
    %2798 = vmatprep.subr.mxu0 0.0
    %2799 = vmatpush2.msra.mxu0 0.0
    %2800 = vmatprep.subr.mxu0 0.0
    %2801 = vmatpush2.msra.mxu0 0.0
    %2802 = vmatprep.subr.mxu0 0.0
    %2803 = vmatpush2.msra.mxu0 0.0
    %2804 = vmatprep.subr.mxu0 0.0
    %2805 = vmatpush2.msra.mxu0 0.0
    %2806 = vmatprep.subr.mxu0 0.0
    %2807 = vmatpush2.msra.mxu0 0.0
    %2808 = vmatprep.subr.mxu0 0.0
    %2809 = vmatpush2.msra.mxu0 0.0
    %2810 = vmatprep.subr.mxu0 0.0
    %2811 = vmatpush2.msra.mxu0 0.0
    %2812 = vmatprep.subr.mxu0 0.0
    %2813 = vmatpush2.msra.mxu0 0.0
    %2814 = vmatprep.subr.mxu0 0.0
    %2815 = vmatpush2.msra.mxu0 0.0
    %2816 = vmatprep.mubr.f32.mxu0 0.0
    %2817 = vmatmul.mubr.f32.gmra.mxu0 %v2680
    %v2818 = vpop.f32.mrf.mxu0
    %v2819 = vadd.f32 %v365, %v2818
    %v2820 = vpop.f32.mrf.mxu0
    %2821 = vdwg.mxu0
    %2822 = vmatprep.subr.mxu0 %v343
    %2823 = vmatpush1.msra.mxu0 %v342
    %2824 = vmatprep.subr.mxu0 %v340
    %2825 = vmatpush1.msra.mxu0 %v339
    %2826 = vmatprep.subr.mxu0 %v337
    %2827 = vmatpush1.msra.mxu0 %v336
    %2828 = vmatprep.subr.mxu0 %v334
    %2829 = vmatpush1.msra.mxu0 %v333
    %2830 = vmatprep.subr.mxu0 %v331
    %2831 = vmatpush1.msra.mxu0 %v330
    %2832 = vmatprep.subr.mxu0 %v328
    %2833 = vmatpush1.msra.mxu0 %v327
    %2834 = vmatprep.subr.mxu0 %v325
    %2835 = vmatpush1.msra.mxu0 %v324
    %2836 = vmatprep.subr.mxu0 %v322
    %2837 = vmatpush1.msra.mxu0 %v321
    %2838 = vmatprep.subr.mxu0 %v319
    %2839 = vmatpush1.msra.mxu0 %v318
    %2840 = vmatprep.subr.mxu0 %v316
    %2841 = vmatpush1.msra.mxu0 %v315
    %2842 = vmatprep.subr.mxu0 %v313
    %2843 = vmatpush1.msra.mxu0 %v312
    %2844 = vmatprep.subr.mxu0 %v310
    %2845 = vmatpush1.msra.mxu0 %v309
    %2846 = vmatprep.subr.mxu0 %v307
    %2847 = vmatpush1.msra.mxu0 %v306
    %2848 = vmatprep.subr.mxu0 %v304
    %2849 = vmatpush1.msra.mxu0 %v303
    %2850 = vmatprep.subr.mxu0 %v301
    %2851 = vmatpush1.msra.mxu0 %v300
    %2852 = vmatprep.subr.mxu0 %v298
    %2853 = vmatpush1.msra.mxu0 %v297
    %2854 = vmatprep.subr.mxu0 0.0
    %2855 = vmatpush2.msra.mxu0 0.0
    %2856 = vmatprep.subr.mxu0 0.0
    %2857 = vmatpush2.msra.mxu0 0.0
    %2858 = vmatprep.subr.mxu0 0.0
    %2859 = vmatpush2.msra.mxu0 0.0
    %2860 = vmatprep.subr.mxu0 0.0
    %2861 = vmatpush2.msra.mxu0 0.0
    %2862 = vmatprep.subr.mxu0 0.0
    %2863 = vmatpush2.msra.mxu0 0.0
    %2864 = vmatprep.subr.mxu0 0.0
    %2865 = vmatpush2.msra.mxu0 0.0
    %2866 = vmatprep.subr.mxu0 0.0
    %2867 = vmatpush2.msra.mxu0 0.0
    %2868 = vmatprep.subr.mxu0 0.0
    %2869 = vmatpush2.msra.mxu0 0.0
    %2870 = vmatprep.subr.mxu0 0.0
    %2871 = vmatpush2.msra.mxu0 0.0
    %2872 = vmatprep.subr.mxu0 0.0
    %2873 = vmatpush2.msra.mxu0 0.0
    %2874 = vmatprep.subr.mxu0 0.0
    %2875 = vmatpush2.msra.mxu0 0.0
    %2876 = vmatprep.subr.mxu0 0.0
    %2877 = vmatpush2.msra.mxu0 0.0
    %2878 = vmatprep.subr.mxu0 0.0
    %2879 = vmatpush2.msra.mxu0 0.0
    %2880 = vmatprep.subr.mxu0 0.0
    %2881 = vmatpush2.msra.mxu0 0.0
    %2882 = vmatprep.subr.mxu0 0.0
    %2883 = vmatpush2.msra.mxu0 0.0
    %2884 = vmatprep.subr.mxu0 0.0
    %2885 = vmatpush2.msra.mxu0 0.0
    %2886 = vmatprep.mubr.f32.mxu0 0.0
    %2887 = vmatmul.mubr.f32.gmra.mxu0 %v2517
    %v2888 = vpop.f32.mrf.mxu0
    %v2889 = vadd.f32 0.0, %v2888
    %v2890 = vpop.f32.mrf.mxu0
    %v2891 = vadd.f32 0.0, %v2890
    %2892 = vdwg.mxu0
    %2893 = vmatprep.subr.mxu0 0.0
    %2894 = vmatpush1.msra.mxu0 %v344
    %2895 = vmatprep.subr.mxu0 0.0
    %2896 = vmatpush1.msra.mxu0 %v341
    %2897 = vmatprep.subr.mxu0 0.0
    %2898 = vmatpush1.msra.mxu0 %v338
    %2899 = vmatprep.subr.mxu0 0.0
    %2900 = vmatpush1.msra.mxu0 %v335
    %2901 = vmatprep.subr.mxu0 0.0
    %2902 = vmatpush1.msra.mxu0 %v332
    %2903 = vmatprep.subr.mxu0 0.0
    %2904 = vmatpush1.msra.mxu0 %v329
    %2905 = vmatprep.subr.mxu0 0.0
    %2906 = vmatpush1.msra.mxu0 %v326
    %2907 = vmatprep.subr.mxu0 0.0
    %2908 = vmatpush1.msra.mxu0 %v323
    %2909 = vmatprep.subr.mxu0 0.0
    %2910 = vmatpush1.msra.mxu0 %v320
    %2911 = vmatprep.subr.mxu0 0.0
    %2912 = vmatpush1.msra.mxu0 %v317
    %2913 = vmatprep.subr.mxu0 0.0
    %2914 = vmatpush1.msra.mxu0 %v314
    %2915 = vmatprep.subr.mxu0 0.0
    %2916 = vmatpush1.msra.mxu0 %v311
    %2917 = vmatprep.subr.mxu0 0.0
    %2918 = vmatpush1.msra.mxu0 %v308
    %2919 = vmatprep.subr.mxu0 0.0
    %2920 = vmatpush1.msra.mxu0 %v305
    %2921 = vmatprep.subr.mxu0 0.0
    %2922 = vmatpush1.msra.mxu0 %v302
    %2923 = vmatprep.subr.mxu0 0.0
    %2924 = vmatpush1.msra.mxu0 %v299
    %2925 = vmatprep.subr.mxu0 0.0
    %2926 = vmatpush2.msra.mxu0 0.0
    %2927 = vmatprep.subr.mxu0 0.0
    %2928 = vmatpush2.msra.mxu0 0.0
    %2929 = vmatprep.subr.mxu0 0.0
    %2930 = vmatpush2.msra.mxu0 0.0
    %2931 = vmatprep.subr.mxu0 0.0
    %2932 = vmatpush2.msra.mxu0 0.0
    %2933 = vmatprep.subr.mxu0 0.0
    %2934 = vmatpush2.msra.mxu0 0.0
    %2935 = vmatprep.subr.mxu0 0.0
    %2936 = vmatpush2.msra.mxu0 0.0
    %2937 = vmatprep.subr.mxu0 0.0
    %2938 = vmatpush2.msra.mxu0 0.0
    %2939 = vmatprep.subr.mxu0 0.0
    %2940 = vmatpush2.msra.mxu0 0.0
    %2941 = vmatprep.subr.mxu0 0.0
    %2942 = vmatpush2.msra.mxu0 0.0
    %2943 = vmatprep.subr.mxu0 0.0
    %2944 = vmatpush2.msra.mxu0 0.0
    %2945 = vmatprep.subr.mxu0 0.0
    %2946 = vmatpush2.msra.mxu0 0.0
    %2947 = vmatprep.subr.mxu0 0.0
    %2948 = vmatpush2.msra.mxu0 0.0
    %2949 = vmatprep.subr.mxu0 0.0
    %2950 = vmatpush2.msra.mxu0 0.0
    %2951 = vmatprep.subr.mxu0 0.0
    %2952 = vmatpush2.msra.mxu0 0.0
    %2953 = vmatprep.subr.mxu0 0.0
    %2954 = vmatpush2.msra.mxu0 0.0
    %2955 = vmatprep.subr.mxu0 0.0
    %2956 = vmatpush2.msra.mxu0 0.0
    %2957 = vmatprep.mubr.f32.mxu0 0.0
    %2958 = vmatmul.mubr.f32.gmra.mxu0 %v2517
    %v2959 = vpop.f32.mrf.mxu0
    %v2960 = vadd.f32 0.0, %v2959
    %v2961 = vpop.f32.mrf.mxu0
    %2962 = vdwg.mxu0
    %v2963 = vadd.f32 %v2748, %v2889
    %v2964 = vxor.u32 %v2963, 2147483648
    %v2965 = vmul.f32 %v2964, 1.442695
    %v2966 = vpow.pop %v2965
    %v2967 = vadd.f32 %v2966, 1.0
    %v2968 = vrcp.pop %v2967
    %v2969 = vmul.f32 1.0, %v2968
    %v2970 = vadd.f32 %v2750, %v2891
    %v2971 = vxor.u32 %v2970, 2147483648
    %v2972 = vmul.f32 %v2971, 1.442695
    %v2973 = vpow.pop %v2972
    %v2974 = vadd.f32 %v2973, 1.0
    %v2975 = vrcp.pop %v2974
    %v2976 = vmul.f32 1.0, %v2975
    %v2977 = vadd.f32 %v2960, %v374
    %v2978 = vmul.f32 %v2969, %v2977
    %v2979 = vadd.f32 %v2819, %v2978
    %v2980 = vtanh.pop %v2979
    %v2981 = vsub.f32 1.0, %v2976
    %v2982 = vmul.f32 %v2981, %v2980
    %v2983 = vmul.f32 %v2976, %v2517
    %v2984 = vadd.f32 %v2982, %v2983
    %2985 = vmatprep.subr.mxu0 %v247
    %2986 = vmatpush1.msra.mxu0 %v246
    %2987 = vmatprep.subr.mxu0 %v244
    %2988 = vmatpush1.msra.mxu0 %v243
    %2989 = vmatprep.subr.mxu0 %v241
    %2990 = vmatpush1.msra.mxu0 %v240
    %2991 = vmatprep.subr.mxu0 %v238
    %2992 = vmatpush1.msra.mxu0 %v237
    %2993 = vmatprep.subr.mxu0 %v235
    %2994 = vmatpush1.msra.mxu0 %v234
    %2995 = vmatprep.subr.mxu0 %v232
    %2996 = vmatpush1.msra.mxu0 %v231
    %2997 = vmatprep.subr.mxu0 %v229
    %2998 = vmatpush1.msra.mxu0 %v228
    %2999 = vmatprep.subr.mxu0 %v226
    %3000 = vmatpush1.msra.mxu0 %v225
    %3001 = vmatprep.subr.mxu0 %v223
    %3002 = vmatpush1.msra.mxu0 %v222
    %3003 = vmatprep.subr.mxu0 %v220
    %3004 = vmatpush1.msra.mxu0 %v219
    %3005 = vmatprep.subr.mxu0 %v217
    %3006 = vmatpush1.msra.mxu0 %v216
    %3007 = vmatprep.subr.mxu0 %v214
    %3008 = vmatpush1.msra.mxu0 %v213
    %3009 = vmatprep.subr.mxu0 %v211
    %3010 = vmatpush1.msra.mxu0 %v210
    %3011 = vmatprep.subr.mxu0 %v208
    %3012 = vmatpush1.msra.mxu0 %v207
    %3013 = vmatprep.subr.mxu0 %v205
    %3014 = vmatpush1.msra.mxu0 %v204
    %3015 = vmatprep.subr.mxu0 %v202
    %3016 = vmatpush1.msra.mxu0 %v201
    %3017 = vmatprep.subr.mxu0 0.0
    %3018 = vmatpush2.msra.mxu0 0.0
    %3019 = vmatprep.subr.mxu0 0.0
    %3020 = vmatpush2.msra.mxu0 0.0
    %3021 = vmatprep.subr.mxu0 0.0
    %3022 = vmatpush2.msra.mxu0 0.0
    %3023 = vmatprep.subr.mxu0 0.0
    %3024 = vmatpush2.msra.mxu0 0.0
    %3025 = vmatprep.subr.mxu0 0.0
    %3026 = vmatpush2.msra.mxu0 0.0
    %3027 = vmatprep.subr.mxu0 0.0
    %3028 = vmatpush2.msra.mxu0 0.0
    %3029 = vmatprep.subr.mxu0 0.0
    %3030 = vmatpush2.msra.mxu0 0.0
    %3031 = vmatprep.subr.mxu0 0.0
    %3032 = vmatpush2.msra.mxu0 0.0
    %3033 = vmatprep.subr.mxu0 0.0
    %3034 = vmatpush2.msra.mxu0 0.0
    %3035 = vmatprep.subr.mxu0 0.0
    %3036 = vmatpush2.msra.mxu0 0.0
    %3037 = vmatprep.subr.mxu0 0.0
    %3038 = vmatpush2.msra.mxu0 0.0
    %3039 = vmatprep.subr.mxu0 0.0
    %3040 = vmatpush2.msra.mxu0 0.0
    %3041 = vmatprep.subr.mxu0 0.0
    %3042 = vmatpush2.msra.mxu0 0.0
    %3043 = vmatprep.subr.mxu0 0.0
    %3044 = vmatpush2.msra.mxu0 0.0
    %3045 = vmatprep.subr.mxu0 0.0
    %3046 = vmatpush2.msra.mxu0 0.0
    %3047 = vmatprep.subr.mxu0 0.0
    %3048 = vmatpush2.msra.mxu0 0.0
    %3049 = vmatprep.mubr.f32.mxu0 0.0
    %3050 = vmatmul.mubr.f32.gmra.mxu0 %v2680
    %v3051 = vpop.f32.mrf.mxu0
    %v3052 = vadd.f32 0.0, %v3051
    %v3053 = vpop.f32.mrf.mxu0
    %v3054 = vadd.f32 0.0, %v3053
    %3055 = vdwg.mxu0
    %3056 = vmatprep.subr.mxu0 0.0
    %3057 = vmatpush1.msra.mxu0 %v248
    %3058 = vmatprep.subr.mxu0 0.0
    %3059 = vmatpush1.msra.mxu0 %v245
    %3060 = vmatprep.subr.mxu0 0.0
    %3061 = vmatpush1.msra.mxu0 %v242
    %3062 = vmatprep.subr.mxu0 0.0
    %3063 = vmatpush1.msra.mxu0 %v239
    %3064 = vmatprep.subr.mxu0 0.0
    %3065 = vmatpush1.msra.mxu0 %v236
    %3066 = vmatprep.subr.mxu0 0.0
    %3067 = vmatpush1.msra.mxu0 %v233
    %3068 = vmatprep.subr.mxu0 0.0
    %3069 = vmatpush1.msra.mxu0 %v230
    %3070 = vmatprep.subr.mxu0 0.0
    %3071 = vmatpush1.msra.mxu0 %v227
    %3072 = vmatprep.subr.mxu0 0.0
    %3073 = vmatpush1.msra.mxu0 %v224
    %3074 = vmatprep.subr.mxu0 0.0
    %3075 = vmatpush1.msra.mxu0 %v221
    %3076 = vmatprep.subr.mxu0 0.0
    %3077 = vmatpush1.msra.mxu0 %v218
    %3078 = vmatprep.subr.mxu0 0.0
    %3079 = vmatpush1.msra.mxu0 %v215
    %3080 = vmatprep.subr.mxu0 0.0
    %3081 = vmatpush1.msra.mxu0 %v212
    %3082 = vmatprep.subr.mxu0 0.0
    %3083 = vmatpush1.msra.mxu0 %v209
    %3084 = vmatprep.subr.mxu0 0.0
    %3085 = vmatpush1.msra.mxu0 %v206
    %3086 = vmatprep.subr.mxu0 0.0
    %3087 = vmatpush1.msra.mxu0 %v203
    %3088 = vmatprep.subr.mxu0 0.0
    %3089 = vmatpush2.msra.mxu0 0.0
    %3090 = vmatprep.subr.mxu0 0.0
    %3091 = vmatpush2.msra.mxu0 0.0
    %3092 = vmatprep.subr.mxu0 0.0
    %3093 = vmatpush2.msra.mxu0 0.0
    %3094 = vmatprep.subr.mxu0 0.0
    %3095 = vmatpush2.msra.mxu0 0.0
    %3096 = vmatprep.subr.mxu0 0.0
    %3097 = vmatpush2.msra.mxu0 0.0
    %3098 = vmatprep.subr.mxu0 0.0
    %3099 = vmatpush2.msra.mxu0 0.0
    %3100 = vmatprep.subr.mxu0 0.0
    %3101 = vmatpush2.msra.mxu0 0.0
    %3102 = vmatprep.subr.mxu0 0.0
    %3103 = vmatpush2.msra.mxu0 0.0
    %3104 = vmatprep.subr.mxu0 0.0
    %3105 = vmatpush2.msra.mxu0 0.0
    %3106 = vmatprep.subr.mxu0 0.0
    %3107 = vmatpush2.msra.mxu0 0.0
    %3108 = vmatprep.subr.mxu0 0.0
    %3109 = vmatpush2.msra.mxu0 0.0
    %3110 = vmatprep.subr.mxu0 0.0
    %3111 = vmatpush2.msra.mxu0 0.0
    %3112 = vmatprep.subr.mxu0 0.0
    %3113 = vmatpush2.msra.mxu0 0.0
    %3114 = vmatprep.subr.mxu0 0.0
    %3115 = vmatpush2.msra.mxu0 0.0
    %3116 = vmatprep.subr.mxu0 0.0
    %3117 = vmatpush2.msra.mxu0 0.0
    %3118 = vmatprep.subr.mxu0 0.0
    %3119 = vmatpush2.msra.mxu0 0.0
    %3120 = vmatprep.mubr.f32.mxu0 0.0
    %3121 = vmatmul.mubr.f32.gmra.mxu0 %v2680
    %v3122 = vpop.f32.mrf.mxu0
    %v3123 = vadd.f32 0.0, %v3122
    %v3124 = vpop.f32.mrf.mxu0
    %3125 = vdwg.mxu0
    %v3126 = vadd.f32 %v529, %v3052
    %v3127 = vxor.u32 %v3126, 2147483648
    %v3128 = vmul.f32 %v3127, 1.442695
    %v3129 = vpow.pop %v3128
    %v3130 = vadd.f32 %v3129, 1.0
    %v3131 = vrcp.pop %v3130
    %v3132 = vmul.f32 1.0, %v3131
    %v3133 = vadd.f32 %v531, %v3054
    %v3134 = vxor.u32 %v3133, 2147483648
    %v3135 = vmul.f32 %v3134, 1.442695
    %v3136 = vpow.pop %v3135
    %v3137 = vadd.f32 %v3136, 1.0
    %v3138 = vrcp.pop %v3137
    %v3139 = vmul.f32 1.0, %v3138
    %v3140 = vadd.f32 %v3123, %v350
    %v3141 = vmul.f32 %v3132, %v3140
    %v3142 = vadd.f32 %v637, %v3141
    %v3143 = vtanh.pop %v3142
    %v3144 = vsub.f32 1.0, %v3139
    %v3145 = vmul.f32 %v3144, %v3143
    %v3146 = vmul.f32 %v3139, %v2680
    %v3147 = vadd.f32 %v3145, %v3146
    %3148 = vmatprep.subr.mxu0 %v295
    %3149 = vmatpush1.msra.mxu0 %v294
    %3150 = vmatprep.subr.mxu0 %v292
    %3151 = vmatpush1.msra.mxu0 %v291
    %3152 = vmatprep.subr.mxu0 %v289
    %3153 = vmatpush1.msra.mxu0 %v288
    %3154 = vmatprep.subr.mxu0 %v286
    %3155 = vmatpush1.msra.mxu0 %v285
    %3156 = vmatprep.subr.mxu0 %v283
    %3157 = vmatpush1.msra.mxu0 %v282
    %3158 = vmatprep.subr.mxu0 %v280
    %3159 = vmatpush1.msra.mxu0 %v279
    %3160 = vmatprep.subr.mxu0 %v277
    %3161 = vmatpush1.msra.mxu0 %v276
    %3162 = vmatprep.subr.mxu0 %v274
    %3163 = vmatpush1.msra.mxu0 %v273
    %3164 = vmatprep.subr.mxu0 %v271
    %3165 = vmatpush1.msra.mxu0 %v270
    %3166 = vmatprep.subr.mxu0 %v268
    %3167 = vmatpush1.msra.mxu0 %v267
    %3168 = vmatprep.subr.mxu0 %v265
    %3169 = vmatpush1.msra.mxu0 %v264
    %3170 = vmatprep.subr.mxu0 %v262
    %3171 = vmatpush1.msra.mxu0 %v261
    %3172 = vmatprep.subr.mxu0 %v259
    %3173 = vmatpush1.msra.mxu0 %v258
    %3174 = vmatprep.subr.mxu0 %v256
    %3175 = vmatpush1.msra.mxu0 %v255
    %3176 = vmatprep.subr.mxu0 %v253
    %3177 = vmatpush1.msra.mxu0 %v252
    %3178 = vmatprep.subr.mxu0 %v250
    %3179 = vmatpush1.msra.mxu0 %v249
    %3180 = vmatprep.subr.mxu0 0.0
    %3181 = vmatpush2.msra.mxu0 0.0
    %3182 = vmatprep.subr.mxu0 0.0
    %3183 = vmatpush2.msra.mxu0 0.0
    %3184 = vmatprep.subr.mxu0 0.0
    %3185 = vmatpush2.msra.mxu0 0.0
    %3186 = vmatprep.subr.mxu0 0.0
    %3187 = vmatpush2.msra.mxu0 0.0
    %3188 = vmatprep.subr.mxu0 0.0
    %3189 = vmatpush2.msra.mxu0 0.0
    %3190 = vmatprep.subr.mxu0 0.0
    %3191 = vmatpush2.msra.mxu0 0.0
    %3192 = vmatprep.subr.mxu0 0.0
    %3193 = vmatpush2.msra.mxu0 0.0
    %3194 = vmatprep.subr.mxu0 0.0
    %3195 = vmatpush2.msra.mxu0 0.0
    %3196 = vmatprep.subr.mxu0 0.0
    %3197 = vmatpush2.msra.mxu0 0.0
    %3198 = vmatprep.subr.mxu0 0.0
    %3199 = vmatpush2.msra.mxu0 0.0
    %3200 = vmatprep.subr.mxu0 0.0
    %3201 = vmatpush2.msra.mxu0 0.0
    %3202 = vmatprep.subr.mxu0 0.0
    %3203 = vmatpush2.msra.mxu0 0.0
    %3204 = vmatprep.subr.mxu0 0.0
    %3205 = vmatpush2.msra.mxu0 0.0
    %3206 = vmatprep.subr.mxu0 0.0
    %3207 = vmatpush2.msra.mxu0 0.0
    %3208 = vmatprep.subr.mxu0 0.0
    %3209 = vmatpush2.msra.mxu0 0.0
    %3210 = vmatprep.subr.mxu0 0.0
    %3211 = vmatpush2.msra.mxu0 0.0
    %3212 = vmatprep.mubr.f32.mxu0 0.0
    %3213 = vmatmul.mubr.f32.gmra.mxu0 %v3147
    %v3214 = vpop.f32.mrf.mxu0
    %v3215 = vadd.f32 %v357, %v3214
    %v3216 = vpop.f32.mrf.mxu0
    %v3217 = vadd.f32 %v361, %v3216
    %3218 = vdwg.mxu0
    %3219 = vmatprep.subr.mxu0 0.0
    %3220 = vmatpush1.msra.mxu0 %v296
    %3221 = vmatprep.subr.mxu0 0.0
    %3222 = vmatpush1.msra.mxu0 %v293
    %3223 = vmatprep.subr.mxu0 0.0
    %3224 = vmatpush1.msra.mxu0 %v290
    %3225 = vmatprep.subr.mxu0 0.0
    %3226 = vmatpush1.msra.mxu0 %v287
    %3227 = vmatprep.subr.mxu0 0.0
    %3228 = vmatpush1.msra.mxu0 %v284
    %3229 = vmatprep.subr.mxu0 0.0
    %3230 = vmatpush1.msra.mxu0 %v281
    %3231 = vmatprep.subr.mxu0 0.0
    %3232 = vmatpush1.msra.mxu0 %v278
    %3233 = vmatprep.subr.mxu0 0.0
    %3234 = vmatpush1.msra.mxu0 %v275
    %3235 = vmatprep.subr.mxu0 0.0
    %3236 = vmatpush1.msra.mxu0 %v272
    %3237 = vmatprep.subr.mxu0 0.0
    %3238 = vmatpush1.msra.mxu0 %v269
    %3239 = vmatprep.subr.mxu0 0.0
    %3240 = vmatpush1.msra.mxu0 %v266
    %3241 = vmatprep.subr.mxu0 0.0
    %3242 = vmatpush1.msra.mxu0 %v263
    %3243 = vmatprep.subr.mxu0 0.0
    %3244 = vmatpush1.msra.mxu0 %v260
    %3245 = vmatprep.subr.mxu0 0.0
    %3246 = vmatpush1.msra.mxu0 %v257
    %3247 = vmatprep.subr.mxu0 0.0
    %3248 = vmatpush1.msra.mxu0 %v254
    %3249 = vmatprep.subr.mxu0 0.0
    %3250 = vmatpush1.msra.mxu0 %v251
    %3251 = vmatprep.subr.mxu0 0.0
    %3252 = vmatpush2.msra.mxu0 0.0
    %3253 = vmatprep.subr.mxu0 0.0
    %3254 = vmatpush2.msra.mxu0 0.0
    %3255 = vmatprep.subr.mxu0 0.0
    %3256 = vmatpush2.msra.mxu0 0.0
    %3257 = vmatprep.subr.mxu0 0.0
    %3258 = vmatpush2.msra.mxu0 0.0
    %3259 = vmatprep.subr.mxu0 0.0
    %3260 = vmatpush2.msra.mxu0 0.0
    %3261 = vmatprep.subr.mxu0 0.0
    %3262 = vmatpush2.msra.mxu0 0.0
    %3263 = vmatprep.subr.mxu0 0.0
    %3264 = vmatpush2.msra.mxu0 0.0
    %3265 = vmatprep.subr.mxu0 0.0
    %3266 = vmatpush2.msra.mxu0 0.0
    %3267 = vmatprep.subr.mxu0 0.0
    %3268 = vmatpush2.msra.mxu0 0.0
    %3269 = vmatprep.subr.mxu0 0.0
    %3270 = vmatpush2.msra.mxu0 0.0
    %3271 = vmatprep.subr.mxu0 0.0
    %3272 = vmatpush2.msra.mxu0 0.0
    %3273 = vmatprep.subr.mxu0 0.0
    %3274 = vmatpush2.msra.mxu0 0.0
    %3275 = vmatprep.subr.mxu0 0.0
    %3276 = vmatpush2.msra.mxu0 0.0
    %3277 = vmatprep.subr.mxu0 0.0
    %3278 = vmatpush2.msra.mxu0 0.0
    %3279 = vmatprep.subr.mxu0 0.0
    %3280 = vmatpush2.msra.mxu0 0.0
    %3281 = vmatprep.subr.mxu0 0.0
    %3282 = vmatpush2.msra.mxu0 0.0
    %3283 = vmatprep.mubr.f32.mxu0 0.0
    %3284 = vmatmul.mubr.f32.gmra.mxu0 %v3147
    %v3285 = vpop.f32.mrf.mxu0
    %v3286 = vadd.f32 %v365, %v3285
    %v3287 = vpop.f32.mrf.mxu0
    %3288 = vdwg.mxu0
    %3289 = vmatprep.subr.mxu0 %v343
    %3290 = vmatpush1.msra.mxu0 %v342
    %3291 = vmatprep.subr.mxu0 %v340
    %3292 = vmatpush1.msra.mxu0 %v339
    %3293 = vmatprep.subr.mxu0 %v337
    %3294 = vmatpush1.msra.mxu0 %v336
    %3295 = vmatprep.subr.mxu0 %v334
    %3296 = vmatpush1.msra.mxu0 %v333
    %3297 = vmatprep.subr.mxu0 %v331
    %3298 = vmatpush1.msra.mxu0 %v330
    %3299 = vmatprep.subr.mxu0 %v328
    %3300 = vmatpush1.msra.mxu0 %v327
    %3301 = vmatprep.subr.mxu0 %v325
    %3302 = vmatpush1.msra.mxu0 %v324
    %3303 = vmatprep.subr.mxu0 %v322
    %3304 = vmatpush1.msra.mxu0 %v321
    %3305 = vmatprep.subr.mxu0 %v319
    %3306 = vmatpush1.msra.mxu0 %v318
    %3307 = vmatprep.subr.mxu0 %v316
    %3308 = vmatpush1.msra.mxu0 %v315
    %3309 = vmatprep.subr.mxu0 %v313
    %3310 = vmatpush1.msra.mxu0 %v312
    %3311 = vmatprep.subr.mxu0 %v310
    %3312 = vmatpush1.msra.mxu0 %v309
    %3313 = vmatprep.subr.mxu0 %v307
    %3314 = vmatpush1.msra.mxu0 %v306
    %3315 = vmatprep.subr.mxu0 %v304
    %3316 = vmatpush1.msra.mxu0 %v303
    %3317 = vmatprep.subr.mxu0 %v301
    %3318 = vmatpush1.msra.mxu0 %v300
    %3319 = vmatprep.subr.mxu0 %v298
    %3320 = vmatpush1.msra.mxu0 %v297
    %3321 = vmatprep.subr.mxu0 0.0
    %3322 = vmatpush2.msra.mxu0 0.0
    %3323 = vmatprep.subr.mxu0 0.0
    %3324 = vmatpush2.msra.mxu0 0.0
    %3325 = vmatprep.subr.mxu0 0.0
    %3326 = vmatpush2.msra.mxu0 0.0
    %3327 = vmatprep.subr.mxu0 0.0
    %3328 = vmatpush2.msra.mxu0 0.0
    %3329 = vmatprep.subr.mxu0 0.0
    %3330 = vmatpush2.msra.mxu0 0.0
    %3331 = vmatprep.subr.mxu0 0.0
    %3332 = vmatpush2.msra.mxu0 0.0
    %3333 = vmatprep.subr.mxu0 0.0
    %3334 = vmatpush2.msra.mxu0 0.0
    %3335 = vmatprep.subr.mxu0 0.0
    %3336 = vmatpush2.msra.mxu0 0.0
    %3337 = vmatprep.subr.mxu0 0.0
    %3338 = vmatpush2.msra.mxu0 0.0
    %3339 = vmatprep.subr.mxu0 0.0
    %3340 = vmatpush2.msra.mxu0 0.0
    %3341 = vmatprep.subr.mxu0 0.0
    %3342 = vmatpush2.msra.mxu0 0.0
    %3343 = vmatprep.subr.mxu0 0.0
    %3344 = vmatpush2.msra.mxu0 0.0
    %3345 = vmatprep.subr.mxu0 0.0
    %3346 = vmatpush2.msra.mxu0 0.0
    %3347 = vmatprep.subr.mxu0 0.0
    %3348 = vmatpush2.msra.mxu0 0.0
    %3349 = vmatprep.subr.mxu0 0.0
    %3350 = vmatpush2.msra.mxu0 0.0
    %3351 = vmatprep.subr.mxu0 0.0
    %3352 = vmatpush2.msra.mxu0 0.0
    %3353 = vmatprep.mubr.f32.mxu0 0.0
    %3354 = vmatmul.mubr.f32.gmra.mxu0 %v2984
    %v3355 = vpop.f32.mrf.mxu0
    %v3356 = vadd.f32 0.0, %v3355
    %v3357 = vpop.f32.mrf.mxu0
    %v3358 = vadd.f32 0.0, %v3357
    %3359 = vdwg.mxu0
    %3360 = vmatprep.subr.mxu0 0.0
    %3361 = vmatpush1.msra.mxu0 %v344
    %3362 = vmatprep.subr.mxu0 0.0
    %3363 = vmatpush1.msra.mxu0 %v341
    %3364 = vmatprep.subr.mxu0 0.0
    %3365 = vmatpush1.msra.mxu0 %v338
    %3366 = vmatprep.subr.mxu0 0.0
    %3367 = vmatpush1.msra.mxu0 %v335
    %3368 = vmatprep.subr.mxu0 0.0
    %3369 = vmatpush1.msra.mxu0 %v332
    %3370 = vmatprep.subr.mxu0 0.0
    %3371 = vmatpush1.msra.mxu0 %v329
    %3372 = vmatprep.subr.mxu0 0.0
    %3373 = vmatpush1.msra.mxu0 %v326
    %3374 = vmatprep.subr.mxu0 0.0
    %3375 = vmatpush1.msra.mxu0 %v323
    %3376 = vmatprep.subr.mxu0 0.0
    %3377 = vmatpush1.msra.mxu0 %v320
    %3378 = vmatprep.subr.mxu0 0.0
    %3379 = vmatpush1.msra.mxu0 %v317
    %3380 = vmatprep.subr.mxu0 0.0
    %3381 = vmatpush1.msra.mxu0 %v314
    %3382 = vmatprep.subr.mxu0 0.0
    %3383 = vmatpush1.msra.mxu0 %v311
    %3384 = vmatprep.subr.mxu0 0.0
    %3385 = vmatpush1.msra.mxu0 %v308
    %3386 = vmatprep.subr.mxu0 0.0
    %3387 = vmatpush1.msra.mxu0 %v305
    %3388 = vmatprep.subr.mxu0 0.0
    %3389 = vmatpush1.msra.mxu0 %v302
    %3390 = vmatprep.subr.mxu0 0.0
    %3391 = vmatpush1.msra.mxu0 %v299
    %3392 = vmatprep.subr.mxu0 0.0
    %3393 = vmatpush2.msra.mxu0 0.0
    %3394 = vmatprep.subr.mxu0 0.0
    %3395 = vmatpush2.msra.mxu0 0.0
    %3396 = vmatprep.subr.mxu0 0.0
    %3397 = vmatpush2.msra.mxu0 0.0
    %3398 = vmatprep.subr.mxu0 0.0
    %3399 = vmatpush2.msra.mxu0 0.0
    %3400 = vmatprep.subr.mxu0 0.0
    %3401 = vmatpush2.msra.mxu0 0.0
    %3402 = vmatprep.subr.mxu0 0.0
    %3403 = vmatpush2.msra.mxu0 0.0
    %3404 = vmatprep.subr.mxu0 0.0
    %3405 = vmatpush2.msra.mxu0 0.0
    %3406 = vmatprep.subr.mxu0 0.0
    %3407 = vmatpush2.msra.mxu0 0.0
    %3408 = vmatprep.subr.mxu0 0.0
    %3409 = vmatpush2.msra.mxu0 0.0
    %3410 = vmatprep.subr.mxu0 0.0
    %3411 = vmatpush2.msra.mxu0 0.0
    %3412 = vmatprep.subr.mxu0 0.0
    %3413 = vmatpush2.msra.mxu0 0.0
    %3414 = vmatprep.subr.mxu0 0.0
    %3415 = vmatpush2.msra.mxu0 0.0
    %3416 = vmatprep.subr.mxu0 0.0
    %3417 = vmatpush2.msra.mxu0 0.0
    %3418 = vmatprep.subr.mxu0 0.0
    %3419 = vmatpush2.msra.mxu0 0.0
    %3420 = vmatprep.subr.mxu0 0.0
    %3421 = vmatpush2.msra.mxu0 0.0
    %3422 = vmatprep.subr.mxu0 0.0
    %3423 = vmatpush2.msra.mxu0 0.0
    %3424 = vmatprep.mubr.f32.mxu0 0.0
    %3425 = vmatmul.mubr.f32.gmra.mxu0 %v2984
    %v3426 = vpop.f32.mrf.mxu0
    %v3427 = vadd.f32 0.0, %v3426
    %v3428 = vpop.f32.mrf.mxu0
    %3429 = vdwg.mxu0
    %v3430 = vadd.f32 %v3215, %v3356
    %v3431 = vxor.u32 %v3430, 2147483648
    %v3432 = vmul.f32 %v3431, 1.442695
    %v3433 = vpow.pop %v3432
    %v3434 = vadd.f32 %v3433, 1.0
    %v3435 = vrcp.pop %v3434
    %v3436 = vmul.f32 1.0, %v3435
    %v3437 = vadd.f32 %v3217, %v3358
    %v3438 = vxor.u32 %v3437, 2147483648
    %v3439 = vmul.f32 %v3438, 1.442695
    %v3440 = vpow.pop %v3439
    %v3441 = vadd.f32 %v3440, 1.0
    %v3442 = vrcp.pop %v3441
    %v3443 = vmul.f32 1.0, %v3442
    %v3444 = vadd.f32 %v3427, %v374
    %v3445 = vmul.f32 %v3436, %v3444
    %v3446 = vadd.f32 %v3286, %v3445
    %v3447 = vtanh.pop %v3446
    %v3448 = vsub.f32 1.0, %v3443
    %v3449 = vmul.f32 %v3448, %v3447
    %v3450 = vmul.f32 %v3443, %v2984
    %v3451 = vadd.f32 %v3449, %v3450
    %3452 = vmatprep.subr.mxu0 %v247
    %3453 = vmatpush1.msra.mxu0 %v246
    %3454 = vmatprep.subr.mxu0 %v244
    %3455 = vmatpush1.msra.mxu0 %v243
    %3456 = vmatprep.subr.mxu0 %v241
    %3457 = vmatpush1.msra.mxu0 %v240
    %3458 = vmatprep.subr.mxu0 %v238
    %3459 = vmatpush1.msra.mxu0 %v237
    %3460 = vmatprep.subr.mxu0 %v235
    %3461 = vmatpush1.msra.mxu0 %v234
    %3462 = vmatprep.subr.mxu0 %v232
    %3463 = vmatpush1.msra.mxu0 %v231
    %3464 = vmatprep.subr.mxu0 %v229
    %3465 = vmatpush1.msra.mxu0 %v228
    %3466 = vmatprep.subr.mxu0 %v226
    %3467 = vmatpush1.msra.mxu0 %v225
    %3468 = vmatprep.subr.mxu0 %v223
    %3469 = vmatpush1.msra.mxu0 %v222
    %3470 = vmatprep.subr.mxu0 %v220
    %3471 = vmatpush1.msra.mxu0 %v219
    %3472 = vmatprep.subr.mxu0 %v217
    %3473 = vmatpush1.msra.mxu0 %v216
    %3474 = vmatprep.subr.mxu0 %v214
    %3475 = vmatpush1.msra.mxu0 %v213
    %3476 = vmatprep.subr.mxu0 %v211
    %3477 = vmatpush1.msra.mxu0 %v210
    %3478 = vmatprep.subr.mxu0 %v208
    %3479 = vmatpush1.msra.mxu0 %v207
    %3480 = vmatprep.subr.mxu0 %v205
    %3481 = vmatpush1.msra.mxu0 %v204
    %3482 = vmatprep.subr.mxu0 %v202
    %3483 = vmatpush1.msra.mxu0 %v201
    %3484 = vmatprep.subr.mxu0 0.0
    %3485 = vmatpush2.msra.mxu0 0.0
    %3486 = vmatprep.subr.mxu0 0.0
    %3487 = vmatpush2.msra.mxu0 0.0
    %3488 = vmatprep.subr.mxu0 0.0
    %3489 = vmatpush2.msra.mxu0 0.0
    %3490 = vmatprep.subr.mxu0 0.0
    %3491 = vmatpush2.msra.mxu0 0.0
    %3492 = vmatprep.subr.mxu0 0.0
    %3493 = vmatpush2.msra.mxu0 0.0
    %3494 = vmatprep.subr.mxu0 0.0
    %3495 = vmatpush2.msra.mxu0 0.0
    %3496 = vmatprep.subr.mxu0 0.0
    %3497 = vmatpush2.msra.mxu0 0.0
    %3498 = vmatprep.subr.mxu0 0.0
    %3499 = vmatpush2.msra.mxu0 0.0
    %3500 = vmatprep.subr.mxu0 0.0
    %3501 = vmatpush2.msra.mxu0 0.0
    %3502 = vmatprep.subr.mxu0 0.0
    %3503 = vmatpush2.msra.mxu0 0.0
    %3504 = vmatprep.subr.mxu0 0.0
    %3505 = vmatpush2.msra.mxu0 0.0
    %3506 = vmatprep.subr.mxu0 0.0
    %3507 = vmatpush2.msra.mxu0 0.0
    %3508 = vmatprep.subr.mxu0 0.0
    %3509 = vmatpush2.msra.mxu0 0.0
    %3510 = vmatprep.subr.mxu0 0.0
    %3511 = vmatpush2.msra.mxu0 0.0
    %3512 = vmatprep.subr.mxu0 0.0
    %3513 = vmatpush2.msra.mxu0 0.0
    %3514 = vmatprep.subr.mxu0 0.0
    %3515 = vmatpush2.msra.mxu0 0.0
    %3516 = vmatprep.mubr.f32.mxu0 0.0
    %3517 = vmatmul.mubr.f32.gmra.mxu0 %v3147
    %v3518 = vpop.f32.mrf.mxu0
    %v3519 = vadd.f32 0.0, %v3518
    %v3520 = vpop.f32.mrf.mxu0
    %v3521 = vadd.f32 0.0, %v3520
    %3522 = vdwg.mxu0
    %3523 = vmatprep.subr.mxu0 0.0
    %3524 = vmatpush1.msra.mxu0 %v248
    %3525 = vmatprep.subr.mxu0 0.0
    %3526 = vmatpush1.msra.mxu0 %v245
    %3527 = vmatprep.subr.mxu0 0.0
    %3528 = vmatpush1.msra.mxu0 %v242
    %3529 = vmatprep.subr.mxu0 0.0
    %3530 = vmatpush1.msra.mxu0 %v239
    %3531 = vmatprep.subr.mxu0 0.0
    %3532 = vmatpush1.msra.mxu0 %v236
    %3533 = vmatprep.subr.mxu0 0.0
    %3534 = vmatpush1.msra.mxu0 %v233
    %3535 = vmatprep.subr.mxu0 0.0
    %3536 = vmatpush1.msra.mxu0 %v230
    %3537 = vmatprep.subr.mxu0 0.0
    %3538 = vmatpush1.msra.mxu0 %v227
    %3539 = vmatprep.subr.mxu0 0.0
    %3540 = vmatpush1.msra.mxu0 %v224
    %3541 = vmatprep.subr.mxu0 0.0
    %3542 = vmatpush1.msra.mxu0 %v221
    %3543 = vmatprep.subr.mxu0 0.0
    %3544 = vmatpush1.msra.mxu0 %v218
    %3545 = vmatprep.subr.mxu0 0.0
    %3546 = vmatpush1.msra.mxu0 %v215
    %3547 = vmatprep.subr.mxu0 0.0
    %3548 = vmatpush1.msra.mxu0 %v212
    %3549 = vmatprep.subr.mxu0 0.0
    %3550 = vmatpush1.msra.mxu0 %v209
    %3551 = vmatprep.subr.mxu0 0.0
    %3552 = vmatpush1.msra.mxu0 %v206
    %3553 = vmatprep.subr.mxu0 0.0
    %3554 = vmatpush1.msra.mxu0 %v203
    %3555 = vmatprep.subr.mxu0 0.0
    %3556 = vmatpush2.msra.mxu0 0.0
    %3557 = vmatprep.subr.mxu0 0.0
    %3558 = vmatpush2.msra.mxu0 0.0
    %3559 = vmatprep.subr.mxu0 0.0
    %3560 = vmatpush2.msra.mxu0 0.0
    %3561 = vmatprep.subr.mxu0 0.0
    %3562 = vmatpush2.msra.mxu0 0.0
    %3563 = vmatprep.subr.mxu0 0.0
    %3564 = vmatpush2.msra.mxu0 0.0
    %3565 = vmatprep.subr.mxu0 0.0
    %3566 = vmatpush2.msra.mxu0 0.0
    %3567 = vmatprep.subr.mxu0 0.0
    %3568 = vmatpush2.msra.mxu0 0.0
    %3569 = vmatprep.subr.mxu0 0.0
    %3570 = vmatpush2.msra.mxu0 0.0
    %3571 = vmatprep.subr.mxu0 0.0
    %3572 = vmatpush2.msra.mxu0 0.0
    %3573 = vmatprep.subr.mxu0 0.0
    %3574 = vmatpush2.msra.mxu0 0.0
    %3575 = vmatprep.subr.mxu0 0.0
    %3576 = vmatpush2.msra.mxu0 0.0
    %3577 = vmatprep.subr.mxu0 0.0
    %3578 = vmatpush2.msra.mxu0 0.0
    %3579 = vmatprep.subr.mxu0 0.0
    %3580 = vmatpush2.msra.mxu0 0.0
    %3581 = vmatprep.subr.mxu0 0.0
    %3582 = vmatpush2.msra.mxu0 0.0
    %3583 = vmatprep.subr.mxu0 0.0
    %3584 = vmatpush2.msra.mxu0 0.0
    %3585 = vmatprep.subr.mxu0 0.0
    %3586 = vmatpush2.msra.mxu0 0.0
    %3587 = vmatprep.mubr.f32.mxu0 0.0
    %3588 = vmatmul.mubr.f32.gmra.mxu0 %v3147
    %v3589 = vpop.f32.mrf.mxu0
    %v3590 = vadd.f32 0.0, %v3589
    %v3591 = vpop.f32.mrf.mxu0
    %3592 = vdwg.mxu0
    %v3593 = vadd.f32 %v535, %v3519
    %v3594 = vxor.u32 %v3593, 2147483648
    %v3595 = vmul.f32 %v3594, 1.442695
    %v3596 = vpow.pop %v3595
    %v3597 = vadd.f32 %v3596, 1.0
    %v3598 = vrcp.pop %v3597
    %v3599 = vmul.f32 1.0, %v3598
    %v3600 = vadd.f32 %v537, %v3521
    %v3601 = vxor.u32 %v3600, 2147483648
    %v3602 = vmul.f32 %v3601, 1.442695
    %v3603 = vpow.pop %v3602
    %v3604 = vadd.f32 %v3603, 1.0
    %v3605 = vrcp.pop %v3604
    %v3606 = vmul.f32 1.0, %v3605
    %v3607 = vadd.f32 %v3590, %v350
    %v3608 = vmul.f32 %v3599, %v3607
    %v3609 = vadd.f32 %v642, %v3608
    %v3610 = vtanh.pop %v3609
    %v3611 = vsub.f32 1.0, %v3606
    %v3612 = vmul.f32 %v3611, %v3610
    %v3613 = vmul.f32 %v3606, %v3147
    %v3614 = vadd.f32 %v3612, %v3613
    %3615 = vmatprep.subr.mxu0 %v295
    %3616 = vmatpush1.msra.mxu0 %v294
    %3617 = vmatprep.subr.mxu0 %v292
    %3618 = vmatpush1.msra.mxu0 %v291
    %3619 = vmatprep.subr.mxu0 %v289
    %3620 = vmatpush1.msra.mxu0 %v288
    %3621 = vmatprep.subr.mxu0 %v286
    %3622 = vmatpush1.msra.mxu0 %v285
    %3623 = vmatprep.subr.mxu0 %v283
    %3624 = vmatpush1.msra.mxu0 %v282
    %3625 = vmatprep.subr.mxu0 %v280
    %3626 = vmatpush1.msra.mxu0 %v279
    %3627 = vmatprep.subr.mxu0 %v277
    %3628 = vmatpush1.msra.mxu0 %v276
    %3629 = vmatprep.subr.mxu0 %v274
    %3630 = vmatpush1.msra.mxu0 %v273
    %3631 = vmatprep.subr.mxu0 %v271
    %3632 = vmatpush1.msra.mxu0 %v270
    %3633 = vmatprep.subr.mxu0 %v268
    %3634 = vmatpush1.msra.mxu0 %v267
    %3635 = vmatprep.subr.mxu0 %v265
    %3636 = vmatpush1.msra.mxu0 %v264
    %3637 = vmatprep.subr.mxu0 %v262
    %3638 = vmatpush1.msra.mxu0 %v261
    %3639 = vmatprep.subr.mxu0 %v259
    %3640 = vmatpush1.msra.mxu0 %v258
    %3641 = vmatprep.subr.mxu0 %v256
    %3642 = vmatpush1.msra.mxu0 %v255
    %3643 = vmatprep.subr.mxu0 %v253
    %3644 = vmatpush1.msra.mxu0 %v252
    %3645 = vmatprep.subr.mxu0 %v250
    %3646 = vmatpush1.msra.mxu0 %v249
    %3647 = vmatprep.subr.mxu0 0.0
    %3648 = vmatpush2.msra.mxu0 0.0
    %3649 = vmatprep.subr.mxu0 0.0
    %3650 = vmatpush2.msra.mxu0 0.0
    %3651 = vmatprep.subr.mxu0 0.0
    %3652 = vmatpush2.msra.mxu0 0.0
    %3653 = vmatprep.subr.mxu0 0.0
    %3654 = vmatpush2.msra.mxu0 0.0
    %3655 = vmatprep.subr.mxu0 0.0
    %3656 = vmatpush2.msra.mxu0 0.0
    %3657 = vmatprep.subr.mxu0 0.0
    %3658 = vmatpush2.msra.mxu0 0.0
    %3659 = vmatprep.subr.mxu0 0.0
    %3660 = vmatpush2.msra.mxu0 0.0
    %3661 = vmatprep.subr.mxu0 0.0
    %3662 = vmatpush2.msra.mxu0 0.0
    %3663 = vmatprep.subr.mxu0 0.0
    %3664 = vmatpush2.msra.mxu0 0.0
    %3665 = vmatprep.subr.mxu0 0.0
    %3666 = vmatpush2.msra.mxu0 0.0
    %3667 = vmatprep.subr.mxu0 0.0
    %3668 = vmatpush2.msra.mxu0 0.0
    %3669 = vmatprep.subr.mxu0 0.0
    %3670 = vmatpush2.msra.mxu0 0.0
    %3671 = vmatprep.subr.mxu0 0.0
    %3672 = vmatpush2.msra.mxu0 0.0
    %3673 = vmatprep.subr.mxu0 0.0
    %3674 = vmatpush2.msra.mxu0 0.0
    %3675 = vmatprep.subr.mxu0 0.0
    %3676 = vmatpush2.msra.mxu0 0.0
    %3677 = vmatprep.subr.mxu0 0.0
    %3678 = vmatpush2.msra.mxu0 0.0
    %3679 = vmatprep.mubr.f32.mxu0 0.0
    %3680 = vmatmul.mubr.f32.gmra.mxu0 %v3614
    %v3681 = vpop.f32.mrf.mxu0
    %v3682 = vadd.f32 %v357, %v3681
    %v3683 = vpop.f32.mrf.mxu0
    %v3684 = vadd.f32 %v361, %v3683
    %3685 = vdwg.mxu0
    %3686 = vmatprep.subr.mxu0 0.0
    %3687 = vmatpush1.msra.mxu0 %v296
    %3688 = vmatprep.subr.mxu0 0.0
    %3689 = vmatpush1.msra.mxu0 %v293
    %3690 = vmatprep.subr.mxu0 0.0
    %3691 = vmatpush1.msra.mxu0 %v290
    %3692 = vmatprep.subr.mxu0 0.0
    %3693 = vmatpush1.msra.mxu0 %v287
    %3694 = vmatprep.subr.mxu0 0.0
    %3695 = vmatpush1.msra.mxu0 %v284
    %3696 = vmatprep.subr.mxu0 0.0
    %3697 = vmatpush1.msra.mxu0 %v281
    %3698 = vmatprep.subr.mxu0 0.0
    %3699 = vmatpush1.msra.mxu0 %v278
    %3700 = vmatprep.subr.mxu0 0.0
    %3701 = vmatpush1.msra.mxu0 %v275
    %3702 = vmatprep.subr.mxu0 0.0
    %3703 = vmatpush1.msra.mxu0 %v272
    %3704 = vmatprep.subr.mxu0 0.0
    %3705 = vmatpush1.msra.mxu0 %v269
    %3706 = vmatprep.subr.mxu0 0.0
    %3707 = vmatpush1.msra.mxu0 %v266
    %3708 = vmatprep.subr.mxu0 0.0
    %3709 = vmatpush1.msra.mxu0 %v263
    %3710 = vmatprep.subr.mxu0 0.0
    %3711 = vmatpush1.msra.mxu0 %v260
    %3712 = vmatprep.subr.mxu0 0.0
    %3713 = vmatpush1.msra.mxu0 %v257
    %3714 = vmatprep.subr.mxu0 0.0
    %3715 = vmatpush1.msra.mxu0 %v254
    %3716 = vmatprep.subr.mxu0 0.0
    %3717 = vmatpush1.msra.mxu0 %v251
    %3718 = vmatprep.subr.mxu0 0.0
    %3719 = vmatpush2.msra.mxu0 0.0
    %3720 = vmatprep.subr.mxu0 0.0
    %3721 = vmatpush2.msra.mxu0 0.0
    %3722 = vmatprep.subr.mxu0 0.0
    %3723 = vmatpush2.msra.mxu0 0.0
    %3724 = vmatprep.subr.mxu0 0.0
    %3725 = vmatpush2.msra.mxu0 0.0
    %3726 = vmatprep.subr.mxu0 0.0
    %3727 = vmatpush2.msra.mxu0 0.0
    %3728 = vmatprep.subr.mxu0 0.0
    %3729 = vmatpush2.msra.mxu0 0.0
    %3730 = vmatprep.subr.mxu0 0.0
    %3731 = vmatpush2.msra.mxu0 0.0
    %3732 = vmatprep.subr.mxu0 0.0
    %3733 = vmatpush2.msra.mxu0 0.0
    %3734 = vmatprep.subr.mxu0 0.0
    %3735 = vmatpush2.msra.mxu0 0.0
    %3736 = vmatprep.subr.mxu0 0.0
    %3737 = vmatpush2.msra.mxu0 0.0
    %3738 = vmatprep.subr.mxu0 0.0
    %3739 = vmatpush2.msra.mxu0 0.0
    %3740 = vmatprep.subr.mxu0 0.0
    %3741 = vmatpush2.msra.mxu0 0.0
    %3742 = vmatprep.subr.mxu0 0.0
    %3743 = vmatpush2.msra.mxu0 0.0
    %3744 = vmatprep.subr.mxu0 0.0
    %3745 = vmatpush2.msra.mxu0 0.0
    %3746 = vmatprep.subr.mxu0 0.0
    %3747 = vmatpush2.msra.mxu0 0.0
    %3748 = vmatprep.subr.mxu0 0.0
    %3749 = vmatpush2.msra.mxu0 0.0
    %3750 = vmatprep.mubr.f32.mxu0 0.0
    %3751 = vmatmul.mubr.f32.gmra.mxu0 %v3614
    %v3752 = vpop.f32.mrf.mxu0
    %v3753 = vadd.f32 %v365, %v3752
    %v3754 = vpop.f32.mrf.mxu0
    %3755 = vdwg.mxu0
    %3756 = vmatprep.subr.mxu0 %v343
    %3757 = vmatpush1.msra.mxu0 %v342
    %3758 = vmatprep.subr.mxu0 %v340
    %3759 = vmatpush1.msra.mxu0 %v339
    %3760 = vmatprep.subr.mxu0 %v337
    %3761 = vmatpush1.msra.mxu0 %v336
    %3762 = vmatprep.subr.mxu0 %v334
    %3763 = vmatpush1.msra.mxu0 %v333
    %3764 = vmatprep.subr.mxu0 %v331
    %3765 = vmatpush1.msra.mxu0 %v330
    %3766 = vmatprep.subr.mxu0 %v328
    %3767 = vmatpush1.msra.mxu0 %v327
    %3768 = vmatprep.subr.mxu0 %v325
    %3769 = vmatpush1.msra.mxu0 %v324
    %3770 = vmatprep.subr.mxu0 %v322
    %3771 = vmatpush1.msra.mxu0 %v321
    %3772 = vmatprep.subr.mxu0 %v319
    %3773 = vmatpush1.msra.mxu0 %v318
    %3774 = vmatprep.subr.mxu0 %v316
    %3775 = vmatpush1.msra.mxu0 %v315
    %3776 = vmatprep.subr.mxu0 %v313
    %3777 = vmatpush1.msra.mxu0 %v312
    %3778 = vmatprep.subr.mxu0 %v310
    %3779 = vmatpush1.msra.mxu0 %v309
    %3780 = vmatprep.subr.mxu0 %v307
    %3781 = vmatpush1.msra.mxu0 %v306
    %3782 = vmatprep.subr.mxu0 %v304
    %3783 = vmatpush1.msra.mxu0 %v303
    %3784 = vmatprep.subr.mxu0 %v301
    %3785 = vmatpush1.msra.mxu0 %v300
    %3786 = vmatprep.subr.mxu0 %v298
    %3787 = vmatpush1.msra.mxu0 %v297
    %3788 = vmatprep.subr.mxu0 0.0
    %3789 = vmatpush2.msra.mxu0 0.0
    %3790 = vmatprep.subr.mxu0 0.0
    %3791 = vmatpush2.msra.mxu0 0.0
    %3792 = vmatprep.subr.mxu0 0.0
    %3793 = vmatpush2.msra.mxu0 0.0
    %3794 = vmatprep.subr.mxu0 0.0
    %3795 = vmatpush2.msra.mxu0 0.0
    %3796 = vmatprep.subr.mxu0 0.0
    %3797 = vmatpush2.msra.mxu0 0.0
    %3798 = vmatprep.subr.mxu0 0.0
    %3799 = vmatpush2.msra.mxu0 0.0
    %3800 = vmatprep.subr.mxu0 0.0
    %3801 = vmatpush2.msra.mxu0 0.0
    %3802 = vmatprep.subr.mxu0 0.0
    %3803 = vmatpush2.msra.mxu0 0.0
    %3804 = vmatprep.subr.mxu0 0.0
    %3805 = vmatpush2.msra.mxu0 0.0
    %3806 = vmatprep.subr.mxu0 0.0
    %3807 = vmatpush2.msra.mxu0 0.0
    %3808 = vmatprep.subr.mxu0 0.0
    %3809 = vmatpush2.msra.mxu0 0.0
    %3810 = vmatprep.subr.mxu0 0.0
    %3811 = vmatpush2.msra.mxu0 0.0
    %3812 = vmatprep.subr.mxu0 0.0
    %3813 = vmatpush2.msra.mxu0 0.0
    %3814 = vmatprep.subr.mxu0 0.0
    %3815 = vmatpush2.msra.mxu0 0.0
    %3816 = vmatprep.subr.mxu0 0.0
    %3817 = vmatpush2.msra.mxu0 0.0
    %3818 = vmatprep.subr.mxu0 0.0
    %3819 = vmatpush2.msra.mxu0 0.0
    %3820 = vmatprep.mubr.f32.mxu0 0.0
    %3821 = vmatmul.mubr.f32.gmra.mxu0 %v3451
    %v3822 = vpop.f32.mrf.mxu0
    %v3823 = vadd.f32 0.0, %v3822
    %v3824 = vpop.f32.mrf.mxu0
    %v3825 = vadd.f32 0.0, %v3824
    %3826 = vdwg.mxu0
    %3827 = vmatprep.subr.mxu0 0.0
    %3828 = vmatpush1.msra.mxu0 %v344
    %3829 = vmatprep.subr.mxu0 0.0
    %3830 = vmatpush1.msra.mxu0 %v341
    %3831 = vmatprep.subr.mxu0 0.0
    %3832 = vmatpush1.msra.mxu0 %v338
    %3833 = vmatprep.subr.mxu0 0.0
    %3834 = vmatpush1.msra.mxu0 %v335
    %3835 = vmatprep.subr.mxu0 0.0
    %3836 = vmatpush1.msra.mxu0 %v332
    %3837 = vmatprep.subr.mxu0 0.0
    %3838 = vmatpush1.msra.mxu0 %v329
    %3839 = vmatprep.subr.mxu0 0.0
    %3840 = vmatpush1.msra.mxu0 %v326
    %3841 = vmatprep.subr.mxu0 0.0
    %3842 = vmatpush1.msra.mxu0 %v323
    %3843 = vmatprep.subr.mxu0 0.0
    %3844 = vmatpush1.msra.mxu0 %v320
    %3845 = vmatprep.subr.mxu0 0.0
    %3846 = vmatpush1.msra.mxu0 %v317
    %3847 = vmatprep.subr.mxu0 0.0
    %3848 = vmatpush1.msra.mxu0 %v314
    %3849 = vmatprep.subr.mxu0 0.0
    %3850 = vmatpush1.msra.mxu0 %v311
    %3851 = vmatprep.subr.mxu0 0.0
    %3852 = vmatpush1.msra.mxu0 %v308
    %3853 = vmatprep.subr.mxu0 0.0
    %3854 = vmatpush1.msra.mxu0 %v305
    %3855 = vmatprep.subr.mxu0 0.0
    %3856 = vmatpush1.msra.mxu0 %v302
    %3857 = vmatprep.subr.mxu0 0.0
    %3858 = vmatpush1.msra.mxu0 %v299
    %3859 = vmatprep.subr.mxu0 0.0
    %3860 = vmatpush2.msra.mxu0 0.0
    %3861 = vmatprep.subr.mxu0 0.0
    %3862 = vmatpush2.msra.mxu0 0.0
    %3863 = vmatprep.subr.mxu0 0.0
    %3864 = vmatpush2.msra.mxu0 0.0
    %3865 = vmatprep.subr.mxu0 0.0
    %3866 = vmatpush2.msra.mxu0 0.0
    %3867 = vmatprep.subr.mxu0 0.0
    %3868 = vmatpush2.msra.mxu0 0.0
    %3869 = vmatprep.subr.mxu0 0.0
    %3870 = vmatpush2.msra.mxu0 0.0
    %3871 = vmatprep.subr.mxu0 0.0
    %3872 = vmatpush2.msra.mxu0 0.0
    %3873 = vmatprep.subr.mxu0 0.0
    %3874 = vmatpush2.msra.mxu0 0.0
    %3875 = vmatprep.subr.mxu0 0.0
    %3876 = vmatpush2.msra.mxu0 0.0
    %3877 = vmatprep.subr.mxu0 0.0
    %3878 = vmatpush2.msra.mxu0 0.0
    %3879 = vmatprep.subr.mxu0 0.0
    %3880 = vmatpush2.msra.mxu0 0.0
    %3881 = vmatprep.subr.mxu0 0.0
    %3882 = vmatpush2.msra.mxu0 0.0
    %3883 = vmatprep.subr.mxu0 0.0
    %3884 = vmatpush2.msra.mxu0 0.0
    %3885 = vmatprep.subr.mxu0 0.0
    %3886 = vmatpush2.msra.mxu0 0.0
    %3887 = vmatprep.subr.mxu0 0.0
    %3888 = vmatpush2.msra.mxu0 0.0
    %3889 = vmatprep.subr.mxu0 0.0
    %3890 = vmatpush2.msra.mxu0 0.0
    %3891 = vmatprep.mubr.f32.mxu0 0.0
    %3892 = vmatmul.mubr.f32.gmra.mxu0 %v3451
    %v3893 = vpop.f32.mrf.mxu0
    %v3894 = vadd.f32 0.0, %v3893
    %v3895 = vpop.f32.mrf.mxu0
    %3896 = vdwg.mxu0
    %v3897 = vadd.f32 %v3682, %v3823
    %v3898 = vxor.u32 %v3897, 2147483648
    %v3899 = vmul.f32 %v3898, 1.442695
    %v3900 = vpow.pop %v3899
    %v3901 = vadd.f32 %v3900, 1.0
    %v3902 = vrcp.pop %v3901
    %v3903 = vmul.f32 1.0, %v3902
    %v3904 = vadd.f32 %v3684, %v3825
    %v3905 = vxor.u32 %v3904, 2147483648
    %v3906 = vmul.f32 %v3905, 1.442695
    %v3907 = vpow.pop %v3906
    %v3908 = vadd.f32 %v3907, 1.0
    %v3909 = vrcp.pop %v3908
    %v3910 = vmul.f32 1.0, %v3909
    %v3911 = vadd.f32 %v3894, %v374
    %v3912 = vmul.f32 %v3903, %v3911
    %v3913 = vadd.f32 %v3753, %v3912
    %v3914 = vtanh.pop %v3913
    %v3915 = vsub.f32 1.0, %v3910
    %v3916 = vmul.f32 %v3915, %v3914
    %v3917 = vmul.f32 %v3910, %v3451
    %v3918 = vadd.f32 %v3916, %v3917
    %3919 = vmatprep.subr.mxu0 %v247
    %3920 = vmatpush1.msra.mxu0 %v246
    %3921 = vmatprep.subr.mxu0 %v244
    %3922 = vmatpush1.msra.mxu0 %v243
    %3923 = vmatprep.subr.mxu0 %v241
    %3924 = vmatpush1.msra.mxu0 %v240
    %3925 = vmatprep.subr.mxu0 %v238
    %3926 = vmatpush1.msra.mxu0 %v237
    %3927 = vmatprep.subr.mxu0 %v235
    %3928 = vmatpush1.msra.mxu0 %v234
    %3929 = vmatprep.subr.mxu0 %v232
    %3930 = vmatpush1.msra.mxu0 %v231
    %3931 = vmatprep.subr.mxu0 %v229
    %3932 = vmatpush1.msra.mxu0 %v228
    %3933 = vmatprep.subr.mxu0 %v226
    %3934 = vmatpush1.msra.mxu0 %v225
    %3935 = vmatprep.subr.mxu0 %v223
    %3936 = vmatpush1.msra.mxu0 %v222
    %3937 = vmatprep.subr.mxu0 %v220
    %3938 = vmatpush1.msra.mxu0 %v219
    %3939 = vmatprep.subr.mxu0 %v217
    %3940 = vmatpush1.msra.mxu0 %v216
    %3941 = vmatprep.subr.mxu0 %v214
    %3942 = vmatpush1.msra.mxu0 %v213
    %3943 = vmatprep.subr.mxu0 %v211
    %3944 = vmatpush1.msra.mxu0 %v210
    %3945 = vmatprep.subr.mxu0 %v208
    %3946 = vmatpush1.msra.mxu0 %v207
    %3947 = vmatprep.subr.mxu0 %v205
    %3948 = vmatpush1.msra.mxu0 %v204
    %3949 = vmatprep.subr.mxu0 %v202
    %3950 = vmatpush1.msra.mxu0 %v201
    %3951 = vmatprep.subr.mxu0 0.0
    %3952 = vmatpush2.msra.mxu0 0.0
    %3953 = vmatprep.subr.mxu0 0.0
    %3954 = vmatpush2.msra.mxu0 0.0
    %3955 = vmatprep.subr.mxu0 0.0
    %3956 = vmatpush2.msra.mxu0 0.0
    %3957 = vmatprep.subr.mxu0 0.0
    %3958 = vmatpush2.msra.mxu0 0.0
    %3959 = vmatprep.subr.mxu0 0.0
    %3960 = vmatpush2.msra.mxu0 0.0
    %3961 = vmatprep.subr.mxu0 0.0
    %3962 = vmatpush2.msra.mxu0 0.0
    %3963 = vmatprep.subr.mxu0 0.0
    %3964 = vmatpush2.msra.mxu0 0.0
    %3965 = vmatprep.subr.mxu0 0.0
    %3966 = vmatpush2.msra.mxu0 0.0
    %3967 = vmatprep.subr.mxu0 0.0
    %3968 = vmatpush2.msra.mxu0 0.0
    %3969 = vmatprep.subr.mxu0 0.0
    %3970 = vmatpush2.msra.mxu0 0.0
    %3971 = vmatprep.subr.mxu0 0.0
    %3972 = vmatpush2.msra.mxu0 0.0
    %3973 = vmatprep.subr.mxu0 0.0
    %3974 = vmatpush2.msra.mxu0 0.0
    %3975 = vmatprep.subr.mxu0 0.0
    %3976 = vmatpush2.msra.mxu0 0.0
    %3977 = vmatprep.subr.mxu0 0.0
    %3978 = vmatpush2.msra.mxu0 0.0
    %3979 = vmatprep.subr.mxu0 0.0
    %3980 = vmatpush2.msra.mxu0 0.0
    %3981 = vmatprep.subr.mxu0 0.0
    %3982 = vmatpush2.msra.mxu0 0.0
    %3983 = vmatprep.mubr.f32.mxu0 0.0
    %3984 = vmatmul.mubr.f32.gmra.mxu0 %v3614
    %v3985 = vpop.f32.mrf.mxu0
    %v3986 = vadd.f32 0.0, %v3985
    %v3987 = vpop.f32.mrf.mxu0
    %v3988 = vadd.f32 0.0, %v3987
    %3989 = vdwg.mxu0
    %3990 = vmatprep.subr.mxu0 0.0
    %3991 = vmatpush1.msra.mxu0 %v248
    %3992 = vmatprep.subr.mxu0 0.0
    %3993 = vmatpush1.msra.mxu0 %v245
    %3994 = vmatprep.subr.mxu0 0.0
    %3995 = vmatpush1.msra.mxu0 %v242
    %3996 = vmatprep.subr.mxu0 0.0
    %3997 = vmatpush1.msra.mxu0 %v239
    %3998 = vmatprep.subr.mxu0 0.0
    %3999 = vmatpush1.msra.mxu0 %v236
    %4000 = vmatprep.subr.mxu0 0.0
    %4001 = vmatpush1.msra.mxu0 %v233
    %4002 = vmatprep.subr.mxu0 0.0
    %4003 = vmatpush1.msra.mxu0 %v230
    %4004 = vmatprep.subr.mxu0 0.0
    %4005 = vmatpush1.msra.mxu0 %v227
    %4006 = vmatprep.subr.mxu0 0.0
    %4007 = vmatpush1.msra.mxu0 %v224
    %4008 = vmatprep.subr.mxu0 0.0
    %4009 = vmatpush1.msra.mxu0 %v221
    %4010 = vmatprep.subr.mxu0 0.0
    %4011 = vmatpush1.msra.mxu0 %v218
    %4012 = vmatprep.subr.mxu0 0.0
    %4013 = vmatpush1.msra.mxu0 %v215
    %4014 = vmatprep.subr.mxu0 0.0
    %4015 = vmatpush1.msra.mxu0 %v212
    %4016 = vmatprep.subr.mxu0 0.0
    %4017 = vmatpush1.msra.mxu0 %v209
    %4018 = vmatprep.subr.mxu0 0.0
    %4019 = vmatpush1.msra.mxu0 %v206
    %4020 = vmatprep.subr.mxu0 0.0
    %4021 = vmatpush1.msra.mxu0 %v203
    %4022 = vmatprep.subr.mxu0 0.0
    %4023 = vmatpush2.msra.mxu0 0.0
    %4024 = vmatprep.subr.mxu0 0.0
    %4025 = vmatpush2.msra.mxu0 0.0
    %4026 = vmatprep.subr.mxu0 0.0
    %4027 = vmatpush2.msra.mxu0 0.0
    %4028 = vmatprep.subr.mxu0 0.0
    %4029 = vmatpush2.msra.mxu0 0.0
    %4030 = vmatprep.subr.mxu0 0.0
    %4031 = vmatpush2.msra.mxu0 0.0
    %4032 = vmatprep.subr.mxu0 0.0
    %4033 = vmatpush2.msra.mxu0 0.0
    %4034 = vmatprep.subr.mxu0 0.0
    %4035 = vmatpush2.msra.mxu0 0.0
    %4036 = vmatprep.subr.mxu0 0.0
    %4037 = vmatpush2.msra.mxu0 0.0
    %4038 = vmatprep.subr.mxu0 0.0
    %4039 = vmatpush2.msra.mxu0 0.0
    %4040 = vmatprep.subr.mxu0 0.0
    %4041 = vmatpush2.msra.mxu0 0.0
    %4042 = vmatprep.subr.mxu0 0.0
    %4043 = vmatpush2.msra.mxu0 0.0
    %4044 = vmatprep.subr.mxu0 0.0
    %4045 = vmatpush2.msra.mxu0 0.0
    %4046 = vmatprep.subr.mxu0 0.0
    %4047 = vmatpush2.msra.mxu0 0.0
    %4048 = vmatprep.subr.mxu0 0.0
    %4049 = vmatpush2.msra.mxu0 0.0
    %4050 = vmatprep.subr.mxu0 0.0
    %4051 = vmatpush2.msra.mxu0 0.0
    %4052 = vmatprep.subr.mxu0 0.0
    %4053 = vmatpush2.msra.mxu0 0.0
    %4054 = vmatprep.mubr.f32.mxu0 0.0
    %4055 = vmatmul.mubr.f32.gmra.mxu0 %v3614
    %v4056 = vpop.f32.mrf.mxu0
    %v4057 = vadd.f32 0.0, %v4056
    %v4058 = vpop.f32.mrf.mxu0
    %4059 = vdwg.mxu0
    %v4060 = vadd.f32 %v541, %v3986
    %v4061 = vxor.u32 %v4060, 2147483648
    %v4062 = vmul.f32 %v4061, 1.442695
    %v4063 = vpow.pop %v4062
    %v4064 = vadd.f32 %v4063, 1.0
    %v4065 = vrcp.pop %v4064
    %v4066 = vmul.f32 1.0, %v4065
    %v4067 = vadd.f32 %v543, %v3988
    %v4068 = vxor.u32 %v4067, 2147483648
    %v4069 = vmul.f32 %v4068, 1.442695
    %v4070 = vpow.pop %v4069
    %v4071 = vadd.f32 %v4070, 1.0
    %v4072 = vrcp.pop %v4071
    %v4073 = vmul.f32 1.0, %v4072
    %v4074 = vadd.f32 %v4057, %v350
    %v4075 = vmul.f32 %v4066, %v4074
    %v4076 = vadd.f32 %v647, %v4075
    %v4077 = vtanh.pop %v4076
    %v4078 = vsub.f32 1.0, %v4073
    %v4079 = vmul.f32 %v4078, %v4077
    %v4080 = vmul.f32 %v4073, %v3614
    %v4081 = vadd.f32 %v4079, %v4080
    %4082 = vmatprep.subr.mxu0 %v295
    %4083 = vmatpush1.msra.mxu0 %v294
    %4084 = vmatprep.subr.mxu0 %v292
    %4085 = vmatpush1.msra.mxu0 %v291
    %4086 = vmatprep.subr.mxu0 %v289
    %4087 = vmatpush1.msra.mxu0 %v288
    %4088 = vmatprep.subr.mxu0 %v286
    %4089 = vmatpush1.msra.mxu0 %v285
    %4090 = vmatprep.subr.mxu0 %v283
    %4091 = vmatpush1.msra.mxu0 %v282
    %4092 = vmatprep.subr.mxu0 %v280
    %4093 = vmatpush1.msra.mxu0 %v279
    %4094 = vmatprep.subr.mxu0 %v277
    %4095 = vmatpush1.msra.mxu0 %v276
    %4096 = vmatprep.subr.mxu0 %v274
    %4097 = vmatpush1.msra.mxu0 %v273
    %4098 = vmatprep.subr.mxu0 %v271
    %4099 = vmatpush1.msra.mxu0 %v270
    %4100 = vmatprep.subr.mxu0 %v268
    %4101 = vmatpush1.msra.mxu0 %v267
    %4102 = vmatprep.subr.mxu0 %v265
    %4103 = vmatpush1.msra.mxu0 %v264
    %4104 = vmatprep.subr.mxu0 %v262
    %4105 = vmatpush1.msra.mxu0 %v261
    %4106 = vmatprep.subr.mxu0 %v259
    %4107 = vmatpush1.msra.mxu0 %v258
    %4108 = vmatprep.subr.mxu0 %v256
    %4109 = vmatpush1.msra.mxu0 %v255
    %4110 = vmatprep.subr.mxu0 %v253
    %4111 = vmatpush1.msra.mxu0 %v252
    %4112 = vmatprep.subr.mxu0 %v250
    %4113 = vmatpush1.msra.mxu0 %v249
    %4114 = vmatprep.subr.mxu0 0.0
    %4115 = vmatpush2.msra.mxu0 0.0
    %4116 = vmatprep.subr.mxu0 0.0
    %4117 = vmatpush2.msra.mxu0 0.0
    %4118 = vmatprep.subr.mxu0 0.0
    %4119 = vmatpush2.msra.mxu0 0.0
    %4120 = vmatprep.subr.mxu0 0.0
    %4121 = vmatpush2.msra.mxu0 0.0
    %4122 = vmatprep.subr.mxu0 0.0
    %4123 = vmatpush2.msra.mxu0 0.0
    %4124 = vmatprep.subr.mxu0 0.0
    %4125 = vmatpush2.msra.mxu0 0.0
    %4126 = vmatprep.subr.mxu0 0.0
    %4127 = vmatpush2.msra.mxu0 0.0
    %4128 = vmatprep.subr.mxu0 0.0
    %4129 = vmatpush2.msra.mxu0 0.0
    %4130 = vmatprep.subr.mxu0 0.0
    %4131 = vmatpush2.msra.mxu0 0.0
    %4132 = vmatprep.subr.mxu0 0.0
    %4133 = vmatpush2.msra.mxu0 0.0
    %4134 = vmatprep.subr.mxu0 0.0
    %4135 = vmatpush2.msra.mxu0 0.0
    %4136 = vmatprep.subr.mxu0 0.0
    %4137 = vmatpush2.msra.mxu0 0.0
    %4138 = vmatprep.subr.mxu0 0.0
    %4139 = vmatpush2.msra.mxu0 0.0
    %4140 = vmatprep.subr.mxu0 0.0
    %4141 = vmatpush2.msra.mxu0 0.0
    %4142 = vmatprep.subr.mxu0 0.0
    %4143 = vmatpush2.msra.mxu0 0.0
    %4144 = vmatprep.subr.mxu0 0.0
    %4145 = vmatpush2.msra.mxu0 0.0
    %4146 = vmatprep.mubr.f32.mxu0 0.0
    %4147 = vmatmul.mubr.f32.gmra.mxu0 %v4081
    %v4148 = vpop.f32.mrf.mxu0
    %v4149 = vadd.f32 %v357, %v4148
    %v4150 = vpop.f32.mrf.mxu0
    %v4151 = vadd.f32 %v361, %v4150
    %4152 = vdwg.mxu0
    %4153 = vmatprep.subr.mxu0 0.0
    %4154 = vmatpush1.msra.mxu0 %v296
    %4155 = vmatprep.subr.mxu0 0.0
    %4156 = vmatpush1.msra.mxu0 %v293
    %4157 = vmatprep.subr.mxu0 0.0
    %4158 = vmatpush1.msra.mxu0 %v290
    %4159 = vmatprep.subr.mxu0 0.0
    %4160 = vmatpush1.msra.mxu0 %v287
    %4161 = vmatprep.subr.mxu0 0.0
    %4162 = vmatpush1.msra.mxu0 %v284
    %4163 = vmatprep.subr.mxu0 0.0
    %4164 = vmatpush1.msra.mxu0 %v281
    %4165 = vmatprep.subr.mxu0 0.0
    %4166 = vmatpush1.msra.mxu0 %v278
    %4167 = vmatprep.subr.mxu0 0.0
    %4168 = vmatpush1.msra.mxu0 %v275
    %4169 = vmatprep.subr.mxu0 0.0
    %4170 = vmatpush1.msra.mxu0 %v272
    %4171 = vmatprep.subr.mxu0 0.0
    %4172 = vmatpush1.msra.mxu0 %v269
    %4173 = vmatprep.subr.mxu0 0.0
    %4174 = vmatpush1.msra.mxu0 %v266
    %4175 = vmatprep.subr.mxu0 0.0
    %4176 = vmatpush1.msra.mxu0 %v263
    %4177 = vmatprep.subr.mxu0 0.0
    %4178 = vmatpush1.msra.mxu0 %v260
    %4179 = vmatprep.subr.mxu0 0.0
    %4180 = vmatpush1.msra.mxu0 %v257
    %4181 = vmatprep.subr.mxu0 0.0
    %4182 = vmatpush1.msra.mxu0 %v254
    %4183 = vmatprep.subr.mxu0 0.0
    %4184 = vmatpush1.msra.mxu0 %v251
    %4185 = vmatprep.subr.mxu0 0.0
    %4186 = vmatpush2.msra.mxu0 0.0
    %4187 = vmatprep.subr.mxu0 0.0
    %4188 = vmatpush2.msra.mxu0 0.0
    %4189 = vmatprep.subr.mxu0 0.0
    %4190 = vmatpush2.msra.mxu0 0.0
    %4191 = vmatprep.subr.mxu0 0.0
    %4192 = vmatpush2.msra.mxu0 0.0
    %4193 = vmatprep.subr.mxu0 0.0
    %4194 = vmatpush2.msra.mxu0 0.0
    %4195 = vmatprep.subr.mxu0 0.0
    %4196 = vmatpush2.msra.mxu0 0.0
    %4197 = vmatprep.subr.mxu0 0.0
    %4198 = vmatpush2.msra.mxu0 0.0
    %4199 = vmatprep.subr.mxu0 0.0
    %4200 = vmatpush2.msra.mxu0 0.0
    %4201 = vmatprep.subr.mxu0 0.0
    %4202 = vmatpush2.msra.mxu0 0.0
    %4203 = vmatprep.subr.mxu0 0.0
    %4204 = vmatpush2.msra.mxu0 0.0
    %4205 = vmatprep.subr.mxu0 0.0
    %4206 = vmatpush2.msra.mxu0 0.0
    %4207 = vmatprep.subr.mxu0 0.0
    %4208 = vmatpush2.msra.mxu0 0.0
    %4209 = vmatprep.subr.mxu0 0.0
    %4210 = vmatpush2.msra.mxu0 0.0
    %4211 = vmatprep.subr.mxu0 0.0
    %4212 = vmatpush2.msra.mxu0 0.0
    %4213 = vmatprep.subr.mxu0 0.0
    %4214 = vmatpush2.msra.mxu0 0.0
    %4215 = vmatprep.subr.mxu0 0.0
    %4216 = vmatpush2.msra.mxu0 0.0
    %4217 = vmatprep.mubr.f32.mxu0 0.0
    %4218 = vmatmul.mubr.f32.gmra.mxu0 %v4081
    %v4219 = vpop.f32.mrf.mxu0
    %v4220 = vadd.f32 %v365, %v4219
    %v4221 = vpop.f32.mrf.mxu0
    %4222 = vdwg.mxu0
    %4223 = vmatprep.subr.mxu0 %v343
    %4224 = vmatpush1.msra.mxu0 %v342
    %4225 = vmatprep.subr.mxu0 %v340
    %4226 = vmatpush1.msra.mxu0 %v339
    %4227 = vmatprep.subr.mxu0 %v337
    %4228 = vmatpush1.msra.mxu0 %v336
    %4229 = vmatprep.subr.mxu0 %v334
    %4230 = vmatpush1.msra.mxu0 %v333
    %4231 = vmatprep.subr.mxu0 %v331
    %4232 = vmatpush1.msra.mxu0 %v330
    %4233 = vmatprep.subr.mxu0 %v328
    %4234 = vmatpush1.msra.mxu0 %v327
    %4235 = vmatprep.subr.mxu0 %v325
    %4236 = vmatpush1.msra.mxu0 %v324
    %4237 = vmatprep.subr.mxu0 %v322
    %4238 = vmatpush1.msra.mxu0 %v321
    %4239 = vmatprep.subr.mxu0 %v319
    %4240 = vmatpush1.msra.mxu0 %v318
    %4241 = vmatprep.subr.mxu0 %v316
    %4242 = vmatpush1.msra.mxu0 %v315
    %4243 = vmatprep.subr.mxu0 %v313
    %4244 = vmatpush1.msra.mxu0 %v312
    %4245 = vmatprep.subr.mxu0 %v310
    %4246 = vmatpush1.msra.mxu0 %v309
    %4247 = vmatprep.subr.mxu0 %v307
    %4248 = vmatpush1.msra.mxu0 %v306
    %4249 = vmatprep.subr.mxu0 %v304
    %4250 = vmatpush1.msra.mxu0 %v303
    %4251 = vmatprep.subr.mxu0 %v301
    %4252 = vmatpush1.msra.mxu0 %v300
    %4253 = vmatprep.subr.mxu0 %v298
    %4254 = vmatpush1.msra.mxu0 %v297
    %4255 = vmatprep.subr.mxu0 0.0
    %4256 = vmatpush2.msra.mxu0 0.0
    %4257 = vmatprep.subr.mxu0 0.0
    %4258 = vmatpush2.msra.mxu0 0.0
    %4259 = vmatprep.subr.mxu0 0.0
    %4260 = vmatpush2.msra.mxu0 0.0
    %4261 = vmatprep.subr.mxu0 0.0
    %4262 = vmatpush2.msra.mxu0 0.0
    %4263 = vmatprep.subr.mxu0 0.0
    %4264 = vmatpush2.msra.mxu0 0.0
    %4265 = vmatprep.subr.mxu0 0.0
    %4266 = vmatpush2.msra.mxu0 0.0
    %4267 = vmatprep.subr.mxu0 0.0
    %4268 = vmatpush2.msra.mxu0 0.0
    %4269 = vmatprep.subr.mxu0 0.0
    %4270 = vmatpush2.msra.mxu0 0.0
    %4271 = vmatprep.subr.mxu0 0.0
    %4272 = vmatpush2.msra.mxu0 0.0
    %4273 = vmatprep.subr.mxu0 0.0
    %4274 = vmatpush2.msra.mxu0 0.0
    %4275 = vmatprep.subr.mxu0 0.0
    %4276 = vmatpush2.msra.mxu0 0.0
    %4277 = vmatprep.subr.mxu0 0.0
    %4278 = vmatpush2.msra.mxu0 0.0
    %4279 = vmatprep.subr.mxu0 0.0
    %4280 = vmatpush2.msra.mxu0 0.0
    %4281 = vmatprep.subr.mxu0 0.0
    %4282 = vmatpush2.msra.mxu0 0.0
    %4283 = vmatprep.subr.mxu0 0.0
    %4284 = vmatpush2.msra.mxu0 0.0
    %4285 = vmatprep.subr.mxu0 0.0
    %4286 = vmatpush2.msra.mxu0 0.0
    %4287 = vmatprep.mubr.f32.mxu0 0.0
    %4288 = vmatmul.mubr.f32.gmra.mxu0 %v3918
    %v4289 = vpop.f32.mrf.mxu0
    %v4290 = vadd.f32 0.0, %v4289
    %v4291 = vpop.f32.mrf.mxu0
    %v4292 = vadd.f32 0.0, %v4291
    %4293 = vdwg.mxu0
    %4294 = vmatprep.subr.mxu0 0.0
    %4295 = vmatpush1.msra.mxu0 %v344
    %4296 = vmatprep.subr.mxu0 0.0
    %4297 = vmatpush1.msra.mxu0 %v341
    %4298 = vmatprep.subr.mxu0 0.0
    %4299 = vmatpush1.msra.mxu0 %v338
    %4300 = vmatprep.subr.mxu0 0.0
    %4301 = vmatpush1.msra.mxu0 %v335
    %4302 = vmatprep.subr.mxu0 0.0
    %4303 = vmatpush1.msra.mxu0 %v332
    %4304 = vmatprep.subr.mxu0 0.0
    %4305 = vmatpush1.msra.mxu0 %v329
    %4306 = vmatprep.subr.mxu0 0.0
    %4307 = vmatpush1.msra.mxu0 %v326
    %4308 = vmatprep.subr.mxu0 0.0
    %4309 = vmatpush1.msra.mxu0 %v323
    %4310 = vmatprep.subr.mxu0 0.0
    %4311 = vmatpush1.msra.mxu0 %v320
    %4312 = vmatprep.subr.mxu0 0.0
    %4313 = vmatpush1.msra.mxu0 %v317
    %4314 = vmatprep.subr.mxu0 0.0
    %4315 = vmatpush1.msra.mxu0 %v314
    %4316 = vmatprep.subr.mxu0 0.0
    %4317 = vmatpush1.msra.mxu0 %v311
    %4318 = vmatprep.subr.mxu0 0.0
    %4319 = vmatpush1.msra.mxu0 %v308
    %4320 = vmatprep.subr.mxu0 0.0
    %4321 = vmatpush1.msra.mxu0 %v305
    %4322 = vmatprep.subr.mxu0 0.0
    %4323 = vmatpush1.msra.mxu0 %v302
    %4324 = vmatprep.subr.mxu0 0.0
    %4325 = vmatpush1.msra.mxu0 %v299
    %4326 = vmatprep.subr.mxu0 0.0
    %4327 = vmatpush2.msra.mxu0 0.0
    %4328 = vmatprep.subr.mxu0 0.0
    %4329 = vmatpush2.msra.mxu0 0.0
    %4330 = vmatprep.subr.mxu0 0.0
    %4331 = vmatpush2.msra.mxu0 0.0
    %4332 = vmatprep.subr.mxu0 0.0
    %4333 = vmatpush2.msra.mxu0 0.0
    %4334 = vmatprep.subr.mxu0 0.0
    %4335 = vmatpush2.msra.mxu0 0.0
    %4336 = vmatprep.subr.mxu0 0.0
    %4337 = vmatpush2.msra.mxu0 0.0
    %4338 = vmatprep.subr.mxu0 0.0
    %4339 = vmatpush2.msra.mxu0 0.0
    %4340 = vmatprep.subr.mxu0 0.0
    %4341 = vmatpush2.msra.mxu0 0.0
    %4342 = vmatprep.subr.mxu0 0.0
    %4343 = vmatpush2.msra.mxu0 0.0
    %4344 = vmatprep.subr.mxu0 0.0
    %4345 = vmatpush2.msra.mxu0 0.0
    %4346 = vmatprep.subr.mxu0 0.0
    %4347 = vmatpush2.msra.mxu0 0.0
    %4348 = vmatprep.subr.mxu0 0.0
    %4349 = vmatpush2.msra.mxu0 0.0
    %4350 = vmatprep.subr.mxu0 0.0
    %4351 = vmatpush2.msra.mxu0 0.0
    %4352 = vmatprep.subr.mxu0 0.0
    %4353 = vmatpush2.msra.mxu0 0.0
    %4354 = vmatprep.subr.mxu0 0.0
    %4355 = vmatpush2.msra.mxu0 0.0
    %4356 = vmatprep.subr.mxu0 0.0
    %4357 = vmatpush2.msra.mxu0 0.0
    %4358 = vmatprep.mubr.f32.mxu0 0.0
    %4359 = vmatmul.mubr.f32.gmra.mxu0 %v3918
    %v4360 = vpop.f32.mrf.mxu0
    %v4361 = vadd.f32 0.0, %v4360
    %v4362 = vpop.f32.mrf.mxu0
    %4363 = vdwg.mxu0
    %v4364 = vadd.f32 %v4149, %v4290
    %v4365 = vxor.u32 %v4364, 2147483648
    %v4366 = vmul.f32 %v4365, 1.442695
    %v4367 = vpow.pop %v4366
    %v4368 = vadd.f32 %v4367, 1.0
    %v4369 = vrcp.pop %v4368
    %v4370 = vmul.f32 1.0, %v4369
    %v4371 = vadd.f32 %v4151, %v4292
    %v4372 = vxor.u32 %v4371, 2147483648
    %v4373 = vmul.f32 %v4372, 1.442695
    %v4374 = vpow.pop %v4373
    %v4375 = vadd.f32 %v4374, 1.0
    %v4376 = vrcp.pop %v4375
    %v4377 = vmul.f32 1.0, %v4376
    %v4378 = vadd.f32 %v4361, %v374
    %v4379 = vmul.f32 %v4370, %v4378
    %v4380 = vadd.f32 %v4220, %v4379
    %v4381 = vtanh.pop %v4380
    %v4382 = vsub.f32 1.0, %v4377
    %v4383 = vmul.f32 %v4382, %v4381
    %v4384 = vmul.f32 %v4377, %v3918
    %v4385 = vadd.f32 %v4383, %v4384
    %v4386 = vld [vmem:[#allocation19] sm:$0xff]
    %v4387 = vld [vmem:[%s14] sm:$0xff]
    %vm4388 = vcmask 64512
    %v4390 = vsel %vm4388, %v4387, 0
    %4392 = vmatprep.subr.mxu0 0.0
    %4393 = vmatpush1.msra.mxu0 0.0
    %4394 = vmatprep.subr.mxu0 0.0
    %4395 = vmatpush1.msra.mxu0 0.0
    %4396 = vmatprep.subr.mxu0 0.0
    %4397 = vmatpush1.msra.mxu0 0.0
    %4398 = vmatprep.subr.mxu0 0.0
    %4399 = vmatpush1.msra.mxu0 0.0
    %4400 = vmatprep.subr.mxu0 0.0
    %4401 = vmatpush1.msra.mxu0 0.0
    %4402 = vmatprep.subr.mxu0 0.0
    %4403 = vmatpush1.msra.mxu0 0.0
    %4404 = vmatprep.subr.mxu0 0.0
    %4405 = vmatpush1.msra.mxu0 0.0
    %4406 = vmatprep.subr.mxu0 0.0
    %4407 = vmatpush1.msra.mxu0 0.0
    %4408 = vmatprep.subr.mxu0 0.0
    %4409 = vmatpush1.msra.mxu0 0.0
    %4410 = vmatprep.subr.mxu0 0.0
    %4411 = vmatpush1.msra.mxu0 0.0
    %4412 = vmatprep.subr.mxu0 0.0
    %4413 = vmatpush1.msra.mxu0 0.0
    %4414 = vmatprep.subr.mxu0 0.0
    %4415 = vmatpush1.msra.mxu0 0.0
    %4416 = vmatprep.subr.mxu0 0.0
    %4417 = vmatpush1.msra.mxu0 0.0
    %4418 = vmatprep.subr.mxu0 0.0
    %4419 = vmatpush1.msra.mxu0 0.0
    %4420 = vmatprep.subr.mxu0 0.0
    %4421 = vmatpush1.msra.mxu0 0.0
    %4422 = vmatprep.subr.mxu0 0.0
    %4423 = vmatpush1.msra.mxu0 %v4385
    %4424 = vmatprep.subr.mxu0 0.0
    %4425 = vmatpush2.msra.mxu0 0.0
    %4426 = vmatprep.subr.mxu0 0.0
    %4427 = vmatpush2.msra.mxu0 0.0
    %4428 = vmatprep.subr.mxu0 0.0
    %4429 = vmatpush2.msra.mxu0 0.0
    %4430 = vmatprep.subr.mxu0 0.0
    %4431 = vmatpush2.msra.mxu0 0.0
    %4432 = vmatprep.subr.mxu0 0.0
    %4433 = vmatpush2.msra.mxu0 0.0
    %4434 = vmatprep.subr.mxu0 0.0
    %4435 = vmatpush2.msra.mxu0 0.0
    %4436 = vmatprep.subr.mxu0 0.0
    %4437 = vmatpush2.msra.mxu0 0.0
    %4438 = vmatprep.subr.mxu0 0.0
    %4439 = vmatpush2.msra.mxu0 0.0
    %4440 = vmatprep.subr.mxu0 0.0
    %4441 = vmatpush2.msra.mxu0 0.0
    %4442 = vmatprep.subr.mxu0 0.0
    %4443 = vmatpush2.msra.mxu0 0.0
    %4444 = vmatprep.subr.mxu0 0.0
    %4445 = vmatpush2.msra.mxu0 0.0
    %4446 = vmatprep.subr.mxu0 0.0
    %4447 = vmatpush2.msra.mxu0 0.0
    %4448 = vmatprep.subr.mxu0 0.0
    %4449 = vmatpush2.msra.mxu0 0.0
    %4450 = vmatprep.subr.mxu0 0.0
    %4451 = vmatpush2.msra.mxu0 0.0
    %4452 = vmatprep.subr.mxu0 0.0
    %4453 = vmatpush2.msra.mxu0 0.0
    %4454 = vmatprep.subr.mxu0 0.0
    %4455 = vmatpush2.msra.mxu0 0.0
    %4456 = vmatprep.mubr.f32.mxu0 0.0
    %4457 = vmatmul.mubr.f32.gmra.mxu0 %v4390
    %v4458 = vpop.f32.mrf.mxu0
    %v4459 = vadd.f32 0.0, %v4458
    %v4460 = vpop.f32.mrf.mxu0
    %4461 = vdwg.mxu0
    %v4463 = vsel %vm4388, %v4386, 0
    %4465 = vmatprep.subr.mxu0 0.0
    %4466 = vmatpush1.msra.mxu0 0.0
    %4467 = vmatprep.subr.mxu0 0.0
    %4468 = vmatpush1.msra.mxu0 0.0
    %4469 = vmatprep.subr.mxu0 0.0
    %4470 = vmatpush1.msra.mxu0 0.0
    %4471 = vmatprep.subr.mxu0 0.0
    %4472 = vmatpush1.msra.mxu0 0.0
    %4473 = vmatprep.subr.mxu0 0.0
    %4474 = vmatpush1.msra.mxu0 0.0
    %4475 = vmatprep.subr.mxu0 0.0
    %4476 = vmatpush1.msra.mxu0 0.0
    %4477 = vmatprep.subr.mxu0 0.0
    %4478 = vmatpush1.msra.mxu0 0.0
    %4479 = vmatprep.subr.mxu0 0.0
    %4480 = vmatpush1.msra.mxu0 0.0
    %4481 = vmatprep.subr.mxu0 0.0
    %4482 = vmatpush1.msra.mxu0 0.0
    %4483 = vmatprep.subr.mxu0 0.0
    %4484 = vmatpush1.msra.mxu0 0.0
    %4485 = vmatprep.subr.mxu0 0.0
    %4486 = vmatpush1.msra.mxu0 0.0
    %4487 = vmatprep.subr.mxu0 0.0
    %4488 = vmatpush1.msra.mxu0 0.0
    %4489 = vmatprep.subr.mxu0 0.0
    %4490 = vmatpush1.msra.mxu0 0.0
    %4491 = vmatprep.subr.mxu0 0.0
    %4492 = vmatpush1.msra.mxu0 0.0
    %4493 = vmatprep.subr.mxu0 0.0
    %4494 = vmatpush1.msra.mxu0 0.0
    %4495 = vmatprep.subr.mxu0 0.0
    %4496 = vmatpush1.msra.mxu0 %v4081
    %4497 = vmatprep.subr.mxu0 0.0
    %4498 = vmatpush2.msra.mxu0 0.0
    %4499 = vmatprep.subr.mxu0 0.0
    %4500 = vmatpush2.msra.mxu0 0.0
    %4501 = vmatprep.subr.mxu0 0.0
    %4502 = vmatpush2.msra.mxu0 0.0
    %4503 = vmatprep.subr.mxu0 0.0
    %4504 = vmatpush2.msra.mxu0 0.0
    %4505 = vmatprep.subr.mxu0 0.0
    %4506 = vmatpush2.msra.mxu0 0.0
    %4507 = vmatprep.subr.mxu0 0.0
    %4508 = vmatpush2.msra.mxu0 0.0
    %4509 = vmatprep.subr.mxu0 0.0
    %4510 = vmatpush2.msra.mxu0 0.0
    %4511 = vmatprep.subr.mxu0 0.0
    %4512 = vmatpush2.msra.mxu0 0.0
    %4513 = vmatprep.subr.mxu0 0.0
    %4514 = vmatpush2.msra.mxu0 0.0
    %4515 = vmatprep.subr.mxu0 0.0
    %4516 = vmatpush2.msra.mxu0 0.0
    %4517 = vmatprep.subr.mxu0 0.0
    %4518 = vmatpush2.msra.mxu0 0.0
    %4519 = vmatprep.subr.mxu0 0.0
    %4520 = vmatpush2.msra.mxu0 0.0
    %4521 = vmatprep.subr.mxu0 0.0
    %4522 = vmatpush2.msra.mxu0 0.0
    %4523 = vmatprep.subr.mxu0 0.0
    %4524 = vmatpush2.msra.mxu0 0.0
    %4525 = vmatprep.subr.mxu0 0.0
    %4526 = vmatpush2.msra.mxu0 0.0
    %4527 = vmatprep.subr.mxu0 0.0
    %4528 = vmatpush2.msra.mxu0 0.0
    %4529 = vmatprep.mubr.f32.mxu0 0.0
    %4530 = vmatmul.mubr.f32.gmra.mxu0 %v4463
    %v4531 = vpop.f32.mrf.mxu0
    %v4532 = vadd.f32 %v4459, %v4531
    %v4533 = vpop.f32.mrf.mxu0
    %4534 = vdwg.mxu0
    %4535 = vst [vmem:[%s15] sm:$0xff] %v4532
    %v4536 = vld [vmem:[#allocation15] sm:$0xff]
    %v4537 = vld [vmem:[#allocation15 + $0x8] sm:$0xff]
    %v4538 = vld [vmem:[#allocation15 + $0x10] sm:$0xff]
    %v4539 = vld [vmem:[#allocation15 + $0x18] sm:$0xff]
    %v4540 = vld [vmem:[#allocation15 + $0x20] sm:$0xff]
    %v4541 = vld [vmem:[#allocation15 + $0x28] sm:$0xff]
    %v4542 = vld [vmem:[#allocation15 + $0x30] sm:$0xff]
    %v4543 = vld [vmem:[#allocation15 + $0x38] sm:$0xff]
    %v4544 = vld [vmem:[#allocation15 + $0x40] sm:$0xff]
    %v4545 = vld [vmem:[#allocation15 + $0x48] sm:$0xff]
    %v4546 = vld [vmem:[#allocation15 + $0x50] sm:$0xff]
    %v4547 = vld [vmem:[#allocation15 + $0x58] sm:$0xff]
    %v4548 = vld [vmem:[#allocation15 + $0x60] sm:$0xff]
    %v4549 = vld [vmem:[#allocation15 + $0x68] sm:$0xff]
    %v4550 = vld [vmem:[#allocation15 + $0x70] sm:$0xff]
    %v4551 = vld [vmem:[#allocation15 + $0x78] sm:$0xff]
    %v4552 = vld [vmem:[#allocation16] sm:$0x1]
    %v4554 = vlaneseq
    %v4555 = vshrl.u32 %v4554, 7
    %v4556 = vsub.s32 0, %v4555
    %v4557 = vrot.slane %v4552, %v4556
    %4559 = vmatprep.subr.mxu0 0.0
    %4560 = vmatpush1.msra.mxu0 %v4551
    %4561 = vmatprep.subr.mxu0 0.0
    %4562 = vmatpush1.msra.mxu0 %v4550
    %4563 = vmatprep.subr.mxu0 0.0
    %4564 = vmatpush1.msra.mxu0 %v4549
    %4565 = vmatprep.subr.mxu0 0.0
    %4566 = vmatpush1.msra.mxu0 %v4548
    %4567 = vmatprep.subr.mxu0 0.0
    %4568 = vmatpush1.msra.mxu0 %v4547
    %4569 = vmatprep.subr.mxu0 0.0
    %4570 = vmatpush1.msra.mxu0 %v4546
    %4571 = vmatprep.subr.mxu0 0.0
    %4572 = vmatpush1.msra.mxu0 %v4545
    %4573 = vmatprep.subr.mxu0 0.0
    %4574 = vmatpush1.msra.mxu0 %v4544
    %4575 = vmatprep.subr.mxu0 0.0
    %4576 = vmatpush1.msra.mxu0 %v4543
    %4577 = vmatprep.subr.mxu0 0.0
    %4578 = vmatpush1.msra.mxu0 %v4542
    %4579 = vmatprep.subr.mxu0 0.0
    %4580 = vmatpush1.msra.mxu0 %v4541
    %4581 = vmatprep.subr.mxu0 0.0
    %4582 = vmatpush1.msra.mxu0 %v4540
    %4583 = vmatprep.subr.mxu0 0.0
    %4584 = vmatpush1.msra.mxu0 %v4539
    %4585 = vmatprep.subr.mxu0 0.0
    %4586 = vmatpush1.msra.mxu0 %v4538
    %4587 = vmatprep.subr.mxu0 0.0
    %4588 = vmatpush1.msra.mxu0 %v4537
    %4589 = vmatprep.subr.mxu0 0.0
    %4590 = vmatpush1.msra.mxu0 %v4536
    %4591 = vmatprep.subr.mxu0 0.0
    %4592 = vmatpush2.msra.mxu0 0.0
    %4593 = vmatprep.subr.mxu0 0.0
    %4594 = vmatpush2.msra.mxu0 0.0
    %4595 = vmatprep.subr.mxu0 0.0
    %4596 = vmatpush2.msra.mxu0 0.0
    %4597 = vmatprep.subr.mxu0 0.0
    %4598 = vmatpush2.msra.mxu0 0.0
    %4599 = vmatprep.subr.mxu0 0.0
    %4600 = vmatpush2.msra.mxu0 0.0
    %4601 = vmatprep.subr.mxu0 0.0
    %4602 = vmatpush2.msra.mxu0 0.0
    %4603 = vmatprep.subr.mxu0 0.0
    %4604 = vmatpush2.msra.mxu0 0.0
    %4605 = vmatprep.subr.mxu0 0.0
    %4606 = vmatpush2.msra.mxu0 0.0
    %4607 = vmatprep.subr.mxu0 0.0
    %4608 = vmatpush2.msra.mxu0 0.0
    %4609 = vmatprep.subr.mxu0 0.0
    %4610 = vmatpush2.msra.mxu0 0.0
    %4611 = vmatprep.subr.mxu0 0.0
    %4612 = vmatpush2.msra.mxu0 0.0
    %4613 = vmatprep.subr.mxu0 0.0
    %4614 = vmatpush2.msra.mxu0 0.0
    %4615 = vmatprep.subr.mxu0 0.0
    %4616 = vmatpush2.msra.mxu0 0.0
    %4617 = vmatprep.subr.mxu0 0.0
    %4618 = vmatpush2.msra.mxu0 0.0
    %4619 = vmatprep.subr.mxu0 0.0
    %4620 = vmatpush2.msra.mxu0 0.0
    %4621 = vmatprep.subr.mxu0 0.0
    %4622 = vmatpush2.msra.mxu0 0.0
    %4623 = vmatprep.mubr.f32.mxu0 0.0
    %4624 = vmatmul.mubr.f32.gmra.mxu0 %v4532
    %v4625 = vpop.f32.mrf.mxu0
    %v4626 = vadd.f32 %v4557, %v4625
    %v4627 = vpop.f32.mrf.mxu0
    %4628 = vdwg.mxu0
    %v4629 = vmax.f32 %v4626, 0.0
    %v4630 = vld [vmem:[%s11] sm:$0xff]
    %v4631 = vld [vmem:[%s11 + $0x8] sm:$0xff]
    %v4632 = vld [vmem:[%s11 + $0x10] sm:$0xff]
    %v4633 = vld [vmem:[%s11 + $0x18] sm:$0xff]
    %v4634 = vld [vmem:[%s11 + $0x20] sm:$0xff]
    %v4635 = vld [vmem:[%s11 + $0x28] sm:$0xff]
    %v4636 = vld [vmem:[%s11 + $0x30] sm:$0xff]
    %v4637 = vld [vmem:[%s11 + $0x38] sm:$0xff]
    %v4638 = vld [vmem:[%s11 + $0x40] sm:$0xff]
    %v4639 = vld [vmem:[%s11 + $0x48] sm:$0xff]
    %v4640 = vld [vmem:[%s11 + $0x50] sm:$0xff]
    %v4641 = vld [vmem:[%s11 + $0x58] sm:$0xff]
    %v4642 = vld [vmem:[%s11 + $0x60] sm:$0xff]
    %v4643 = vld [vmem:[%s11 + $0x68] sm:$0xff]
    %v4644 = vld [vmem:[%s11 + $0x70] sm:$0xff]
    %v4645 = vld [vmem:[%s11 + $0x78] sm:$0xff]
    %v4646 = vld [vmem:[#allocation18] sm:$0x1]
    %v4648 = vlaneseq
    %v4649 = vshrl.u32 %v4648, 7
    %v4650 = vsub.s32 0, %v4649
    %v4651 = vrot.slane %v4646, %v4650
    %4653 = vmatprep.subr.mxu0 0.0
    %4654 = vmatpush1.msra.mxu0 %v4645
    %4655 = vmatprep.subr.mxu0 0.0
    %4656 = vmatpush1.msra.mxu0 %v4644
    %4657 = vmatprep.subr.mxu0 0.0
    %4658 = vmatpush1.msra.mxu0 %v4643
    %4659 = vmatprep.subr.mxu0 0.0
    %4660 = vmatpush1.msra.mxu0 %v4642
    %4661 = vmatprep.subr.mxu0 0.0
    %4662 = vmatpush1.msra.mxu0 %v4641
    %4663 = vmatprep.subr.mxu0 0.0
    %4664 = vmatpush1.msra.mxu0 %v4640
    %4665 = vmatprep.subr.mxu0 0.0
    %4666 = vmatpush1.msra.mxu0 %v4639
    %4667 = vmatprep.subr.mxu0 0.0
    %4668 = vmatpush1.msra.mxu0 %v4638
    %4669 = vmatprep.subr.mxu0 0.0
    %4670 = vmatpush1.msra.mxu0 %v4637
    %4671 = vmatprep.subr.mxu0 0.0
    %4672 = vmatpush1.msra.mxu0 %v4636
    %4673 = vmatprep.subr.mxu0 0.0
    %4674 = vmatpush1.msra.mxu0 %v4635
    %4675 = vmatprep.subr.mxu0 0.0
    %4676 = vmatpush1.msra.mxu0 %v4634
    %4677 = vmatprep.subr.mxu0 0.0
    %4678 = vmatpush1.msra.mxu0 %v4633
    %4679 = vmatprep.subr.mxu0 0.0
    %4680 = vmatpush1.msra.mxu0 %v4632
    %4681 = vmatprep.subr.mxu0 0.0
    %4682 = vmatpush1.msra.mxu0 %v4631
    %4683 = vmatprep.subr.mxu0 0.0
    %4684 = vmatpush1.msra.mxu0 %v4630
    %4685 = vmatprep.subr.mxu0 0.0
    %4686 = vmatpush2.msra.mxu0 0.0
    %4687 = vmatprep.subr.mxu0 0.0
    %4688 = vmatpush2.msra.mxu0 0.0
    %4689 = vmatprep.subr.mxu0 0.0
    %4690 = vmatpush2.msra.mxu0 0.0
    %4691 = vmatprep.subr.mxu0 0.0
    %4692 = vmatpush2.msra.mxu0 0.0
    %4693 = vmatprep.subr.mxu0 0.0
    %4694 = vmatpush2.msra.mxu0 0.0
    %4695 = vmatprep.subr.mxu0 0.0
    %4696 = vmatpush2.msra.mxu0 0.0
    %4697 = vmatprep.subr.mxu0 0.0
    %4698 = vmatpush2.msra.mxu0 0.0
    %4699 = vmatprep.subr.mxu0 0.0
    %4700 = vmatpush2.msra.mxu0 0.0
    %4701 = vmatprep.subr.mxu0 0.0
    %4702 = vmatpush2.msra.mxu0 0.0
    %4703 = vmatprep.subr.mxu0 0.0
    %4704 = vmatpush2.msra.mxu0 0.0
    %4705 = vmatprep.subr.mxu0 0.0
    %4706 = vmatpush2.msra.mxu0 0.0
    %4707 = vmatprep.subr.mxu0 0.0
    %4708 = vmatpush2.msra.mxu0 0.0
    %4709 = vmatprep.subr.mxu0 0.0
    %4710 = vmatpush2.msra.mxu0 0.0
    %4711 = vmatprep.subr.mxu0 0.0
    %4712 = vmatpush2.msra.mxu0 0.0
    %4713 = vmatprep.subr.mxu0 0.0
    %4714 = vmatpush2.msra.mxu0 0.0
    %4715 = vmatprep.subr.mxu0 0.0
    %4716 = vmatpush2.msra.mxu0 0.0
    %4717 = vmatprep.mubr.f32.mxu0 0.0
    %4718 = vmatmul.mubr.f32.gmra.mxu0 %v4629
    %v4719 = vpop.f32.mrf.mxu0
    %v4720 = vadd.f32 %v4651, %v4719
    %v4721 = vpop.f32.mrf.mxu0
    %4722 = vdwg.mxu0
    %v4723 = vtanh.pop %v4720
    %4724 = vst [vmem:[%s16] sm:$0xff] %v4723
    // Predicated region
    $region110: #{arnet_forward.1} parent=1 // pred_check
      _
    $region111: #{arnet_forward.1} parent=1 // pred_check_branch
      %4726 = sbr.rel (0) target = $region113
    $region112: #{arnet_forward.1} parent=1 // pred_region
      _
    $region113: #{arnet_forward.1} parent=1 // pred_fallthru
      _
    // Predicated region
    $region114: #{arnet_forward.1} parent=1 // pred_check
      _
    $region115: #{arnet_forward.1} parent=1 // pred_check_branch
      %4728 = sbr.rel (0) target = $region117
    $region116: #{arnet_forward.1} parent=1 // pred_region
      _
    $region117: #{arnet_forward.1} parent=1 // pred_fallthru
      _
    // Predicated region
    $region118: #{arnet_forward.1} parent=1 // pred_check
      _
    $region119: #{arnet_forward.1} parent=1 // pred_check_branch
      %4730 = sbr.rel (0) target = $region121
    $region120: #{arnet_forward.1} parent=1 // pred_region
      _
    $region121: #{arnet_forward.1} parent=1 // pred_fallthru
      _
    // Predicated region
    $region122: #{arnet_forward.1} parent=1 // pred_check
      _
    $region123: #{arnet_forward.1} parent=1 // pred_check_branch
      %4732 = sbr.rel (0) target = $region125
    $region124: #{arnet_forward.1} parent=1 // pred_region
      _
    $region125: #{arnet_forward.1} parent=1 // pred_fallthru
      _
    %4733 = vsyncpa [#allocation3], 1
    %4734 = vsyncpa [#allocation5], 1
    %4735 = vsyncpa [#allocation8], 1
    %4736 = vsyncpa [#allocation11], 1
    %4737 = vsyncpa [#allocation14], 1
    %4738 = vsyncpa [#allocation17], 1
    %4739 = vsyncpa [#allocation20], 1

</llo_original>
